<compile_context>
chip_gen: v6e
topology: v6e:2x2x1
jax: 0.10.0
libtpu: 0.0.40
codegen_flags: <defaults>
</compile_context>

<pallas_src>
import functools

import jax
import jax.numpy as jnp
from jax.experimental import pallas as pl
from jax.experimental.pallas import tpu as pltpu


# ------------------------------- Pallas kernel --------------------------------

def _conv_block_kernel(x_ref, w_ref, aux_ref, o_ref, *, nb, taps, qd, inv_p,
                       eps, use_bn, use_activation):
    """One grid step processes `nb` batch samples.

    x_ref:   (nb, C_in, Lpad)      flattened reflect-padded activations
    w_ref:   (kh*kw, C_out, C_in)  per-tap weight matrices
    aux_ref: (1, qd)   valid-lane mask (1.0 on real output positions)  if use_bn
             (C_out,1) conv bias                                       otherwise
    o_ref:   (nb, C_out, qd)       lane-dense "dense conv" output
    """
    c_out = w_ref.shape[1]
    for n in range(nb):
        acc = jnp.zeros((c_out, qd), jnp.float32)
        # kh*kw shifted matmuls; each tap reads a lane-shifted window of the
        # flattened activation straight from VMEM.
        for t, off in enumerate(taps):
            xs = x_ref[n, :, pl.ds(off, qd)]            # (C_in, qd)
            acc = acc + jnp.dot(w_ref[t], xs,
                                preferred_element_type=jnp.float32)
        if use_bn:
            # InstanceNorm2d(affine=False, eps=1e-5, biased variance) over the
            # valid spatial positions only.  Bias is skipped: mean subtraction
            # cancels a per-channel constant.
            mask = aux_ref[...]                          # (1, qd)
            s1 = jnp.sum(acc * mask, axis=-1, keepdims=True)        # (C_out,1)
            s2 = jnp.sum(acc * acc * mask, axis=-1, keepdims=True)  # (C_out,1)
            mean = s1 * inv_p
            var = s2 * inv_p - mean * mean               # one-pass variance
            acc = (acc - mean) * jax.lax.rsqrt(var + eps)
        else:
            acc = acc + aux_ref[...]                     # (C_out, 1) bias
        if use_activation:
            acc = jnp.where(acc >= 0, acc, 0.2 * acc)    # LeakyReLU(0.2)
        o_ref[n] = acc.astype(o_ref.dtype)


# ------------------------------- JAX glue / wrapper ----------------------------

def conv_block_forward(x, weight, bias, *, stride, padding, use_bn,
                       use_activation):
    """x: (N, C_in, H, W) NCHW.  weight: (C_out, C_in, kh, kw).  bias: (C_out,)."""
    N, C_in, H, W = x.shape
    C_out, _, kh, kw = weight.shape
    s = stride

    # reflect padding (PyTorch padding_mode='reflect')
    if padding > 0:
        xp = jnp.pad(x, ((0, 0), (0, 0), (padding, padding), (padding, padding)),
                     mode="reflect")
    else:
        xp = x
    Hp, Wp = H + 2 * padding, W + 2 * padding
    Ho = (Hp - kh) // s + 1
    Wo = (Wp - kw) // s + 1
    Hd = Hp - kh + 1            # dense (stride-1) output rows computed in-kernel
    Qd = Hd * Wp                # dense flattened spatial extent (lane axis)
    P = Ho * Wo                 # real output positions per sample

    # Flatten spatial and append kw-1 zeros so every tap slice is in-bounds.
    x_flat = xp.reshape(N, C_in, Hp * Wp)
    x_flat = jnp.pad(x_flat, ((0, 0), (0, 0), (0, kw - 1)))
    Lpad = Hp * Wp + (kw - 1)

    # Per-tap (C_out, C_in) weight matrices and their flat lane offsets.
    w_taps = jnp.transpose(weight, (2, 3, 0, 1)).reshape(kh * kw, C_out, C_in)
    w_taps = w_taps.astype(jnp.float32)
    taps = tuple(i * Wp + j for i in range(kh) for j in range(kw))

    if use_bn:
        # Dense position q = r*Wp + c is a real (stride-aligned, in-range)
        # conv output iff r % s == 0, r//s < Ho, c % s == 0, c//s < Wo.
        r = jnp.arange(Hd)[:, None]
        c = jnp.arange(Wp)[None, :]
        valid = ((r % s == 0) & (r // s < Ho) & (c % s == 0) & (c // s < Wo))
        aux = valid.astype(jnp.float32).reshape(1, Qd)
    else:
        aux = bias.reshape(C_out, 1).astype(jnp.float32)

    # Batch samples per grid step (amortize fixed per-step overhead).
    nb = 1
    for cand in (8, 4, 2, 1):
        if cand <= N and N % cand == 0:
            nb = cand
            break

    kernel = functools.partial(
        _conv_block_kernel, nb=nb, taps=taps, qd=Qd, inv_p=1.0 / P,
        eps=1e-5, use_bn=use_bn, use_activation=use_activation)

    out = pl.pallas_call(
        kernel,
        out_shape=jax.ShapeDtypeStruct((N, C_out, Qd), x.dtype),
        grid_spec=pltpu.PrefetchScalarGridSpec(
            num_scalar_prefetch=0,
            grid=(N // nb,),
            in_specs=[
                pl.BlockSpec((nb, C_in, Lpad), lambda i: (i, 0, 0)),
                pl.BlockSpec((kh * kw, C_out, C_in), lambda i: (0, 0, 0)),
                pl.BlockSpec(aux.shape, lambda i: (0, 0)),
            ],
            out_specs=pl.BlockSpec((nb, C_out, Qd), lambda i: (i, 0, 0)),
        ),
        compiler_params=pltpu.CompilerParams(
            dimension_semantics=("parallel",)),
    )(x_flat, w_taps, aux)

    # (N, C_out, Qd) -> (N, C_out, Hd, Wp) -> strided slice -> NCHW.
    # Pure reshape + slice: no transpose pass over HBM.
    out = out.reshape(N, C_out, Hd, Wp)
    out = out[:, :, 0:(Ho - 1) * s + 1:s, 0:(Wo - 1) * s + 1:s]
    return out


# ------------------------------- reference (pure JAX) --------------------------

def _reference(x, weight, bias, *, stride, padding, use_bn, use_activation):
    xp = jnp.pad(x, ((0, 0), (0, 0), (padding, padding), (padding, padding)),
                 mode="reflect") if padding > 0 else x
    y = jax.lax.conv_general_dilated(
        xp, weight, (stride, stride), "VALID",
        dimension_numbers=("NCHW", "OIHW", "NCHW"))
    y = y + bias[None, :, None, None]
    if use_bn:
        mean = y.mean(axis=(2, 3), keepdims=True)
        var = ((y - mean) ** 2).mean(axis=(2, 3), keepdims=True)
        y = (y - mean) / jnp.sqrt(var + 1e-5)
    if use_activation:
        y = jnp.where(y >= 0, y, 0.2 * y)
    return y


# ------------------------------------ main --------------------------------------

if __name__ == "__main__":
    # ConvBlock(in_channels=4, out_channels=8, kernel_size=3, stride=1,
    #           padding=1, use_bn=True, use_activation=True)
    in_channels, out_channels = 4, 8
    kernel_size, stride, padding = 3, 1, 1
    use_bn, use_activation = True, True

    key = jax.random.PRNGKey(0)
    kx, kw, kb = jax.random.split(key, 3)

    x = jax.random.normal(kx, (2, in_channels, 16, 16), dtype=jnp.float32)
    fan_in = in_channels * kernel_size * kernel_size
    weight = jax.random.normal(
        kw, (out_channels, in_channels, kernel_size, kernel_size),
        dtype=jnp.float32) / jnp.sqrt(float(fan_in))
    bias = jax.random.normal(kb, (out_channels,), dtype=jnp.float32) * 0.1

    out = conv_block_forward(x, weight, bias,
                             stride=stride, padding=padding,
                             use_bn=use_bn, use_activation=use_activation)
    out = jax.block_until_ready(out)

    ref = _reference(x, weight, bias,
                     stride=stride, padding=padding,
                     use_bn=use_bn, use_activation=use_activation)

    assert out.shape == (2, out_channels, 16, 16), out.shape
    assert jnp.allclose(out, ref, rtol=1e-2, atol=1e-2), \
        float(jnp.max(jnp.abs(out - ref)))

    print("KERNEL_OK")
</pallas_src>

<mosaic_0001>
module attributes {stable_mosaic.version = 11 : i64} {
  func.func @_conv_block_kernel(%arg0: i32, %arg1: memref<2x4x326xf32, #tpu.memory_space<vmem>>, %arg2: memref<9x8x4xf32, #tpu.memory_space<vmem>>, %arg3: memref<1x288xf32, #tpu.memory_space<vmem>>, %arg4: memref<2x8x288xf32, #tpu.memory_space<vmem>>) attributes {dimension_semantics = [#tpu.dimension_semantics<parallel>], iteration_bounds = array<i64: 1>, scalar_prefetch = 0 : i64, scratch_operands = 0 : i64, tpu.core_type = #tpu.core_type<tc>, window_params = [{transform_indices = @transform_0, window_bounds = array<i64: 2, 4, 326>}, {pipeline_mode = #tpu.pipeline_mode<synchronous>, transform_indices = @transform_1, window_bounds = array<i64: 9, 8, 4>}, {pipeline_mode = #tpu.pipeline_mode<synchronous>, transform_indices = @transform_2, window_bounds = array<i64: 1, 288>}, {transform_indices = @transform_3, window_bounds = array<i64: 2, 8, 288>}]} {
    %cst = arith.constant 0.000000e+00 : f32
    %0 = vector.broadcast %cst : f32 to vector<8x288xf32>
    %c0 = arith.constant 0 : index
    %c0_0 = arith.constant 0 : index
    %c0_1 = arith.constant 0 : index
    %1 = vector.load %arg1[%c0, %c0_0, %c0_1] : memref<2x4x326xf32, #tpu.memory_space<vmem>>, vector<1x4x288xf32>
    %2 = vector.shape_cast %1 : vector<1x4x288xf32> to vector<4x288xf32>
    %c0_2 = arith.constant 0 : index
    %c0_3 = arith.constant 0 : index
    %c0_4 = arith.constant 0 : index
    %3 = vector.load %arg2[%c0_2, %c0_3, %c0_4] : memref<9x8x4xf32, #tpu.memory_space<vmem>>, vector<1x8x4xf32>
    %4 = vector.shape_cast %3 : vector<1x8x4xf32> to vector<8x4xf32>
    %cst_5 = arith.constant dense<0.000000e+00> : vector<8x288xf32>
    %5 = tpu.matmul %4, %2, %cst_5 {dimension_numbers = #tpu.dot_dimension_numbers<[1], [0], [0], [1], [0, 0, 1, 1], [], []>} : vector<8x4xf32>, vector<4x288xf32>, vector<8x288xf32> -> vector<8x288xf32>
    %6 = arith.addf %0, %5 : vector<8x288xf32>
    %c0_6 = arith.constant 0 : index
    %c0_7 = arith.constant 0 : index
    %c1 = arith.constant 1 : index
    %7 = vector.load %arg1[%c0_6, %c0_7, %c1] : memref<2x4x326xf32, #tpu.memory_space<vmem>>, vector<1x4x288xf32>
    %8 = vector.shape_cast %7 : vector<1x4x288xf32> to vector<4x288xf32>
    %c1_8 = arith.constant 1 : index
    %c0_9 = arith.constant 0 : index
    %c0_10 = arith.constant 0 : index
    %9 = vector.load %arg2[%c1_8, %c0_9, %c0_10] : memref<9x8x4xf32, #tpu.memory_space<vmem>>, vector<1x8x4xf32>
    %10 = vector.shape_cast %9 : vector<1x8x4xf32> to vector<8x4xf32>
    %cst_11 = arith.constant dense<0.000000e+00> : vector<8x288xf32>
    %11 = tpu.matmul %10, %8, %cst_11 {dimension_numbers = #tpu.dot_dimension_numbers<[1], [0], [0], [1], [0, 0, 1, 1], [], []>} : vector<8x4xf32>, vector<4x288xf32>, vector<8x288xf32> -> vector<8x288xf32>
    %12 = arith.addf %6, %11 : vector<8x288xf32>
    %c0_12 = arith.constant 0 : index
    %c0_13 = arith.constant 0 : index
    %c2 = arith.constant 2 : index
    %13 = vector.load %arg1[%c0_12, %c0_13, %c2] : memref<2x4x326xf32, #tpu.memory_space<vmem>>, vector<1x4x288xf32>
    %14 = vector.shape_cast %13 : vector<1x4x288xf32> to vector<4x288xf32>
    %c2_14 = arith.constant 2 : index
    %c0_15 = arith.constant 0 : index
    %c0_16 = arith.constant 0 : index
    %15 = vector.load %arg2[%c2_14, %c0_15, %c0_16] : memref<9x8x4xf32, #tpu.memory_space<vmem>>, vector<1x8x4xf32>
    %16 = vector.shape_cast %15 : vector<1x8x4xf32> to vector<8x4xf32>
    %cst_17 = arith.constant dense<0.000000e+00> : vector<8x288xf32>
    %17 = tpu.matmul %16, %14, %cst_17 {dimension_numbers = #tpu.dot_dimension_numbers<[1], [0], [0], [1], [0, 0, 1, 1], [], []>} : vector<8x4xf32>, vector<4x288xf32>, vector<8x288xf32> -> vector<8x288xf32>
    %18 = arith.addf %12, %17 : vector<8x288xf32>
    %c0_18 = arith.constant 0 : index
    %c0_19 = arith.constant 0 : index
    %c18 = arith.constant 18 : index
    %19 = vector.load %arg1[%c0_18, %c0_19, %c18] : memref<2x4x326xf32, #tpu.memory_space<vmem>>, vector<1x4x288xf32>
    %20 = vector.shape_cast %19 : vector<1x4x288xf32> to vector<4x288xf32>
    %c3 = arith.constant 3 : index
    %c0_20 = arith.constant 0 : index
    %c0_21 = arith.constant 0 : index
    %21 = vector.load %arg2[%c3, %c0_20, %c0_21] : memref<9x8x4xf32, #tpu.memory_space<vmem>>, vector<1x8x4xf32>
    %22 = vector.shape_cast %21 : vector<1x8x4xf32> to vector<8x4xf32>
    %cst_22 = arith.constant dense<0.000000e+00> : vector<8x288xf32>
    %23 = tpu.matmul %22, %20, %cst_22 {dimension_numbers = #tpu.dot_dimension_numbers<[1], [0], [0], [1], [0, 0, 1, 1], [], []>} : vector<8x4xf32>, vector<4x288xf32>, vector<8x288xf32> -> vector<8x288xf32>
    %24 = arith.addf %18, %23 : vector<8x288xf32>
    %c0_23 = arith.constant 0 : index
    %c0_24 = arith.constant 0 : index
    %c19 = arith.constant 19 : index
    %25 = vector.load %arg1[%c0_23, %c0_24, %c19] : memref<2x4x326xf32, #tpu.memory_space<vmem>>, vector<1x4x288xf32>
    %26 = vector.shape_cast %25 : vector<1x4x288xf32> to vector<4x288xf32>
    %c4 = arith.constant 4 : index
    %c0_25 = arith.constant 0 : index
    %c0_26 = arith.constant 0 : index
    %27 = vector.load %arg2[%c4, %c0_25, %c0_26] : memref<9x8x4xf32, #tpu.memory_space<vmem>>, vector<1x8x4xf32>
    %28 = vector.shape_cast %27 : vector<1x8x4xf32> to vector<8x4xf32>
    %cst_27 = arith.constant dense<0.000000e+00> : vector<8x288xf32>
    %29 = tpu.matmul %28, %26, %cst_27 {dimension_numbers = #tpu.dot_dimension_numbers<[1], [0], [0], [1], [0, 0, 1, 1], [], []>} : vector<8x4xf32>, vector<4x288xf32>, vector<8x288xf32> -> vector<8x288xf32>
    %30 = arith.addf %24, %29 : vector<8x288xf32>
    %c0_28 = arith.constant 0 : index
    %c0_29 = arith.constant 0 : index
    %c20 = arith.constant 20 : index
    %31 = vector.load %arg1[%c0_28, %c0_29, %c20] : memref<2x4x326xf32, #tpu.memory_space<vmem>>, vector<1x4x288xf32>
    %32 = vector.shape_cast %31 : vector<1x4x288xf32> to vector<4x288xf32>
    %c5 = arith.constant 5 : index
    %c0_30 = arith.constant 0 : index
    %c0_31 = arith.constant 0 : index
    %33 = vector.load %arg2[%c5, %c0_30, %c0_31] : memref<9x8x4xf32, #tpu.memory_space<vmem>>, vector<1x8x4xf32>
    %34 = vector.shape_cast %33 : vector<1x8x4xf32> to vector<8x4xf32>
    %cst_32 = arith.constant dense<0.000000e+00> : vector<8x288xf32>
    %35 = tpu.matmul %34, %32, %cst_32 {dimension_numbers = #tpu.dot_dimension_numbers<[1], [0], [0], [1], [0, 0, 1, 1], [], []>} : vector<8x4xf32>, vector<4x288xf32>, vector<8x288xf32> -> vector<8x288xf32>
    %36 = arith.addf %30, %35 : vector<8x288xf32>
    %c0_33 = arith.constant 0 : index
    %c0_34 = arith.constant 0 : index
    %c36 = arith.constant 36 : index
    %37 = vector.load %arg1[%c0_33, %c0_34, %c36] : memref<2x4x326xf32, #tpu.memory_space<vmem>>, vector<1x4x288xf32>
    %38 = vector.shape_cast %37 : vector<1x4x288xf32> to vector<4x288xf32>
    %c6 = arith.constant 6 : index
    %c0_35 = arith.constant 0 : index
    %c0_36 = arith.constant 0 : index
    %39 = vector.load %arg2[%c6, %c0_35, %c0_36] : memref<9x8x4xf32, #tpu.memory_space<vmem>>, vector<1x8x4xf32>
    %40 = vector.shape_cast %39 : vector<1x8x4xf32> to vector<8x4xf32>
    %cst_37 = arith.constant dense<0.000000e+00> : vector<8x288xf32>
    %41 = tpu.matmul %40, %38, %cst_37 {dimension_numbers = #tpu.dot_dimension_numbers<[1], [0], [0], [1], [0, 0, 1, 1], [], []>} : vector<8x4xf32>, vector<4x288xf32>, vector<8x288xf32> -> vector<8x288xf32>
    %42 = arith.addf %36, %41 : vector<8x288xf32>
    %c0_38 = arith.constant 0 : index
    %c0_39 = arith.constant 0 : index
    %c37 = arith.constant 37 : index
    %43 = vector.load %arg1[%c0_38, %c0_39, %c37] : memref<2x4x326xf32, #tpu.memory_space<vmem>>, vector<1x4x288xf32>
    %44 = vector.shape_cast %43 : vector<1x4x288xf32> to vector<4x288xf32>
    %c7 = arith.constant 7 : index
    %c0_40 = arith.constant 0 : index
    %c0_41 = arith.constant 0 : index
    %45 = vector.load %arg2[%c7, %c0_40, %c0_41] : memref<9x8x4xf32, #tpu.memory_space<vmem>>, vector<1x8x4xf32>
    %46 = vector.shape_cast %45 : vector<1x8x4xf32> to vector<8x4xf32>
    %cst_42 = arith.constant dense<0.000000e+00> : vector<8x288xf32>
    %47 = tpu.matmul %46, %44, %cst_42 {dimension_numbers = #tpu.dot_dimension_numbers<[1], [0], [0], [1], [0, 0, 1, 1], [], []>} : vector<8x4xf32>, vector<4x288xf32>, vector<8x288xf32> -> vector<8x288xf32>
    %48 = arith.addf %42, %47 : vector<8x288xf32>
    %c0_43 = arith.constant 0 : index
    %c0_44 = arith.constant 0 : index
    %c38 = arith.constant 38 : index
    %49 = vector.load %arg1[%c0_43, %c0_44, %c38] : memref<2x4x326xf32, #tpu.memory_space<vmem>>, vector<1x4x288xf32>
    %50 = vector.shape_cast %49 : vector<1x4x288xf32> to vector<4x288xf32>
    %c8 = arith.constant 8 : index
    %c0_45 = arith.constant 0 : index
    %c0_46 = arith.constant 0 : index
    %51 = vector.load %arg2[%c8, %c0_45, %c0_46] : memref<9x8x4xf32, #tpu.memory_space<vmem>>, vector<1x8x4xf32>
    %52 = vector.shape_cast %51 : vector<1x8x4xf32> to vector<8x4xf32>
    %cst_47 = arith.constant dense<0.000000e+00> : vector<8x288xf32>
    %53 = tpu.matmul %52, %50, %cst_47 {dimension_numbers = #tpu.dot_dimension_numbers<[1], [0], [0], [1], [0, 0, 1, 1], [], []>} : vector<8x4xf32>, vector<4x288xf32>, vector<8x288xf32> -> vector<8x288xf32>
    %54 = arith.addf %48, %53 : vector<8x288xf32>
    %c0_48 = arith.constant 0 : index
    %c0_49 = arith.constant 0 : index
    %55 = vector.load %arg3[%c0_48, %c0_49] : memref<1x288xf32, #tpu.memory_space<vmem>>, vector<1x288xf32>
    %56 = vector.broadcast %55 : vector<1x288xf32> to vector<8x288xf32>
    %57 = arith.mulf %54, %56 : vector<8x288xf32>
    %cst_50 = arith.constant dense<0.000000e+00> : vector<8xf32>
    %58 = vector.multi_reduction <add>, %57, %cst_50 [1] : vector<8x288xf32> to vector<8xf32>
    %59 = vector.shape_cast %58 : vector<8xf32> to vector<8x1xf32>
    %60 = arith.mulf %54, %54 : vector<8x288xf32>
    %61 = vector.broadcast %55 : vector<1x288xf32> to vector<8x288xf32>
    %62 = arith.mulf %60, %61 : vector<8x288xf32>
    %cst_51 = arith.constant dense<0.000000e+00> : vector<8xf32>
    %63 = vector.multi_reduction <add>, %62, %cst_51 [1] : vector<8x288xf32> to vector<8xf32>
    %64 = vector.shape_cast %63 : vector<8xf32> to vector<8x1xf32>
    %cst_52 = arith.constant 3.906250e-03 : f32
    %65 = vector.broadcast %cst_52 : f32 to vector<8x1xf32>
    %66 = arith.mulf %59, %65 : vector<8x1xf32>
    %cst_53 = arith.constant 3.906250e-03 : f32
    %67 = vector.broadcast %cst_53 : f32 to vector<8x1xf32>
    %68 = arith.mulf %64, %67 : vector<8x1xf32>
    %69 = arith.mulf %66, %66 : vector<8x1xf32>
    %70 = arith.subf %68, %69 : vector<8x1xf32>
    %71 = vector.broadcast %66 : vector<8x1xf32> to vector<8x288xf32>
    %72 = arith.subf %54, %71 : vector<8x288xf32>
    %cst_54 = arith.constant 9.99999974E-6 : f32
    %73 = vector.broadcast %cst_54 : f32 to vector<8x1xf32>
    %74 = arith.addf %70, %73 : vector<8x1xf32>
    %75 = math.rsqrt %74 : vector<8x1xf32>
    %76 = vector.broadcast %75 : vector<8x1xf32> to vector<8x288xf32>
    %77 = arith.mulf %72, %76 : vector<8x288xf32>
    %cst_55 = arith.constant 0.000000e+00 : f32
    %78 = vector.broadcast %cst_55 : f32 to vector<8x288xf32>
    %79 = arith.cmpf oge, %77, %78 : vector<8x288xf32>
    %cst_56 = arith.constant 2.000000e-01 : f32
    %80 = vector.broadcast %cst_56 : f32 to vector<8x288xf32>
    %81 = arith.mulf %80, %77 : vector<8x288xf32>
    %82 = arith.select %79, %77, %81 : vector<8x288xi1>, vector<8x288xf32>
    %c0_57 = arith.constant 0 : index
    %c0_58 = arith.constant 0 : index
    %c0_59 = arith.constant 0 : index
    %83 = vector.load %arg4[%c0_57, %c0_58, %c0_59] : memref<2x8x288xf32, #tpu.memory_space<vmem>>, vector<1x8x288xf32>
    %84 = vector.shape_cast %83 : vector<1x8x288xf32> to vector<8x288xf32>
    %85 = vector.shape_cast %82 : vector<8x288xf32> to vector<1x8x288xf32>
    tpu.vector_store %arg4[%c0_57, %c0_58, %c0_59], %85 {strides = array<i32>} : memref<2x8x288xf32, #tpu.memory_space<vmem>>, vector<1x8x288xf32>,
    %cst_60 = arith.constant 0.000000e+00 : f32
    %86 = vector.broadcast %cst_60 : f32 to vector<8x288xf32>
    %c1_61 = arith.constant 1 : index
    %c0_62 = arith.constant 0 : index
    %c0_63 = arith.constant 0 : index
    %87 = vector.load %arg1[%c1_61, %c0_62, %c0_63] : memref<2x4x326xf32, #tpu.memory_space<vmem>>, vector<1x4x288xf32>
    %88 = vector.shape_cast %87 : vector<1x4x288xf32> to vector<4x288xf32>
    %c0_64 = arith.constant 0 : index
    %c0_65 = arith.constant 0 : index
    %c0_66 = arith.constant 0 : index
    %89 = vector.load %arg2[%c0_64, %c0_65, %c0_66] : memref<9x8x4xf32, #tpu.memory_space<vmem>>, vector<1x8x4xf32>
    %90 = vector.shape_cast %89 : vector<1x8x4xf32> to vector<8x4xf32>
    %cst_67 = arith.constant dense<0.000000e+00> : vector<8x288xf32>
    %91 = tpu.matmul %90, %88, %cst_67 {dimension_numbers = #tpu.dot_dimension_numbers<[1], [0], [0], [1], [0, 0, 1, 1], [], []>} : vector<8x4xf32>, vector<4x288xf32>, vector<8x288xf32> -> vector<8x288xf32>
    %92 = arith.addf %86, %91 : vector<8x288xf32>
    %c1_68 = arith.constant 1 : index
    %c0_69 = arith.constant 0 : index
    %c1_70 = arith.constant 1 : index
    %93 = vector.load %arg1[%c1_68, %c0_69, %c1_70] : memref<2x4x326xf32, #tpu.memory_space<vmem>>, vector<1x4x288xf32>
    %94 = vector.shape_cast %93 : vector<1x4x288xf32> to vector<4x288xf32>
    %c1_71 = arith.constant 1 : index
    %c0_72 = arith.constant 0 : index
    %c0_73 = arith.constant 0 : index
    %95 = vector.load %arg2[%c1_71, %c0_72, %c0_73] : memref<9x8x4xf32, #tpu.memory_space<vmem>>, vector<1x8x4xf32>
    %96 = vector.shape_cast %95 : vector<1x8x4xf32> to vector<8x4xf32>
    %cst_74 = arith.constant dense<0.000000e+00> : vector<8x288xf32>
    %97 = tpu.matmul %96, %94, %cst_74 {dimension_numbers = #tpu.dot_dimension_numbers<[1], [0], [0], [1], [0, 0, 1, 1], [], []>} : vector<8x4xf32>, vector<4x288xf32>, vector<8x288xf32> -> vector<8x288xf32>
    %98 = arith.addf %92, %97 : vector<8x288xf32>
    %c1_75 = arith.constant 1 : index
    %c0_76 = arith.constant 0 : index
    %c2_77 = arith.constant 2 : index
    %99 = vector.load %arg1[%c1_75, %c0_76, %c2_77] : memref<2x4x326xf32, #tpu.memory_space<vmem>>, vector<1x4x288xf32>
    %100 = vector.shape_cast %99 : vector<1x4x288xf32> to vector<4x288xf32>
    %c2_78 = arith.constant 2 : index
    %c0_79 = arith.constant 0 : index
    %c0_80 = arith.constant 0 : index
    %101 = vector.load %arg2[%c2_78, %c0_79, %c0_80] : memref<9x8x4xf32, #tpu.memory_space<vmem>>, vector<1x8x4xf32>
    %102 = vector.shape_cast %101 : vector<1x8x4xf32> to vector<8x4xf32>
    %cst_81 = arith.constant dense<0.000000e+00> : vector<8x288xf32>
    %103 = tpu.matmul %102, %100, %cst_81 {dimension_numbers = #tpu.dot_dimension_numbers<[1], [0], [0], [1], [0, 0, 1, 1], [], []>} : vector<8x4xf32>, vector<4x288xf32>, vector<8x288xf32> -> vector<8x288xf32>
    %104 = arith.addf %98, %103 : vector<8x288xf32>
    %c1_82 = arith.constant 1 : index
    %c0_83 = arith.constant 0 : index
    %c18_84 = arith.constant 18 : index
    %105 = vector.load %arg1[%c1_82, %c0_83, %c18_84] : memref<2x4x326xf32, #tpu.memory_space<vmem>>, vector<1x4x288xf32>
    %106 = vector.shape_cast %105 : vector<1x4x288xf32> to vector<4x288xf32>
    %c3_85 = arith.constant 3 : index
    %c0_86 = arith.constant 0 : index
    %c0_87 = arith.constant 0 : index
    %107 = vector.load %arg2[%c3_85, %c0_86, %c0_87] : memref<9x8x4xf32, #tpu.memory_space<vmem>>, vector<1x8x4xf32>
    %108 = vector.shape_cast %107 : vector<1x8x4xf32> to vector<8x4xf32>
    %cst_88 = arith.constant dense<0.000000e+00> : vector<8x288xf32>
    %109 = tpu.matmul %108, %106, %cst_88 {dimension_numbers = #tpu.dot_dimension_numbers<[1], [0], [0], [1], [0, 0, 1, 1], [], []>} : vector<8x4xf32>, vector<4x288xf32>, vector<8x288xf32> -> vector<8x288xf32>
    %110 = arith.addf %104, %109 : vector<8x288xf32>
    %c1_89 = arith.constant 1 : index
    %c0_90 = arith.constant 0 : index
    %c19_91 = arith.constant 19 : index
    %111 = vector.load %arg1[%c1_89, %c0_90, %c19_91] : memref<2x4x326xf32, #tpu.memory_space<vmem>>, vector<1x4x288xf32>
    %112 = vector.shape_cast %111 : vector<1x4x288xf32> to vector<4x288xf32>
    %c4_92 = arith.constant 4 : index
    %c0_93 = arith.constant 0 : index
    %c0_94 = arith.constant 0 : index
    %113 = vector.load %arg2[%c4_92, %c0_93, %c0_94] : memref<9x8x4xf32, #tpu.memory_space<vmem>>, vector<1x8x4xf32>
    %114 = vector.shape_cast %113 : vector<1x8x4xf32> to vector<8x4xf32>
    %cst_95 = arith.constant dense<0.000000e+00> : vector<8x288xf32>
    %115 = tpu.matmul %114, %112, %cst_95 {dimension_numbers = #tpu.dot_dimension_numbers<[1], [0], [0], [1], [0, 0, 1, 1], [], []>} : vector<8x4xf32>, vector<4x288xf32>, vector<8x288xf32> -> vector<8x288xf32>
    %116 = arith.addf %110, %115 : vector<8x288xf32>
    %c1_96 = arith.constant 1 : index
    %c0_97 = arith.constant 0 : index
    %c20_98 = arith.constant 20 : index
    %117 = vector.load %arg1[%c1_96, %c0_97, %c20_98] : memref<2x4x326xf32, #tpu.memory_space<vmem>>, vector<1x4x288xf32>
    %118 = vector.shape_cast %117 : vector<1x4x288xf32> to vector<4x288xf32>
    %c5_99 = arith.constant 5 : index
    %c0_100 = arith.constant 0 : index
    %c0_101 = arith.constant 0 : index
    %119 = vector.load %arg2[%c5_99, %c0_100, %c0_101] : memref<9x8x4xf32, #tpu.memory_space<vmem>>, vector<1x8x4xf32>
    %120 = vector.shape_cast %119 : vector<1x8x4xf32> to vector<8x4xf32>
    %cst_102 = arith.constant dense<0.000000e+00> : vector<8x288xf32>
    %121 = tpu.matmul %120, %118, %cst_102 {dimension_numbers = #tpu.dot_dimension_numbers<[1], [0], [0], [1], [0, 0, 1, 1], [], []>} : vector<8x4xf32>, vector<4x288xf32>, vector<8x288xf32> -> vector<8x288xf32>
    %122 = arith.addf %116, %121 : vector<8x288xf32>
    %c1_103 = arith.constant 1 : index
    %c0_104 = arith.constant 0 : index
    %c36_105 = arith.constant 36 : index
    %123 = vector.load %arg1[%c1_103, %c0_104, %c36_105] : memref<2x4x326xf32, #tpu.memory_space<vmem>>, vector<1x4x288xf32>
    %124 = vector.shape_cast %123 : vector<1x4x288xf32> to vector<4x288xf32>
    %c6_106 = arith.constant 6 : index
    %c0_107 = arith.constant 0 : index
    %c0_108 = arith.constant 0 : index
    %125 = vector.load %arg2[%c6_106, %c0_107, %c0_108] : memref<9x8x4xf32, #tpu.memory_space<vmem>>, vector<1x8x4xf32>
    %126 = vector.shape_cast %125 : vector<1x8x4xf32> to vector<8x4xf32>
    %cst_109 = arith.constant dense<0.000000e+00> : vector<8x288xf32>
    %127 = tpu.matmul %126, %124, %cst_109 {dimension_numbers = #tpu.dot_dimension_numbers<[1], [0], [0], [1], [0, 0, 1, 1], [], []>} : vector<8x4xf32>, vector<4x288xf32>, vector<8x288xf32> -> vector<8x288xf32>
    %128 = arith.addf %122, %127 : vector<8x288xf32>
    %c1_110 = arith.constant 1 : index
    %c0_111 = arith.constant 0 : index
    %c37_112 = arith.constant 37 : index
    %129 = vector.load %arg1[%c1_110, %c0_111, %c37_112] : memref<2x4x326xf32, #tpu.memory_space<vmem>>, vector<1x4x288xf32>
    %130 = vector.shape_cast %129 : vector<1x4x288xf32> to vector<4x288xf32>
    %c7_113 = arith.constant 7 : index
    %c0_114 = arith.constant 0 : index
    %c0_115 = arith.constant 0 : index
    %131 = vector.load %arg2[%c7_113, %c0_114, %c0_115] : memref<9x8x4xf32, #tpu.memory_space<vmem>>, vector<1x8x4xf32>
    %132 = vector.shape_cast %131 : vector<1x8x4xf32> to vector<8x4xf32>
    %cst_116 = arith.constant dense<0.000000e+00> : vector<8x288xf32>
    %133 = tpu.matmul %132, %130, %cst_116 {dimension_numbers = #tpu.dot_dimension_numbers<[1], [0], [0], [1], [0, 0, 1, 1], [], []>} : vector<8x4xf32>, vector<4x288xf32>, vector<8x288xf32> -> vector<8x288xf32>
    %134 = arith.addf %128, %133 : vector<8x288xf32>
    %c1_117 = arith.constant 1 : index
    %c0_118 = arith.constant 0 : index
    %c38_119 = arith.constant 38 : index
    %135 = vector.load %arg1[%c1_117, %c0_118, %c38_119] : memref<2x4x326xf32, #tpu.memory_space<vmem>>, vector<1x4x288xf32>
    %136 = vector.shape_cast %135 : vector<1x4x288xf32> to vector<4x288xf32>
    %c8_120 = arith.constant 8 : index
    %c0_121 = arith.constant 0 : index
    %c0_122 = arith.constant 0 : index
    %137 = vector.load %arg2[%c8_120, %c0_121, %c0_122] : memref<9x8x4xf32, #tpu.memory_space<vmem>>, vector<1x8x4xf32>
    %138 = vector.shape_cast %137 : vector<1x8x4xf32> to vector<8x4xf32>
    %cst_123 = arith.constant dense<0.000000e+00> : vector<8x288xf32>
    %139 = tpu.matmul %138, %136, %cst_123 {dimension_numbers = #tpu.dot_dimension_numbers<[1], [0], [0], [1], [0, 0, 1, 1], [], []>} : vector<8x4xf32>, vector<4x288xf32>, vector<8x288xf32> -> vector<8x288xf32>
    %140 = arith.addf %134, %139 : vector<8x288xf32>
    %c0_124 = arith.constant 0 : index
    %c0_125 = arith.constant 0 : index
    %141 = vector.load %arg3[%c0_124, %c0_125] : memref<1x288xf32, #tpu.memory_space<vmem>>, vector<1x288xf32>
    %142 = vector.broadcast %141 : vector<1x288xf32> to vector<8x288xf32>
    %143 = arith.mulf %140, %142 : vector<8x288xf32>
    %cst_126 = arith.constant dense<0.000000e+00> : vector<8xf32>
    %144 = vector.multi_reduction <add>, %143, %cst_126 [1] : vector<8x288xf32> to vector<8xf32>
    %145 = vector.shape_cast %144 : vector<8xf32> to vector<8x1xf32>
    %146 = arith.mulf %140, %140 : vector<8x288xf32>
    %147 = vector.broadcast %141 : vector<1x288xf32> to vector<8x288xf32>
    %148 = arith.mulf %146, %147 : vector<8x288xf32>
    %cst_127 = arith.constant dense<0.000000e+00> : vector<8xf32>
    %149 = vector.multi_reduction <add>, %148, %cst_127 [1] : vector<8x288xf32> to vector<8xf32>
    %150 = vector.shape_cast %149 : vector<8xf32> to vector<8x1xf32>
    %cst_128 = arith.constant 3.906250e-03 : f32
    %151 = vector.broadcast %cst_128 : f32 to vector<8x1xf32>
    %152 = arith.mulf %145, %151 : vector<8x1xf32>
    %cst_129 = arith.constant 3.906250e-03 : f32
    %153 = vector.broadcast %cst_129 : f32 to vector<8x1xf32>
    %154 = arith.mulf %150, %153 : vector<8x1xf32>
    %155 = arith.mulf %152, %152 : vector<8x1xf32>
    %156 = arith.subf %154, %155 : vector<8x1xf32>
    %157 = vector.broadcast %152 : vector<8x1xf32> to vector<8x288xf32>
    %158 = arith.subf %140, %157 : vector<8x288xf32>
    %cst_130 = arith.constant 9.99999974E-6 : f32
    %159 = vector.broadcast %cst_130 : f32 to vector<8x1xf32>
    %160 = arith.addf %156, %159 : vector<8x1xf32>
    %161 = math.rsqrt %160 : vector<8x1xf32>
    %162 = vector.broadcast %161 : vector<8x1xf32> to vector<8x288xf32>
    %163 = arith.mulf %158, %162 : vector<8x288xf32>
    %cst_131 = arith.constant 0.000000e+00 : f32
    %164 = vector.broadcast %cst_131 : f32 to vector<8x288xf32>
    %165 = arith.cmpf oge, %163, %164 : vector<8x288xf32>
    %cst_132 = arith.constant 2.000000e-01 : f32
    %166 = vector.broadcast %cst_132 : f32 to vector<8x288xf32>
    %167 = arith.mulf %166, %163 : vector<8x288xf32>
    %168 = arith.select %165, %163, %167 : vector<8x288xi1>, vector<8x288xf32>
    %c1_133 = arith.constant 1 : index
    %c0_134 = arith.constant 0 : index
    %c0_135 = arith.constant 0 : index
    %169 = vector.load %arg4[%c1_133, %c0_134, %c0_135] : memref<2x8x288xf32, #tpu.memory_space<vmem>>, vector<1x8x288xf32>
    %170 = vector.shape_cast %169 : vector<1x8x288xf32> to vector<8x288xf32>
    %171 = vector.shape_cast %168 : vector<8x288xf32> to vector<1x8x288xf32>
    tpu.vector_store %arg4[%c1_133, %c0_134, %c0_135], %171 {strides = array<i32>} : memref<2x8x288xf32, #tpu.memory_space<vmem>>, vector<1x8x288xf32>,
    return
  }
  func.func @transform_0(%arg0: i32) -> (i32, i32, i32) {
    %c0_i32 = arith.constant 0 : i32
    %c0_i32_0 = arith.constant 0 : i32
    %c0_i32_1 = arith.constant 0 : i32
    return %arg0, %c0_i32, %c0_i32_0 : i32, i32, i32
  }
  func.func @transform_1(%arg0: i32) -> (i32, i32, i32) {
    %c0_i32 = arith.constant 0 : i32
    %c0_i32_0 = arith.constant 0 : i32
    %c0_i32_1 = arith.constant 0 : i32
    %c0_i32_2 = arith.constant 0 : i32
    return %c0_i32, %c0_i32_0, %c0_i32_1 : i32, i32, i32
  }
  func.func @transform_2(%arg0: i32) -> (i32, i32) {
    %c0_i32 = arith.constant 0 : i32
    %c0_i32_0 = arith.constant 0 : i32
    %c0_i32_1 = arith.constant 0 : i32
    return %c0_i32, %c0_i32_0 : i32, i32
  }
  func.func @transform_3(%arg0: i32) -> (i32, i32, i32) {
    %c0_i32 = arith.constant 0 : i32
    %c0_i32_0 = arith.constant 0 : i32
    %c0_i32_1 = arith.constant 0 : i32
    return %arg0, %c0_i32, %c0_i32_0 : i32, i32, i32
  }
}

</mosaic_0001>

<llo_original>
// kernel: tpu_custom_call.1
$region0: #{tpu_custom_call.1}
  #allocation0 [shape = 'u32[]', space=smem, size = 0x4, offset = 0x4, fixed_abs, tag = 'smem constant byte address 0x4 - core index']
  #allocation1 [shape = 'u32[144,128]{1,0:T(1,128)}', space=vmem, size = 0x12000, scoped, tag = 'internal scratch']
  %s0 = inlined_call_operand.vmem [shape: f32[2,4,326], index: 0, kind: input, shape index: {}]
  %s1 = inlined_call_operand.vmem [shape: f32[9,8,4], index: 1, kind: input, shape index: {}]
  %s2 = inlined_call_operand.vmem [shape: f32[1,288], index: 2, kind: input, shape index: {}]
  %s3 = inlined_call_operand.hbm [shape: f32[2,8,288], index: 3, kind: output, shape index: {}]
  %s4 = sld [smem:[#allocation0]]
  $region22: #{tpu_custom_call.1} parent=0
    _
  %s6 = ssub.s32 1, %s4
  %s7 = scalar_select 0, %s6, %s4
  $region1: #{tpu_custom_call.1} parent=0
    #allocation2 [shape = 'u8[24576]{0}', space=vmem, size = 0x6000, scoped, tag = 'output window, operand 0, single buffered']
    #allocation3 [shape = 's32[1]{0}', space=sflag, size = 0x4, scoped, tag = 'scoped memory for tpu_custom_call.1']
    %8 = vsyncpa [#allocation3], 0
    // Predicated region
    $region2: #{tpu_custom_call.1} parent=1 // pred_check
      _
    $region3: #{tpu_custom_call.1} parent=1 // pred_check_branch
      %10 = sbr.rel (0) target = $region5
    $region4: #{tpu_custom_call.1} parent=1 // pred_region
      _
    $region5: #{tpu_custom_call.1} parent=1 // pred_fallthru
      _
    // Predicated region
    $region6: #{tpu_custom_call.1} parent=1 // pred_check
      _
    $region7: #{tpu_custom_call.1} parent=1 // pred_check_branch
      %12 = sbr.rel (0) target = $region9
    $region8: #{tpu_custom_call.1} parent=1 // pred_region
      _
    $region9: #{tpu_custom_call.1} parent=1 // pred_fallthru
      _
    // Predicated region
    $region10: #{tpu_custom_call.1} parent=1 // pred_check
      _
    $region11: #{tpu_custom_call.1} parent=1 // pred_check_branch
      %14 = sbr.rel (0) target = $region13
    $region12: #{tpu_custom_call.1} parent=1 // pred_region
      _
    $region13: #{tpu_custom_call.1} parent=1 // pred_fallthru
      _
    %v15 = vld [vmem:[%s0] sm:$0xff]
    %v16 = vld [vmem:[%s0 + $0x8] sm:$0xf]
    %v17 = vld [vmem:[%s1] sm:$0xff]
    %s18 = scalar_lea.vmem %s1, 8
    %v19 = vld [vmem:[%s18] sm:$0xff]
    %v22 = vcombine.high %v15, %v15
    %23 = vrot.lane.b32.xlu0 %v15, 127
    %v24 = vpop.permute.xlu0 %23
    %25 = vrot.lane.b32.xlu0 %v22, 127
    %v26 = vpop.permute.xlu0 %25
    %27 = vrot.lane.b32.xlu0 %v16, 127
    %v28 = vpop.permute.xlu0 %27
    %vm29 = vcmask 1039360
    %v30 = vsel %vm29, %v24, %v26
    %v31 = vsel %vm29, %v26, %v28
    %vm32 = vcmask 31744
    %v34 = vsel %vm32, %v19, 0
    %vm36 = vcmask 1043456
    %v37 = vsel %vm36, %v30, 0
    %v39 = vsel %vm36, %v31, 0
    %v41 = vsel %vm36, %v28, 0
    %43 = vmatprep.subr.mxu0 0.0
    %44 = vmatpush1.msra.mxu0 0.0
    %45 = vmatprep.subr.mxu0 0.0
    %46 = vmatpush1.msra.mxu0 0.0
    %47 = vmatprep.subr.mxu0 0.0
    %48 = vmatpush1.msra.mxu0 0.0
    %49 = vmatprep.subr.mxu0 0.0
    %50 = vmatpush1.msra.mxu0 0.0
    %51 = vmatprep.subr.mxu0 0.0
    %52 = vmatpush1.msra.mxu0 0.0
    %53 = vmatprep.subr.mxu0 0.0
    %54 = vmatpush1.msra.mxu0 0.0
    %55 = vmatprep.subr.mxu0 0.0
    %56 = vmatpush1.msra.mxu0 0.0
    %57 = vmatprep.subr.mxu0 0.0
    %58 = vmatpush1.msra.mxu0 0.0
    %59 = vmatprep.subr.mxu0 0.0
    %60 = vmatpush1.msra.mxu0 0.0
    %61 = vmatprep.subr.mxu0 0.0
    %62 = vmatpush1.msra.mxu0 0.0
    %63 = vmatprep.subr.mxu0 0.0
    %64 = vmatpush1.msra.mxu0 0.0
    %65 = vmatprep.subr.mxu0 0.0
    %66 = vmatpush1.msra.mxu0 0.0
    %67 = vmatprep.subr.mxu0 0.0
    %68 = vmatpush1.msra.mxu0 0.0
    %69 = vmatprep.subr.mxu0 0.0
    %70 = vmatpush1.msra.mxu0 0.0
    %71 = vmatprep.subr.mxu0 0.0
    %72 = vmatpush1.msra.mxu0 0.0
    %73 = vmatprep.subr.mxu0 %v39
    %74 = vmatpush1.msra.mxu0 %v37
    %75 = vmatprep.subr.mxu0 0.0
    %76 = vmatpush2.msra.mxu0 0.0
    %77 = vmatprep.subr.mxu0 0.0
    %78 = vmatpush2.msra.mxu0 0.0
    %79 = vmatprep.subr.mxu0 0.0
    %80 = vmatpush2.msra.mxu0 0.0
    %81 = vmatprep.subr.mxu0 0.0
    %82 = vmatpush2.msra.mxu0 0.0
    %83 = vmatprep.subr.mxu0 0.0
    %84 = vmatpush2.msra.mxu0 0.0
    %85 = vmatprep.subr.mxu0 0.0
    %86 = vmatpush2.msra.mxu0 0.0
    %87 = vmatprep.subr.mxu0 0.0
    %88 = vmatpush2.msra.mxu0 0.0
    %89 = vmatprep.subr.mxu0 0.0
    %90 = vmatpush2.msra.mxu0 0.0
    %91 = vmatprep.subr.mxu0 0.0
    %92 = vmatpush2.msra.mxu0 0.0
    %93 = vmatprep.subr.mxu0 0.0
    %94 = vmatpush2.msra.mxu0 0.0
    %95 = vmatprep.subr.mxu0 0.0
    %96 = vmatpush2.msra.mxu0 0.0
    %97 = vmatprep.subr.mxu0 0.0
    %98 = vmatpush2.msra.mxu0 0.0
    %99 = vmatprep.subr.mxu0 0.0
    %100 = vmatpush2.msra.mxu0 0.0
    %101 = vmatprep.subr.mxu0 0.0
    %102 = vmatpush2.msra.mxu0 0.0
    %103 = vmatprep.subr.mxu0 0.0
    %104 = vmatpush2.msra.mxu0 0.0
    %105 = vmatprep.subr.mxu0 0.0
    %106 = vmatpush2.msra.mxu0 0.0
    %107 = vmatprep.mubr.f32.mxu0 0.0
    %108 = vmatmul.mubr.f32.gmra.mxu0 %v34
    %v109 = vpop.f32.mrf.mxu0
    %v110 = vadd.f32 0.0, %v109
    %v111 = vpop.f32.mrf.mxu0
    %v112 = vadd.f32 0.0, %v111
    %113 = vdwg.mxu0
    %114 = vmatprep.subr.mxu0 0.0
    %115 = vmatpush1.msra.mxu0 0.0
    %116 = vmatprep.subr.mxu0 0.0
    %117 = vmatpush1.msra.mxu0 0.0
    %118 = vmatprep.subr.mxu0 0.0
    %119 = vmatpush1.msra.mxu0 0.0
    %120 = vmatprep.subr.mxu0 0.0
    %121 = vmatpush1.msra.mxu0 0.0
    %122 = vmatprep.subr.mxu0 0.0
    %123 = vmatpush1.msra.mxu0 0.0
    %124 = vmatprep.subr.mxu0 0.0
    %125 = vmatpush1.msra.mxu0 0.0
    %126 = vmatprep.subr.mxu0 0.0
    %127 = vmatpush1.msra.mxu0 0.0
    %128 = vmatprep.subr.mxu0 0.0
    %129 = vmatpush1.msra.mxu0 0.0
    %130 = vmatprep.subr.mxu0 0.0
    %131 = vmatpush1.msra.mxu0 0.0
    %132 = vmatprep.subr.mxu0 0.0
    %133 = vmatpush1.msra.mxu0 0.0
    %134 = vmatprep.subr.mxu0 0.0
    %135 = vmatpush1.msra.mxu0 0.0
    %136 = vmatprep.subr.mxu0 0.0
    %137 = vmatpush1.msra.mxu0 0.0
    %138 = vmatprep.subr.mxu0 0.0
    %139 = vmatpush1.msra.mxu0 0.0
    %140 = vmatprep.subr.mxu0 0.0
    %141 = vmatpush1.msra.mxu0 0.0
    %142 = vmatprep.subr.mxu0 0.0
    %143 = vmatpush1.msra.mxu0 0.0
    %144 = vmatprep.subr.mxu0 0.0
    %145 = vmatpush1.msra.mxu0 %v41
    %146 = vmatprep.subr.mxu0 0.0
    %147 = vmatpush2.msra.mxu0 0.0
    %148 = vmatprep.subr.mxu0 0.0
    %149 = vmatpush2.msra.mxu0 0.0
    %150 = vmatprep.subr.mxu0 0.0
    %151 = vmatpush2.msra.mxu0 0.0
    %152 = vmatprep.subr.mxu0 0.0
    %153 = vmatpush2.msra.mxu0 0.0
    %154 = vmatprep.subr.mxu0 0.0
    %155 = vmatpush2.msra.mxu0 0.0
    %156 = vmatprep.subr.mxu0 0.0
    %157 = vmatpush2.msra.mxu0 0.0
    %158 = vmatprep.subr.mxu0 0.0
    %159 = vmatpush2.msra.mxu0 0.0
    %160 = vmatprep.subr.mxu0 0.0
    %161 = vmatpush2.msra.mxu0 0.0
    %162 = vmatprep.subr.mxu0 0.0
    %163 = vmatpush2.msra.mxu0 0.0
    %164 = vmatprep.subr.mxu0 0.0
    %165 = vmatpush2.msra.mxu0 0.0
    %166 = vmatprep.subr.mxu0 0.0
    %167 = vmatpush2.msra.mxu0 0.0
    %168 = vmatprep.subr.mxu0 0.0
    %169 = vmatpush2.msra.mxu0 0.0
    %170 = vmatprep.subr.mxu0 0.0
    %171 = vmatpush2.msra.mxu0 0.0
    %172 = vmatprep.subr.mxu0 0.0
    %173 = vmatpush2.msra.mxu0 0.0
    %174 = vmatprep.subr.mxu0 0.0
    %175 = vmatpush2.msra.mxu0 0.0
    %176 = vmatprep.subr.mxu0 0.0
    %177 = vmatpush2.msra.mxu0 0.0
    %178 = vmatprep.mubr.f32.mxu0 0.0
    %179 = vmatmul.mubr.f32.gmra.mxu0 %v34
    %v180 = vpop.f32.mrf.mxu0
    %v181 = vadd.f32 0.0, %v180
    %v182 = vpop.f32.mrf.mxu0
    %183 = vdwg.mxu0
    %v185 = vsel %vm32, %v17, 0
    %v187 = vsel %vm36, %v15, 0
    %v189 = vsel %vm36, %v22, 0
    %v191 = vsel %vm36, %v16, 0
    %193 = vmatprep.subr.mxu0 0.0
    %194 = vmatpush1.msra.mxu0 0.0
    %195 = vmatprep.subr.mxu0 0.0
    %196 = vmatpush1.msra.mxu0 0.0
    %197 = vmatprep.subr.mxu0 0.0
    %198 = vmatpush1.msra.mxu0 0.0
    %199 = vmatprep.subr.mxu0 0.0
    %200 = vmatpush1.msra.mxu0 0.0
    %201 = vmatprep.subr.mxu0 0.0
    %202 = vmatpush1.msra.mxu0 0.0
    %203 = vmatprep.subr.mxu0 0.0
    %204 = vmatpush1.msra.mxu0 0.0
    %205 = vmatprep.subr.mxu0 0.0
    %206 = vmatpush1.msra.mxu0 0.0
    %207 = vmatprep.subr.mxu0 0.0
    %208 = vmatpush1.msra.mxu0 0.0
    %209 = vmatprep.subr.mxu0 0.0
    %210 = vmatpush1.msra.mxu0 0.0
    %211 = vmatprep.subr.mxu0 0.0
    %212 = vmatpush1.msra.mxu0 0.0
    %213 = vmatprep.subr.mxu0 0.0
    %214 = vmatpush1.msra.mxu0 0.0
    %215 = vmatprep.subr.mxu0 0.0
    %216 = vmatpush1.msra.mxu0 0.0
    %217 = vmatprep.subr.mxu0 0.0
    %218 = vmatpush1.msra.mxu0 0.0
    %219 = vmatprep.subr.mxu0 0.0
    %220 = vmatpush1.msra.mxu0 0.0
    %221 = vmatprep.subr.mxu0 0.0
    %222 = vmatpush1.msra.mxu0 0.0
    %223 = vmatprep.subr.mxu0 %v189
    %224 = vmatpush1.msra.mxu0 %v187
    %225 = vmatprep.subr.mxu0 0.0
    %226 = vmatpush2.msra.mxu0 0.0
    %227 = vmatprep.subr.mxu0 0.0
    %228 = vmatpush2.msra.mxu0 0.0
    %229 = vmatprep.subr.mxu0 0.0
    %230 = vmatpush2.msra.mxu0 0.0
    %231 = vmatprep.subr.mxu0 0.0
    %232 = vmatpush2.msra.mxu0 0.0
    %233 = vmatprep.subr.mxu0 0.0
    %234 = vmatpush2.msra.mxu0 0.0
    %235 = vmatprep.subr.mxu0 0.0
    %236 = vmatpush2.msra.mxu0 0.0
    %237 = vmatprep.subr.mxu0 0.0
    %238 = vmatpush2.msra.mxu0 0.0
    %239 = vmatprep.subr.mxu0 0.0
    %240 = vmatpush2.msra.mxu0 0.0
    %241 = vmatprep.subr.mxu0 0.0
    %242 = vmatpush2.msra.mxu0 0.0
    %243 = vmatprep.subr.mxu0 0.0
    %244 = vmatpush2.msra.mxu0 0.0
    %245 = vmatprep.subr.mxu0 0.0
    %246 = vmatpush2.msra.mxu0 0.0
    %247 = vmatprep.subr.mxu0 0.0
    %248 = vmatpush2.msra.mxu0 0.0
    %249 = vmatprep.subr.mxu0 0.0
    %250 = vmatpush2.msra.mxu0 0.0
    %251 = vmatprep.subr.mxu0 0.0
    %252 = vmatpush2.msra.mxu0 0.0
    %253 = vmatprep.subr.mxu0 0.0
    %254 = vmatpush2.msra.mxu0 0.0
    %255 = vmatprep.subr.mxu0 0.0
    %256 = vmatpush2.msra.mxu0 0.0
    %257 = vmatprep.mubr.f32.mxu0 0.0
    %258 = vmatmul.mubr.f32.gmra.mxu0 %v185
    %v259 = vpop.f32.mrf.mxu0
    %v260 = vadd.f32 %v110, %v259
    %v261 = vpop.f32.mrf.mxu0
    %v262 = vadd.f32 %v112, %v261
    %263 = vdwg.mxu0
    %264 = vmatprep.subr.mxu0 0.0
    %265 = vmatpush1.msra.mxu0 0.0
    %266 = vmatprep.subr.mxu0 0.0
    %267 = vmatpush1.msra.mxu0 0.0
    %268 = vmatprep.subr.mxu0 0.0
    %269 = vmatpush1.msra.mxu0 0.0
    %270 = vmatprep.subr.mxu0 0.0
    %271 = vmatpush1.msra.mxu0 0.0
    %272 = vmatprep.subr.mxu0 0.0
    %273 = vmatpush1.msra.mxu0 0.0
    %274 = vmatprep.subr.mxu0 0.0
    %275 = vmatpush1.msra.mxu0 0.0
    %276 = vmatprep.subr.mxu0 0.0
    %277 = vmatpush1.msra.mxu0 0.0
    %278 = vmatprep.subr.mxu0 0.0
    %279 = vmatpush1.msra.mxu0 0.0
    %280 = vmatprep.subr.mxu0 0.0
    %281 = vmatpush1.msra.mxu0 0.0
    %282 = vmatprep.subr.mxu0 0.0
    %283 = vmatpush1.msra.mxu0 0.0
    %284 = vmatprep.subr.mxu0 0.0
    %285 = vmatpush1.msra.mxu0 0.0
    %286 = vmatprep.subr.mxu0 0.0
    %287 = vmatpush1.msra.mxu0 0.0
    %288 = vmatprep.subr.mxu0 0.0
    %289 = vmatpush1.msra.mxu0 0.0
    %290 = vmatprep.subr.mxu0 0.0
    %291 = vmatpush1.msra.mxu0 0.0
    %292 = vmatprep.subr.mxu0 0.0
    %293 = vmatpush1.msra.mxu0 0.0
    %294 = vmatprep.subr.mxu0 0.0
    %295 = vmatpush1.msra.mxu0 %v191
    %296 = vmatprep.subr.mxu0 0.0
    %297 = vmatpush2.msra.mxu0 0.0
    %298 = vmatprep.subr.mxu0 0.0
    %299 = vmatpush2.msra.mxu0 0.0
    %300 = vmatprep.subr.mxu0 0.0
    %301 = vmatpush2.msra.mxu0 0.0
    %302 = vmatprep.subr.mxu0 0.0
    %303 = vmatpush2.msra.mxu0 0.0
    %304 = vmatprep.subr.mxu0 0.0
    %305 = vmatpush2.msra.mxu0 0.0
    %306 = vmatprep.subr.mxu0 0.0
    %307 = vmatpush2.msra.mxu0 0.0
    %308 = vmatprep.subr.mxu0 0.0
    %309 = vmatpush2.msra.mxu0 0.0
    %310 = vmatprep.subr.mxu0 0.0
    %311 = vmatpush2.msra.mxu0 0.0
    %312 = vmatprep.subr.mxu0 0.0
    %313 = vmatpush2.msra.mxu0 0.0
    %314 = vmatprep.subr.mxu0 0.0
    %315 = vmatpush2.msra.mxu0 0.0
    %316 = vmatprep.subr.mxu0 0.0
    %317 = vmatpush2.msra.mxu0 0.0
    %318 = vmatprep.subr.mxu0 0.0
    %319 = vmatpush2.msra.mxu0 0.0
    %320 = vmatprep.subr.mxu0 0.0
    %321 = vmatpush2.msra.mxu0 0.0
    %322 = vmatprep.subr.mxu0 0.0
    %323 = vmatpush2.msra.mxu0 0.0
    %324 = vmatprep.subr.mxu0 0.0
    %325 = vmatpush2.msra.mxu0 0.0
    %326 = vmatprep.subr.mxu0 0.0
    %327 = vmatpush2.msra.mxu0 0.0
    %328 = vmatprep.mubr.f32.mxu0 0.0
    %329 = vmatmul.mubr.f32.gmra.mxu0 %v185
    %v330 = vpop.f32.mrf.mxu0
    %v331 = vadd.f32 %v181, %v330
    %v332 = vpop.f32.mrf.mxu0
    %333 = vdwg.mxu0
    %v334 = vld [vmem:[%s0] sm:$0xff]
    %v335 = vld [vmem:[%s0 + $0x8] sm:$0xf]
    %s336 = scalar_lea.vmem %s1, 16
    %v337 = vld [vmem:[%s336] sm:$0xff]
    %v340 = vcombine.high %v334, %v334
    %341 = vrot.lane.b32.xlu0 %v334, 126
    %v342 = vpop.permute.xlu0 %341
    %343 = vrot.lane.b32.xlu0 %v340, 126
    %v344 = vpop.permute.xlu0 %343
    %345 = vrot.lane.b32.xlu0 %v335, 126
    %v346 = vpop.permute.xlu0 %345
    %vm347 = vcmask 1031168
    %v348 = vsel %vm347, %v342, %v344
    %v349 = vsel %vm347, %v344, %v346
    %v351 = vsel %vm32, %v337, 0
    %v353 = vsel %vm36, %v348, 0
    %v355 = vsel %vm36, %v349, 0
    %v357 = vsel %vm36, %v346, 0
    %359 = vmatprep.subr.mxu0 0.0
    %360 = vmatpush1.msra.mxu0 0.0
    %361 = vmatprep.subr.mxu0 0.0
    %362 = vmatpush1.msra.mxu0 0.0
    %363 = vmatprep.subr.mxu0 0.0
    %364 = vmatpush1.msra.mxu0 0.0
    %365 = vmatprep.subr.mxu0 0.0
    %366 = vmatpush1.msra.mxu0 0.0
    %367 = vmatprep.subr.mxu0 0.0
    %368 = vmatpush1.msra.mxu0 0.0
    %369 = vmatprep.subr.mxu0 0.0
    %370 = vmatpush1.msra.mxu0 0.0
    %371 = vmatprep.subr.mxu0 0.0
    %372 = vmatpush1.msra.mxu0 0.0
    %373 = vmatprep.subr.mxu0 0.0
    %374 = vmatpush1.msra.mxu0 0.0
    %375 = vmatprep.subr.mxu0 0.0
    %376 = vmatpush1.msra.mxu0 0.0
    %377 = vmatprep.subr.mxu0 0.0
    %378 = vmatpush1.msra.mxu0 0.0
    %379 = vmatprep.subr.mxu0 0.0
    %380 = vmatpush1.msra.mxu0 0.0
    %381 = vmatprep.subr.mxu0 0.0
    %382 = vmatpush1.msra.mxu0 0.0
    %383 = vmatprep.subr.mxu0 0.0
    %384 = vmatpush1.msra.mxu0 0.0
    %385 = vmatprep.subr.mxu0 0.0
    %386 = vmatpush1.msra.mxu0 0.0
    %387 = vmatprep.subr.mxu0 0.0
    %388 = vmatpush1.msra.mxu0 0.0
    %389 = vmatprep.subr.mxu0 %v355
    %390 = vmatpush1.msra.mxu0 %v353
    %391 = vmatprep.subr.mxu0 0.0
    %392 = vmatpush2.msra.mxu0 0.0
    %393 = vmatprep.subr.mxu0 0.0
    %394 = vmatpush2.msra.mxu0 0.0
    %395 = vmatprep.subr.mxu0 0.0
    %396 = vmatpush2.msra.mxu0 0.0
    %397 = vmatprep.subr.mxu0 0.0
    %398 = vmatpush2.msra.mxu0 0.0
    %399 = vmatprep.subr.mxu0 0.0
    %400 = vmatpush2.msra.mxu0 0.0
    %401 = vmatprep.subr.mxu0 0.0
    %402 = vmatpush2.msra.mxu0 0.0
    %403 = vmatprep.subr.mxu0 0.0
    %404 = vmatpush2.msra.mxu0 0.0
    %405 = vmatprep.subr.mxu0 0.0
    %406 = vmatpush2.msra.mxu0 0.0
    %407 = vmatprep.subr.mxu0 0.0
    %408 = vmatpush2.msra.mxu0 0.0
    %409 = vmatprep.subr.mxu0 0.0
    %410 = vmatpush2.msra.mxu0 0.0
    %411 = vmatprep.subr.mxu0 0.0
    %412 = vmatpush2.msra.mxu0 0.0
    %413 = vmatprep.subr.mxu0 0.0
    %414 = vmatpush2.msra.mxu0 0.0
    %415 = vmatprep.subr.mxu0 0.0
    %416 = vmatpush2.msra.mxu0 0.0
    %417 = vmatprep.subr.mxu0 0.0
    %418 = vmatpush2.msra.mxu0 0.0
    %419 = vmatprep.subr.mxu0 0.0
    %420 = vmatpush2.msra.mxu0 0.0
    %421 = vmatprep.subr.mxu0 0.0
    %422 = vmatpush2.msra.mxu0 0.0
    %423 = vmatprep.mubr.f32.mxu0 0.0
    %424 = vmatmul.mubr.f32.gmra.mxu0 %v351
    %v425 = vpop.f32.mrf.mxu0
    %v426 = vadd.f32 0.0, %v425
    %v427 = vpop.f32.mrf.mxu0
    %v428 = vadd.f32 0.0, %v427
    %429 = vdwg.mxu0
    %430 = vmatprep.subr.mxu0 0.0
    %431 = vmatpush1.msra.mxu0 0.0
    %432 = vmatprep.subr.mxu0 0.0
    %433 = vmatpush1.msra.mxu0 0.0
    %434 = vmatprep.subr.mxu0 0.0
    %435 = vmatpush1.msra.mxu0 0.0
    %436 = vmatprep.subr.mxu0 0.0
    %437 = vmatpush1.msra.mxu0 0.0
    %438 = vmatprep.subr.mxu0 0.0
    %439 = vmatpush1.msra.mxu0 0.0
    %440 = vmatprep.subr.mxu0 0.0
    %441 = vmatpush1.msra.mxu0 0.0
    %442 = vmatprep.subr.mxu0 0.0
    %443 = vmatpush1.msra.mxu0 0.0
    %444 = vmatprep.subr.mxu0 0.0
    %445 = vmatpush1.msra.mxu0 0.0
    %446 = vmatprep.subr.mxu0 0.0
    %447 = vmatpush1.msra.mxu0 0.0
    %448 = vmatprep.subr.mxu0 0.0
    %449 = vmatpush1.msra.mxu0 0.0
    %450 = vmatprep.subr.mxu0 0.0
    %451 = vmatpush1.msra.mxu0 0.0
    %452 = vmatprep.subr.mxu0 0.0
    %453 = vmatpush1.msra.mxu0 0.0
    %454 = vmatprep.subr.mxu0 0.0
    %455 = vmatpush1.msra.mxu0 0.0
    %456 = vmatprep.subr.mxu0 0.0
    %457 = vmatpush1.msra.mxu0 0.0
    %458 = vmatprep.subr.mxu0 0.0
    %459 = vmatpush1.msra.mxu0 0.0
    %460 = vmatprep.subr.mxu0 0.0
    %461 = vmatpush1.msra.mxu0 %v357
    %462 = vmatprep.subr.mxu0 0.0
    %463 = vmatpush2.msra.mxu0 0.0
    %464 = vmatprep.subr.mxu0 0.0
    %465 = vmatpush2.msra.mxu0 0.0
    %466 = vmatprep.subr.mxu0 0.0
    %467 = vmatpush2.msra.mxu0 0.0
    %468 = vmatprep.subr.mxu0 0.0
    %469 = vmatpush2.msra.mxu0 0.0
    %470 = vmatprep.subr.mxu0 0.0
    %471 = vmatpush2.msra.mxu0 0.0
    %472 = vmatprep.subr.mxu0 0.0
    %473 = vmatpush2.msra.mxu0 0.0
    %474 = vmatprep.subr.mxu0 0.0
    %475 = vmatpush2.msra.mxu0 0.0
    %476 = vmatprep.subr.mxu0 0.0
    %477 = vmatpush2.msra.mxu0 0.0
    %478 = vmatprep.subr.mxu0 0.0
    %479 = vmatpush2.msra.mxu0 0.0
    %480 = vmatprep.subr.mxu0 0.0
    %481 = vmatpush2.msra.mxu0 0.0
    %482 = vmatprep.subr.mxu0 0.0
    %483 = vmatpush2.msra.mxu0 0.0
    %484 = vmatprep.subr.mxu0 0.0
    %485 = vmatpush2.msra.mxu0 0.0
    %486 = vmatprep.subr.mxu0 0.0
    %487 = vmatpush2.msra.mxu0 0.0
    %488 = vmatprep.subr.mxu0 0.0
    %489 = vmatpush2.msra.mxu0 0.0
    %490 = vmatprep.subr.mxu0 0.0
    %491 = vmatpush2.msra.mxu0 0.0
    %492 = vmatprep.subr.mxu0 0.0
    %493 = vmatpush2.msra.mxu0 0.0
    %494 = vmatprep.mubr.f32.mxu0 0.0
    %495 = vmatmul.mubr.f32.gmra.mxu0 %v351
    %v496 = vpop.f32.mrf.mxu0
    %v497 = vadd.f32 0.0, %v496
    %v498 = vpop.f32.mrf.mxu0
    %499 = vdwg.mxu0
    %v500 = vadd.f32 %v260, %v426
    %v501 = vadd.f32 %v262, %v428
    %v502 = vadd.f32 %v331, %v497
    %v503 = vld [vmem:[%s0] sm:$0xff]
    %v504 = vld [vmem:[%s0 + $0x8] sm:$0xf]
    %s505 = scalar_lea.vmem %s1, 24
    %v506 = vld [vmem:[%s505] sm:$0xff]
    %v509 = vcombine.high %v503, %v503
    %510 = vrot.lane.b32.xlu0 %v503, 110
    %v511 = vpop.permute.xlu0 %510
    %512 = vrot.lane.b32.xlu0 %v509, 110
    %v513 = vpop.permute.xlu0 %512
    %514 = vrot.lane.b32.xlu0 %v504, 110
    %v515 = vpop.permute.xlu0 %514
    %vm516 = vcmask 900096
    %v517 = vsel %vm516, %v511, %v513
    %v518 = vsel %vm516, %v513, %v515
    %v520 = vsel %vm32, %v506, 0
    %v522 = vsel %vm36, %v517, 0
    %v524 = vsel %vm36, %v518, 0
    %v526 = vsel %vm36, %v515, 0
    %528 = vmatprep.subr.mxu0 0.0
    %529 = vmatpush1.msra.mxu0 0.0
    %530 = vmatprep.subr.mxu0 0.0
    %531 = vmatpush1.msra.mxu0 0.0
    %532 = vmatprep.subr.mxu0 0.0
    %533 = vmatpush1.msra.mxu0 0.0
    %534 = vmatprep.subr.mxu0 0.0
    %535 = vmatpush1.msra.mxu0 0.0
    %536 = vmatprep.subr.mxu0 0.0
    %537 = vmatpush1.msra.mxu0 0.0
    %538 = vmatprep.subr.mxu0 0.0
    %539 = vmatpush1.msra.mxu0 0.0
    %540 = vmatprep.subr.mxu0 0.0
    %541 = vmatpush1.msra.mxu0 0.0
    %542 = vmatprep.subr.mxu0 0.0
    %543 = vmatpush1.msra.mxu0 0.0
    %544 = vmatprep.subr.mxu0 0.0
    %545 = vmatpush1.msra.mxu0 0.0
    %546 = vmatprep.subr.mxu0 0.0
    %547 = vmatpush1.msra.mxu0 0.0
    %548 = vmatprep.subr.mxu0 0.0
    %549 = vmatpush1.msra.mxu0 0.0
    %550 = vmatprep.subr.mxu0 0.0
    %551 = vmatpush1.msra.mxu0 0.0
    %552 = vmatprep.subr.mxu0 0.0
    %553 = vmatpush1.msra.mxu0 0.0
    %554 = vmatprep.subr.mxu0 0.0
    %555 = vmatpush1.msra.mxu0 0.0
    %556 = vmatprep.subr.mxu0 0.0
    %557 = vmatpush1.msra.mxu0 0.0
    %558 = vmatprep.subr.mxu0 %v524
    %559 = vmatpush1.msra.mxu0 %v522
    %560 = vmatprep.subr.mxu0 0.0
    %561 = vmatpush2.msra.mxu0 0.0
    %562 = vmatprep.subr.mxu0 0.0
    %563 = vmatpush2.msra.mxu0 0.0
    %564 = vmatprep.subr.mxu0 0.0
    %565 = vmatpush2.msra.mxu0 0.0
    %566 = vmatprep.subr.mxu0 0.0
    %567 = vmatpush2.msra.mxu0 0.0
    %568 = vmatprep.subr.mxu0 0.0
    %569 = vmatpush2.msra.mxu0 0.0
    %570 = vmatprep.subr.mxu0 0.0
    %571 = vmatpush2.msra.mxu0 0.0
    %572 = vmatprep.subr.mxu0 0.0
    %573 = vmatpush2.msra.mxu0 0.0
    %574 = vmatprep.subr.mxu0 0.0
    %575 = vmatpush2.msra.mxu0 0.0
    %576 = vmatprep.subr.mxu0 0.0
    %577 = vmatpush2.msra.mxu0 0.0
    %578 = vmatprep.subr.mxu0 0.0
    %579 = vmatpush2.msra.mxu0 0.0
    %580 = vmatprep.subr.mxu0 0.0
    %581 = vmatpush2.msra.mxu0 0.0
    %582 = vmatprep.subr.mxu0 0.0
    %583 = vmatpush2.msra.mxu0 0.0
    %584 = vmatprep.subr.mxu0 0.0
    %585 = vmatpush2.msra.mxu0 0.0
    %586 = vmatprep.subr.mxu0 0.0
    %587 = vmatpush2.msra.mxu0 0.0
    %588 = vmatprep.subr.mxu0 0.0
    %589 = vmatpush2.msra.mxu0 0.0
    %590 = vmatprep.subr.mxu0 0.0
    %591 = vmatpush2.msra.mxu0 0.0
    %592 = vmatprep.mubr.f32.mxu0 0.0
    %593 = vmatmul.mubr.f32.gmra.mxu0 %v520
    %v594 = vpop.f32.mrf.mxu0
    %v595 = vadd.f32 0.0, %v594
    %v596 = vpop.f32.mrf.mxu0
    %v597 = vadd.f32 0.0, %v596
    %598 = vdwg.mxu0
    %599 = vmatprep.subr.mxu0 0.0
    %600 = vmatpush1.msra.mxu0 0.0
    %601 = vmatprep.subr.mxu0 0.0
    %602 = vmatpush1.msra.mxu0 0.0
    %603 = vmatprep.subr.mxu0 0.0
    %604 = vmatpush1.msra.mxu0 0.0
    %605 = vmatprep.subr.mxu0 0.0
    %606 = vmatpush1.msra.mxu0 0.0
    %607 = vmatprep.subr.mxu0 0.0
    %608 = vmatpush1.msra.mxu0 0.0
    %609 = vmatprep.subr.mxu0 0.0
    %610 = vmatpush1.msra.mxu0 0.0
    %611 = vmatprep.subr.mxu0 0.0
    %612 = vmatpush1.msra.mxu0 0.0
    %613 = vmatprep.subr.mxu0 0.0
    %614 = vmatpush1.msra.mxu0 0.0
    %615 = vmatprep.subr.mxu0 0.0
    %616 = vmatpush1.msra.mxu0 0.0
    %617 = vmatprep.subr.mxu0 0.0
    %618 = vmatpush1.msra.mxu0 0.0
    %619 = vmatprep.subr.mxu0 0.0
    %620 = vmatpush1.msra.mxu0 0.0
    %621 = vmatprep.subr.mxu0 0.0
    %622 = vmatpush1.msra.mxu0 0.0
    %623 = vmatprep.subr.mxu0 0.0
    %624 = vmatpush1.msra.mxu0 0.0
    %625 = vmatprep.subr.mxu0 0.0
    %626 = vmatpush1.msra.mxu0 0.0
    %627 = vmatprep.subr.mxu0 0.0
    %628 = vmatpush1.msra.mxu0 0.0
    %629 = vmatprep.subr.mxu0 0.0
    %630 = vmatpush1.msra.mxu0 %v526
    %631 = vmatprep.subr.mxu0 0.0
    %632 = vmatpush2.msra.mxu0 0.0
    %633 = vmatprep.subr.mxu0 0.0
    %634 = vmatpush2.msra.mxu0 0.0
    %635 = vmatprep.subr.mxu0 0.0
    %636 = vmatpush2.msra.mxu0 0.0
    %637 = vmatprep.subr.mxu0 0.0
    %638 = vmatpush2.msra.mxu0 0.0
    %639 = vmatprep.subr.mxu0 0.0
    %640 = vmatpush2.msra.mxu0 0.0
    %641 = vmatprep.subr.mxu0 0.0
    %642 = vmatpush2.msra.mxu0 0.0
    %643 = vmatprep.subr.mxu0 0.0
    %644 = vmatpush2.msra.mxu0 0.0
    %645 = vmatprep.subr.mxu0 0.0
    %646 = vmatpush2.msra.mxu0 0.0
    %647 = vmatprep.subr.mxu0 0.0
    %648 = vmatpush2.msra.mxu0 0.0
    %649 = vmatprep.subr.mxu0 0.0
    %650 = vmatpush2.msra.mxu0 0.0
    %651 = vmatprep.subr.mxu0 0.0
    %652 = vmatpush2.msra.mxu0 0.0
    %653 = vmatprep.subr.mxu0 0.0
    %654 = vmatpush2.msra.mxu0 0.0
    %655 = vmatprep.subr.mxu0 0.0
    %656 = vmatpush2.msra.mxu0 0.0
    %657 = vmatprep.subr.mxu0 0.0
    %658 = vmatpush2.msra.mxu0 0.0
    %659 = vmatprep.subr.mxu0 0.0
    %660 = vmatpush2.msra.mxu0 0.0
    %661 = vmatprep.subr.mxu0 0.0
    %662 = vmatpush2.msra.mxu0 0.0
    %663 = vmatprep.mubr.f32.mxu0 0.0
    %664 = vmatmul.mubr.f32.gmra.mxu0 %v520
    %v665 = vpop.f32.mrf.mxu0
    %v666 = vadd.f32 0.0, %v665
    %v667 = vpop.f32.mrf.mxu0
    %668 = vdwg.mxu0
    %v669 = vadd.f32 %v500, %v595
    %v670 = vadd.f32 %v501, %v597
    %v671 = vadd.f32 %v502, %v666
    %v672 = vld [vmem:[%s0] sm:$0xff]
    %v673 = vld [vmem:[%s0 + $0x8] sm:$0xf]
    %s674 = scalar_lea.vmem %s1, 32
    %v675 = vld [vmem:[%s674] sm:$0xff]
    %v678 = vcombine.high %v672, %v672
    %679 = vrot.lane.b32.xlu0 %v672, 109
    %v680 = vpop.permute.xlu0 %679
    %681 = vrot.lane.b32.xlu0 %v678, 109
    %v682 = vpop.permute.xlu0 %681
    %683 = vrot.lane.b32.xlu0 %v673, 109
    %v684 = vpop.permute.xlu0 %683
    %vm685 = vcmask 891904
    %v686 = vsel %vm685, %v680, %v682
    %v687 = vsel %vm685, %v682, %v684
    %v689 = vsel %vm32, %v675, 0
    %v691 = vsel %vm36, %v686, 0
    %v693 = vsel %vm36, %v687, 0
    %v695 = vsel %vm36, %v684, 0
    %697 = vmatprep.subr.mxu0 0.0
    %698 = vmatpush1.msra.mxu0 0.0
    %699 = vmatprep.subr.mxu0 0.0
    %700 = vmatpush1.msra.mxu0 0.0
    %701 = vmatprep.subr.mxu0 0.0
    %702 = vmatpush1.msra.mxu0 0.0
    %703 = vmatprep.subr.mxu0 0.0
    %704 = vmatpush1.msra.mxu0 0.0
    %705 = vmatprep.subr.mxu0 0.0
    %706 = vmatpush1.msra.mxu0 0.0
    %707 = vmatprep.subr.mxu0 0.0
    %708 = vmatpush1.msra.mxu0 0.0
    %709 = vmatprep.subr.mxu0 0.0
    %710 = vmatpush1.msra.mxu0 0.0
    %711 = vmatprep.subr.mxu0 0.0
    %712 = vmatpush1.msra.mxu0 0.0
    %713 = vmatprep.subr.mxu0 0.0
    %714 = vmatpush1.msra.mxu0 0.0
    %715 = vmatprep.subr.mxu0 0.0
    %716 = vmatpush1.msra.mxu0 0.0
    %717 = vmatprep.subr.mxu0 0.0
    %718 = vmatpush1.msra.mxu0 0.0
    %719 = vmatprep.subr.mxu0 0.0
    %720 = vmatpush1.msra.mxu0 0.0
    %721 = vmatprep.subr.mxu0 0.0
    %722 = vmatpush1.msra.mxu0 0.0
    %723 = vmatprep.subr.mxu0 0.0
    %724 = vmatpush1.msra.mxu0 0.0
    %725 = vmatprep.subr.mxu0 0.0
    %726 = vmatpush1.msra.mxu0 0.0
    %727 = vmatprep.subr.mxu0 %v693
    %728 = vmatpush1.msra.mxu0 %v691
    %729 = vmatprep.subr.mxu0 0.0
    %730 = vmatpush2.msra.mxu0 0.0
    %731 = vmatprep.subr.mxu0 0.0
    %732 = vmatpush2.msra.mxu0 0.0
    %733 = vmatprep.subr.mxu0 0.0
    %734 = vmatpush2.msra.mxu0 0.0
    %735 = vmatprep.subr.mxu0 0.0
    %736 = vmatpush2.msra.mxu0 0.0
    %737 = vmatprep.subr.mxu0 0.0
    %738 = vmatpush2.msra.mxu0 0.0
    %739 = vmatprep.subr.mxu0 0.0
    %740 = vmatpush2.msra.mxu0 0.0
    %741 = vmatprep.subr.mxu0 0.0
    %742 = vmatpush2.msra.mxu0 0.0
    %743 = vmatprep.subr.mxu0 0.0
    %744 = vmatpush2.msra.mxu0 0.0
    %745 = vmatprep.subr.mxu0 0.0
    %746 = vmatpush2.msra.mxu0 0.0
    %747 = vmatprep.subr.mxu0 0.0
    %748 = vmatpush2.msra.mxu0 0.0
    %749 = vmatprep.subr.mxu0 0.0
    %750 = vmatpush2.msra.mxu0 0.0
    %751 = vmatprep.subr.mxu0 0.0
    %752 = vmatpush2.msra.mxu0 0.0
    %753 = vmatprep.subr.mxu0 0.0
    %754 = vmatpush2.msra.mxu0 0.0
    %755 = vmatprep.subr.mxu0 0.0
    %756 = vmatpush2.msra.mxu0 0.0
    %757 = vmatprep.subr.mxu0 0.0
    %758 = vmatpush2.msra.mxu0 0.0
    %759 = vmatprep.subr.mxu0 0.0
    %760 = vmatpush2.msra.mxu0 0.0
    %761 = vmatprep.mubr.f32.mxu0 0.0
    %762 = vmatmul.mubr.f32.gmra.mxu0 %v689
    %v763 = vpop.f32.mrf.mxu0
    %v764 = vadd.f32 0.0, %v763
    %v765 = vpop.f32.mrf.mxu0
    %v766 = vadd.f32 0.0, %v765
    %767 = vdwg.mxu0
    %768 = vmatprep.subr.mxu0 0.0
    %769 = vmatpush1.msra.mxu0 0.0
    %770 = vmatprep.subr.mxu0 0.0
    %771 = vmatpush1.msra.mxu0 0.0
    %772 = vmatprep.subr.mxu0 0.0
    %773 = vmatpush1.msra.mxu0 0.0
    %774 = vmatprep.subr.mxu0 0.0
    %775 = vmatpush1.msra.mxu0 0.0
    %776 = vmatprep.subr.mxu0 0.0
    %777 = vmatpush1.msra.mxu0 0.0
    %778 = vmatprep.subr.mxu0 0.0
    %779 = vmatpush1.msra.mxu0 0.0
    %780 = vmatprep.subr.mxu0 0.0
    %781 = vmatpush1.msra.mxu0 0.0
    %782 = vmatprep.subr.mxu0 0.0
    %783 = vmatpush1.msra.mxu0 0.0
    %784 = vmatprep.subr.mxu0 0.0
    %785 = vmatpush1.msra.mxu0 0.0
    %786 = vmatprep.subr.mxu0 0.0
    %787 = vmatpush1.msra.mxu0 0.0
    %788 = vmatprep.subr.mxu0 0.0
    %789 = vmatpush1.msra.mxu0 0.0
    %790 = vmatprep.subr.mxu0 0.0
    %791 = vmatpush1.msra.mxu0 0.0
    %792 = vmatprep.subr.mxu0 0.0
    %793 = vmatpush1.msra.mxu0 0.0
    %794 = vmatprep.subr.mxu0 0.0
    %795 = vmatpush1.msra.mxu0 0.0
    %796 = vmatprep.subr.mxu0 0.0
    %797 = vmatpush1.msra.mxu0 0.0
    %798 = vmatprep.subr.mxu0 0.0
    %799 = vmatpush1.msra.mxu0 %v695
    %800 = vmatprep.subr.mxu0 0.0
    %801 = vmatpush2.msra.mxu0 0.0
    %802 = vmatprep.subr.mxu0 0.0
    %803 = vmatpush2.msra.mxu0 0.0
    %804 = vmatprep.subr.mxu0 0.0
    %805 = vmatpush2.msra.mxu0 0.0
    %806 = vmatprep.subr.mxu0 0.0
    %807 = vmatpush2.msra.mxu0 0.0
    %808 = vmatprep.subr.mxu0 0.0
    %809 = vmatpush2.msra.mxu0 0.0
    %810 = vmatprep.subr.mxu0 0.0
    %811 = vmatpush2.msra.mxu0 0.0
    %812 = vmatprep.subr.mxu0 0.0
    %813 = vmatpush2.msra.mxu0 0.0
    %814 = vmatprep.subr.mxu0 0.0
    %815 = vmatpush2.msra.mxu0 0.0
    %816 = vmatprep.subr.mxu0 0.0
    %817 = vmatpush2.msra.mxu0 0.0
    %818 = vmatprep.subr.mxu0 0.0
    %819 = vmatpush2.msra.mxu0 0.0
    %820 = vmatprep.subr.mxu0 0.0
    %821 = vmatpush2.msra.mxu0 0.0
    %822 = vmatprep.subr.mxu0 0.0
    %823 = vmatpush2.msra.mxu0 0.0
    %824 = vmatprep.subr.mxu0 0.0
    %825 = vmatpush2.msra.mxu0 0.0
    %826 = vmatprep.subr.mxu0 0.0
    %827 = vmatpush2.msra.mxu0 0.0
    %828 = vmatprep.subr.mxu0 0.0
    %829 = vmatpush2.msra.mxu0 0.0
    %830 = vmatprep.subr.mxu0 0.0
    %831 = vmatpush2.msra.mxu0 0.0
    %832 = vmatprep.mubr.f32.mxu0 0.0
    %833 = vmatmul.mubr.f32.gmra.mxu0 %v689
    %v834 = vpop.f32.mrf.mxu0
    %v835 = vadd.f32 0.0, %v834
    %v836 = vpop.f32.mrf.mxu0
    %837 = vdwg.mxu0
    %v838 = vadd.f32 %v669, %v764
    %v839 = vadd.f32 %v670, %v766
    %v840 = vadd.f32 %v671, %v835
    %v841 = vld [vmem:[%s0] sm:$0xff]
    %v842 = vld [vmem:[%s0 + $0x8] sm:$0xf]
    %s843 = scalar_lea.vmem %s1, 40
    %v844 = vld [vmem:[%s843] sm:$0xff]
    %v847 = vcombine.high %v841, %v841
    %848 = vrot.lane.b32.xlu0 %v841, 108
    %v849 = vpop.permute.xlu0 %848
    %850 = vrot.lane.b32.xlu0 %v847, 108
    %v851 = vpop.permute.xlu0 %850
    %852 = vrot.lane.b32.xlu0 %v842, 108
    %v853 = vpop.permute.xlu0 %852
    %vm854 = vcmask 883712
    %v855 = vsel %vm854, %v849, %v851
    %v856 = vsel %vm854, %v851, %v853
    %v858 = vsel %vm32, %v844, 0
    %v860 = vsel %vm36, %v855, 0
    %v862 = vsel %vm36, %v856, 0
    %v864 = vsel %vm36, %v853, 0
    %866 = vmatprep.subr.mxu0 0.0
    %867 = vmatpush1.msra.mxu0 0.0
    %868 = vmatprep.subr.mxu0 0.0
    %869 = vmatpush1.msra.mxu0 0.0
    %870 = vmatprep.subr.mxu0 0.0
    %871 = vmatpush1.msra.mxu0 0.0
    %872 = vmatprep.subr.mxu0 0.0
    %873 = vmatpush1.msra.mxu0 0.0
    %874 = vmatprep.subr.mxu0 0.0
    %875 = vmatpush1.msra.mxu0 0.0
    %876 = vmatprep.subr.mxu0 0.0
    %877 = vmatpush1.msra.mxu0 0.0
    %878 = vmatprep.subr.mxu0 0.0
    %879 = vmatpush1.msra.mxu0 0.0
    %880 = vmatprep.subr.mxu0 0.0
    %881 = vmatpush1.msra.mxu0 0.0
    %882 = vmatprep.subr.mxu0 0.0
    %883 = vmatpush1.msra.mxu0 0.0
    %884 = vmatprep.subr.mxu0 0.0
    %885 = vmatpush1.msra.mxu0 0.0
    %886 = vmatprep.subr.mxu0 0.0
    %887 = vmatpush1.msra.mxu0 0.0
    %888 = vmatprep.subr.mxu0 0.0
    %889 = vmatpush1.msra.mxu0 0.0
    %890 = vmatprep.subr.mxu0 0.0
    %891 = vmatpush1.msra.mxu0 0.0
    %892 = vmatprep.subr.mxu0 0.0
    %893 = vmatpush1.msra.mxu0 0.0
    %894 = vmatprep.subr.mxu0 0.0
    %895 = vmatpush1.msra.mxu0 0.0
    %896 = vmatprep.subr.mxu0 %v862
    %897 = vmatpush1.msra.mxu0 %v860
    %898 = vmatprep.subr.mxu0 0.0
    %899 = vmatpush2.msra.mxu0 0.0
    %900 = vmatprep.subr.mxu0 0.0
    %901 = vmatpush2.msra.mxu0 0.0
    %902 = vmatprep.subr.mxu0 0.0
    %903 = vmatpush2.msra.mxu0 0.0
    %904 = vmatprep.subr.mxu0 0.0
    %905 = vmatpush2.msra.mxu0 0.0
    %906 = vmatprep.subr.mxu0 0.0
    %907 = vmatpush2.msra.mxu0 0.0
    %908 = vmatprep.subr.mxu0 0.0
    %909 = vmatpush2.msra.mxu0 0.0
    %910 = vmatprep.subr.mxu0 0.0
    %911 = vmatpush2.msra.mxu0 0.0
    %912 = vmatprep.subr.mxu0 0.0
    %913 = vmatpush2.msra.mxu0 0.0
    %914 = vmatprep.subr.mxu0 0.0
    %915 = vmatpush2.msra.mxu0 0.0
    %916 = vmatprep.subr.mxu0 0.0
    %917 = vmatpush2.msra.mxu0 0.0
    %918 = vmatprep.subr.mxu0 0.0
    %919 = vmatpush2.msra.mxu0 0.0
    %920 = vmatprep.subr.mxu0 0.0
    %921 = vmatpush2.msra.mxu0 0.0
    %922 = vmatprep.subr.mxu0 0.0
    %923 = vmatpush2.msra.mxu0 0.0
    %924 = vmatprep.subr.mxu0 0.0
    %925 = vmatpush2.msra.mxu0 0.0
    %926 = vmatprep.subr.mxu0 0.0
    %927 = vmatpush2.msra.mxu0 0.0
    %928 = vmatprep.subr.mxu0 0.0
    %929 = vmatpush2.msra.mxu0 0.0
    %930 = vmatprep.mubr.f32.mxu0 0.0
    %931 = vmatmul.mubr.f32.gmra.mxu0 %v858
    %v932 = vpop.f32.mrf.mxu0
    %v933 = vadd.f32 0.0, %v932
    %v934 = vpop.f32.mrf.mxu0
    %v935 = vadd.f32 0.0, %v934
    %936 = vdwg.mxu0
    %937 = vmatprep.subr.mxu0 0.0
    %938 = vmatpush1.msra.mxu0 0.0
    %939 = vmatprep.subr.mxu0 0.0
    %940 = vmatpush1.msra.mxu0 0.0
    %941 = vmatprep.subr.mxu0 0.0
    %942 = vmatpush1.msra.mxu0 0.0
    %943 = vmatprep.subr.mxu0 0.0
    %944 = vmatpush1.msra.mxu0 0.0
    %945 = vmatprep.subr.mxu0 0.0
    %946 = vmatpush1.msra.mxu0 0.0
    %947 = vmatprep.subr.mxu0 0.0
    %948 = vmatpush1.msra.mxu0 0.0
    %949 = vmatprep.subr.mxu0 0.0
    %950 = vmatpush1.msra.mxu0 0.0
    %951 = vmatprep.subr.mxu0 0.0
    %952 = vmatpush1.msra.mxu0 0.0
    %953 = vmatprep.subr.mxu0 0.0
    %954 = vmatpush1.msra.mxu0 0.0
    %955 = vmatprep.subr.mxu0 0.0
    %956 = vmatpush1.msra.mxu0 0.0
    %957 = vmatprep.subr.mxu0 0.0
    %958 = vmatpush1.msra.mxu0 0.0
    %959 = vmatprep.subr.mxu0 0.0
    %960 = vmatpush1.msra.mxu0 0.0
    %961 = vmatprep.subr.mxu0 0.0
    %962 = vmatpush1.msra.mxu0 0.0
    %963 = vmatprep.subr.mxu0 0.0
    %964 = vmatpush1.msra.mxu0 0.0
    %965 = vmatprep.subr.mxu0 0.0
    %966 = vmatpush1.msra.mxu0 0.0
    %967 = vmatprep.subr.mxu0 0.0
    %968 = vmatpush1.msra.mxu0 %v864
    %969 = vmatprep.subr.mxu0 0.0
    %970 = vmatpush2.msra.mxu0 0.0
    %971 = vmatprep.subr.mxu0 0.0
    %972 = vmatpush2.msra.mxu0 0.0
    %973 = vmatprep.subr.mxu0 0.0
    %974 = vmatpush2.msra.mxu0 0.0
    %975 = vmatprep.subr.mxu0 0.0
    %976 = vmatpush2.msra.mxu0 0.0
    %977 = vmatprep.subr.mxu0 0.0
    %978 = vmatpush2.msra.mxu0 0.0
    %979 = vmatprep.subr.mxu0 0.0
    %980 = vmatpush2.msra.mxu0 0.0
    %981 = vmatprep.subr.mxu0 0.0
    %982 = vmatpush2.msra.mxu0 0.0
    %983 = vmatprep.subr.mxu0 0.0
    %984 = vmatpush2.msra.mxu0 0.0
    %985 = vmatprep.subr.mxu0 0.0
    %986 = vmatpush2.msra.mxu0 0.0
    %987 = vmatprep.subr.mxu0 0.0
    %988 = vmatpush2.msra.mxu0 0.0
    %989 = vmatprep.subr.mxu0 0.0
    %990 = vmatpush2.msra.mxu0 0.0
    %991 = vmatprep.subr.mxu0 0.0
    %992 = vmatpush2.msra.mxu0 0.0
    %993 = vmatprep.subr.mxu0 0.0
    %994 = vmatpush2.msra.mxu0 0.0
    %995 = vmatprep.subr.mxu0 0.0
    %996 = vmatpush2.msra.mxu0 0.0
    %997 = vmatprep.subr.mxu0 0.0
    %998 = vmatpush2.msra.mxu0 0.0
    %999 = vmatprep.subr.mxu0 0.0
    %1000 = vmatpush2.msra.mxu0 0.0
    %1001 = vmatprep.mubr.f32.mxu0 0.0
    %1002 = vmatmul.mubr.f32.gmra.mxu0 %v858
    %v1003 = vpop.f32.mrf.mxu0
    %v1004 = vadd.f32 0.0, %v1003
    %v1005 = vpop.f32.mrf.mxu0
    %1006 = vdwg.mxu0
    %v1007 = vadd.f32 %v838, %v933
    %v1008 = vadd.f32 %v839, %v935
    %v1009 = vadd.f32 %v840, %v1004
    %v1010 = vld [vmem:[%s0] sm:$0xff]
    %v1011 = vld [vmem:[%s0 + $0x8] sm:$0xf]
    %s1012 = scalar_lea.vmem %s1, 48
    %v1013 = vld [vmem:[%s1012] sm:$0xff]
    %v1016 = vcombine.high %v1010, %v1010
    %1017 = vrot.lane.b32.xlu0 %v1010, 92
    %v1018 = vpop.permute.xlu0 %1017
    %1019 = vrot.lane.b32.xlu0 %v1016, 92
    %v1020 = vpop.permute.xlu0 %1019
    %1021 = vrot.lane.b32.xlu0 %v1011, 92
    %v1022 = vpop.permute.xlu0 %1021
    %vm1023 = vcmask 752640
    %v1024 = vsel %vm1023, %v1018, %v1020
    %v1025 = vsel %vm1023, %v1020, %v1022
    %v1027 = vsel %vm32, %v1013, 0
    %v1029 = vsel %vm36, %v1024, 0
    %v1031 = vsel %vm36, %v1025, 0
    %v1033 = vsel %vm36, %v1022, 0
    %1035 = vmatprep.subr.mxu0 0.0
    %1036 = vmatpush1.msra.mxu0 0.0
    %1037 = vmatprep.subr.mxu0 0.0
    %1038 = vmatpush1.msra.mxu0 0.0
    %1039 = vmatprep.subr.mxu0 0.0
    %1040 = vmatpush1.msra.mxu0 0.0
    %1041 = vmatprep.subr.mxu0 0.0
    %1042 = vmatpush1.msra.mxu0 0.0
    %1043 = vmatprep.subr.mxu0 0.0
    %1044 = vmatpush1.msra.mxu0 0.0
    %1045 = vmatprep.subr.mxu0 0.0
    %1046 = vmatpush1.msra.mxu0 0.0
    %1047 = vmatprep.subr.mxu0 0.0
    %1048 = vmatpush1.msra.mxu0 0.0
    %1049 = vmatprep.subr.mxu0 0.0
    %1050 = vmatpush1.msra.mxu0 0.0
    %1051 = vmatprep.subr.mxu0 0.0
    %1052 = vmatpush1.msra.mxu0 0.0
    %1053 = vmatprep.subr.mxu0 0.0
    %1054 = vmatpush1.msra.mxu0 0.0
    %1055 = vmatprep.subr.mxu0 0.0
    %1056 = vmatpush1.msra.mxu0 0.0
    %1057 = vmatprep.subr.mxu0 0.0
    %1058 = vmatpush1.msra.mxu0 0.0
    %1059 = vmatprep.subr.mxu0 0.0
    %1060 = vmatpush1.msra.mxu0 0.0
    %1061 = vmatprep.subr.mxu0 0.0
    %1062 = vmatpush1.msra.mxu0 0.0
    %1063 = vmatprep.subr.mxu0 0.0
    %1064 = vmatpush1.msra.mxu0 0.0
    %1065 = vmatprep.subr.mxu0 %v1031
    %1066 = vmatpush1.msra.mxu0 %v1029
    %1067 = vmatprep.subr.mxu0 0.0
    %1068 = vmatpush2.msra.mxu0 0.0
    %1069 = vmatprep.subr.mxu0 0.0
    %1070 = vmatpush2.msra.mxu0 0.0
    %1071 = vmatprep.subr.mxu0 0.0
    %1072 = vmatpush2.msra.mxu0 0.0
    %1073 = vmatprep.subr.mxu0 0.0
    %1074 = vmatpush2.msra.mxu0 0.0
    %1075 = vmatprep.subr.mxu0 0.0
    %1076 = vmatpush2.msra.mxu0 0.0
    %1077 = vmatprep.subr.mxu0 0.0
    %1078 = vmatpush2.msra.mxu0 0.0
    %1079 = vmatprep.subr.mxu0 0.0
    %1080 = vmatpush2.msra.mxu0 0.0
    %1081 = vmatprep.subr.mxu0 0.0
    %1082 = vmatpush2.msra.mxu0 0.0
    %1083 = vmatprep.subr.mxu0 0.0
    %1084 = vmatpush2.msra.mxu0 0.0
    %1085 = vmatprep.subr.mxu0 0.0
    %1086 = vmatpush2.msra.mxu0 0.0
    %1087 = vmatprep.subr.mxu0 0.0
    %1088 = vmatpush2.msra.mxu0 0.0
    %1089 = vmatprep.subr.mxu0 0.0
    %1090 = vmatpush2.msra.mxu0 0.0
    %1091 = vmatprep.subr.mxu0 0.0
    %1092 = vmatpush2.msra.mxu0 0.0
    %1093 = vmatprep.subr.mxu0 0.0
    %1094 = vmatpush2.msra.mxu0 0.0
    %1095 = vmatprep.subr.mxu0 0.0
    %1096 = vmatpush2.msra.mxu0 0.0
    %1097 = vmatprep.subr.mxu0 0.0
    %1098 = vmatpush2.msra.mxu0 0.0
    %1099 = vmatprep.mubr.f32.mxu0 0.0
    %1100 = vmatmul.mubr.f32.gmra.mxu0 %v1027
    %v1101 = vpop.f32.mrf.mxu0
    %v1102 = vadd.f32 0.0, %v1101
    %v1103 = vpop.f32.mrf.mxu0
    %v1104 = vadd.f32 0.0, %v1103
    %1105 = vdwg.mxu0
    %1106 = vmatprep.subr.mxu0 0.0
    %1107 = vmatpush1.msra.mxu0 0.0
    %1108 = vmatprep.subr.mxu0 0.0
    %1109 = vmatpush1.msra.mxu0 0.0
    %1110 = vmatprep.subr.mxu0 0.0
    %1111 = vmatpush1.msra.mxu0 0.0
    %1112 = vmatprep.subr.mxu0 0.0
    %1113 = vmatpush1.msra.mxu0 0.0
    %1114 = vmatprep.subr.mxu0 0.0
    %1115 = vmatpush1.msra.mxu0 0.0
    %1116 = vmatprep.subr.mxu0 0.0
    %1117 = vmatpush1.msra.mxu0 0.0
    %1118 = vmatprep.subr.mxu0 0.0
    %1119 = vmatpush1.msra.mxu0 0.0
    %1120 = vmatprep.subr.mxu0 0.0
    %1121 = vmatpush1.msra.mxu0 0.0
    %1122 = vmatprep.subr.mxu0 0.0
    %1123 = vmatpush1.msra.mxu0 0.0
    %1124 = vmatprep.subr.mxu0 0.0
    %1125 = vmatpush1.msra.mxu0 0.0
    %1126 = vmatprep.subr.mxu0 0.0
    %1127 = vmatpush1.msra.mxu0 0.0
    %1128 = vmatprep.subr.mxu0 0.0
    %1129 = vmatpush1.msra.mxu0 0.0
    %1130 = vmatprep.subr.mxu0 0.0
    %1131 = vmatpush1.msra.mxu0 0.0
    %1132 = vmatprep.subr.mxu0 0.0
    %1133 = vmatpush1.msra.mxu0 0.0
    %1134 = vmatprep.subr.mxu0 0.0
    %1135 = vmatpush1.msra.mxu0 0.0
    %1136 = vmatprep.subr.mxu0 0.0
    %1137 = vmatpush1.msra.mxu0 %v1033
    %1138 = vmatprep.subr.mxu0 0.0
    %1139 = vmatpush2.msra.mxu0 0.0
    %1140 = vmatprep.subr.mxu0 0.0
    %1141 = vmatpush2.msra.mxu0 0.0
    %1142 = vmatprep.subr.mxu0 0.0
    %1143 = vmatpush2.msra.mxu0 0.0
    %1144 = vmatprep.subr.mxu0 0.0
    %1145 = vmatpush2.msra.mxu0 0.0
    %1146 = vmatprep.subr.mxu0 0.0
    %1147 = vmatpush2.msra.mxu0 0.0
    %1148 = vmatprep.subr.mxu0 0.0
    %1149 = vmatpush2.msra.mxu0 0.0
    %1150 = vmatprep.subr.mxu0 0.0
    %1151 = vmatpush2.msra.mxu0 0.0
    %1152 = vmatprep.subr.mxu0 0.0
    %1153 = vmatpush2.msra.mxu0 0.0
    %1154 = vmatprep.subr.mxu0 0.0
    %1155 = vmatpush2.msra.mxu0 0.0
    %1156 = vmatprep.subr.mxu0 0.0
    %1157 = vmatpush2.msra.mxu0 0.0
    %1158 = vmatprep.subr.mxu0 0.0
    %1159 = vmatpush2.msra.mxu0 0.0
    %1160 = vmatprep.subr.mxu0 0.0
    %1161 = vmatpush2.msra.mxu0 0.0
    %1162 = vmatprep.subr.mxu0 0.0
    %1163 = vmatpush2.msra.mxu0 0.0
    %1164 = vmatprep.subr.mxu0 0.0
    %1165 = vmatpush2.msra.mxu0 0.0
    %1166 = vmatprep.subr.mxu0 0.0
    %1167 = vmatpush2.msra.mxu0 0.0
    %1168 = vmatprep.subr.mxu0 0.0
    %1169 = vmatpush2.msra.mxu0 0.0
    %1170 = vmatprep.mubr.f32.mxu0 0.0
    %1171 = vmatmul.mubr.f32.gmra.mxu0 %v1027
    %v1172 = vpop.f32.mrf.mxu0
    %v1173 = vadd.f32 0.0, %v1172
    %v1174 = vpop.f32.mrf.mxu0
    %1175 = vdwg.mxu0
    %v1176 = vadd.f32 %v1007, %v1102
    %v1177 = vadd.f32 %v1008, %v1104
    %v1178 = vadd.f32 %v1009, %v1173
    %v1179 = vld [vmem:[%s0] sm:$0xff]
    %v1180 = vld [vmem:[%s0 + $0x8] sm:$0xf]
    %s1181 = scalar_lea.vmem %s1, 56
    %v1182 = vld [vmem:[%s1181] sm:$0xff]
    %v1185 = vcombine.high %v1179, %v1179
    %1186 = vrot.lane.b32.xlu0 %v1179, 91
    %v1187 = vpop.permute.xlu0 %1186
    %1188 = vrot.lane.b32.xlu0 %v1185, 91
    %v1189 = vpop.permute.xlu0 %1188
    %1190 = vrot.lane.b32.xlu0 %v1180, 91
    %v1191 = vpop.permute.xlu0 %1190
    %vm1192 = vcmask 744448
    %v1193 = vsel %vm1192, %v1187, %v1189
    %v1194 = vsel %vm1192, %v1189, %v1191
    %v1196 = vsel %vm32, %v1182, 0
    %v1198 = vsel %vm36, %v1193, 0
    %v1200 = vsel %vm36, %v1194, 0
    %v1202 = vsel %vm36, %v1191, 0
    %1204 = vmatprep.subr.mxu0 0.0
    %1205 = vmatpush1.msra.mxu0 0.0
    %1206 = vmatprep.subr.mxu0 0.0
    %1207 = vmatpush1.msra.mxu0 0.0
    %1208 = vmatprep.subr.mxu0 0.0
    %1209 = vmatpush1.msra.mxu0 0.0
    %1210 = vmatprep.subr.mxu0 0.0
    %1211 = vmatpush1.msra.mxu0 0.0
    %1212 = vmatprep.subr.mxu0 0.0
    %1213 = vmatpush1.msra.mxu0 0.0
    %1214 = vmatprep.subr.mxu0 0.0
    %1215 = vmatpush1.msra.mxu0 0.0
    %1216 = vmatprep.subr.mxu0 0.0
    %1217 = vmatpush1.msra.mxu0 0.0
    %1218 = vmatprep.subr.mxu0 0.0
    %1219 = vmatpush1.msra.mxu0 0.0
    %1220 = vmatprep.subr.mxu0 0.0
    %1221 = vmatpush1.msra.mxu0 0.0
    %1222 = vmatprep.subr.mxu0 0.0
    %1223 = vmatpush1.msra.mxu0 0.0
    %1224 = vmatprep.subr.mxu0 0.0
    %1225 = vmatpush1.msra.mxu0 0.0
    %1226 = vmatprep.subr.mxu0 0.0
    %1227 = vmatpush1.msra.mxu0 0.0
    %1228 = vmatprep.subr.mxu0 0.0
    %1229 = vmatpush1.msra.mxu0 0.0
    %1230 = vmatprep.subr.mxu0 0.0
    %1231 = vmatpush1.msra.mxu0 0.0
    %1232 = vmatprep.subr.mxu0 0.0
    %1233 = vmatpush1.msra.mxu0 0.0
    %1234 = vmatprep.subr.mxu0 %v1200
    %1235 = vmatpush1.msra.mxu0 %v1198
    %1236 = vmatprep.subr.mxu0 0.0
    %1237 = vmatpush2.msra.mxu0 0.0
    %1238 = vmatprep.subr.mxu0 0.0
    %1239 = vmatpush2.msra.mxu0 0.0
    %1240 = vmatprep.subr.mxu0 0.0
    %1241 = vmatpush2.msra.mxu0 0.0
    %1242 = vmatprep.subr.mxu0 0.0
    %1243 = vmatpush2.msra.mxu0 0.0
    %1244 = vmatprep.subr.mxu0 0.0
    %1245 = vmatpush2.msra.mxu0 0.0
    %1246 = vmatprep.subr.mxu0 0.0
    %1247 = vmatpush2.msra.mxu0 0.0
    %1248 = vmatprep.subr.mxu0 0.0
    %1249 = vmatpush2.msra.mxu0 0.0
    %1250 = vmatprep.subr.mxu0 0.0
    %1251 = vmatpush2.msra.mxu0 0.0
    %1252 = vmatprep.subr.mxu0 0.0
    %1253 = vmatpush2.msra.mxu0 0.0
    %1254 = vmatprep.subr.mxu0 0.0
    %1255 = vmatpush2.msra.mxu0 0.0
    %1256 = vmatprep.subr.mxu0 0.0
    %1257 = vmatpush2.msra.mxu0 0.0
    %1258 = vmatprep.subr.mxu0 0.0
    %1259 = vmatpush2.msra.mxu0 0.0
    %1260 = vmatprep.subr.mxu0 0.0
    %1261 = vmatpush2.msra.mxu0 0.0
    %1262 = vmatprep.subr.mxu0 0.0
    %1263 = vmatpush2.msra.mxu0 0.0
    %1264 = vmatprep.subr.mxu0 0.0
    %1265 = vmatpush2.msra.mxu0 0.0
    %1266 = vmatprep.subr.mxu0 0.0
    %1267 = vmatpush2.msra.mxu0 0.0
    %1268 = vmatprep.mubr.f32.mxu0 0.0
    %1269 = vmatmul.mubr.f32.gmra.mxu0 %v1196
    %v1270 = vpop.f32.mrf.mxu0
    %v1271 = vadd.f32 0.0, %v1270
    %v1272 = vpop.f32.mrf.mxu0
    %v1273 = vadd.f32 0.0, %v1272
    %1274 = vdwg.mxu0
    %1275 = vmatprep.subr.mxu0 0.0
    %1276 = vmatpush1.msra.mxu0 0.0
    %1277 = vmatprep.subr.mxu0 0.0
    %1278 = vmatpush1.msra.mxu0 0.0
    %1279 = vmatprep.subr.mxu0 0.0
    %1280 = vmatpush1.msra.mxu0 0.0
    %1281 = vmatprep.subr.mxu0 0.0
    %1282 = vmatpush1.msra.mxu0 0.0
    %1283 = vmatprep.subr.mxu0 0.0
    %1284 = vmatpush1.msra.mxu0 0.0
    %1285 = vmatprep.subr.mxu0 0.0
    %1286 = vmatpush1.msra.mxu0 0.0
    %1287 = vmatprep.subr.mxu0 0.0
    %1288 = vmatpush1.msra.mxu0 0.0
    %1289 = vmatprep.subr.mxu0 0.0
    %1290 = vmatpush1.msra.mxu0 0.0
    %1291 = vmatprep.subr.mxu0 0.0
    %1292 = vmatpush1.msra.mxu0 0.0
    %1293 = vmatprep.subr.mxu0 0.0
    %1294 = vmatpush1.msra.mxu0 0.0
    %1295 = vmatprep.subr.mxu0 0.0
    %1296 = vmatpush1.msra.mxu0 0.0
    %1297 = vmatprep.subr.mxu0 0.0
    %1298 = vmatpush1.msra.mxu0 0.0
    %1299 = vmatprep.subr.mxu0 0.0
    %1300 = vmatpush1.msra.mxu0 0.0
    %1301 = vmatprep.subr.mxu0 0.0
    %1302 = vmatpush1.msra.mxu0 0.0
    %1303 = vmatprep.subr.mxu0 0.0
    %1304 = vmatpush1.msra.mxu0 0.0
    %1305 = vmatprep.subr.mxu0 0.0
    %1306 = vmatpush1.msra.mxu0 %v1202
    %1307 = vmatprep.subr.mxu0 0.0
    %1308 = vmatpush2.msra.mxu0 0.0
    %1309 = vmatprep.subr.mxu0 0.0
    %1310 = vmatpush2.msra.mxu0 0.0
    %1311 = vmatprep.subr.mxu0 0.0
    %1312 = vmatpush2.msra.mxu0 0.0
    %1313 = vmatprep.subr.mxu0 0.0
    %1314 = vmatpush2.msra.mxu0 0.0
    %1315 = vmatprep.subr.mxu0 0.0
    %1316 = vmatpush2.msra.mxu0 0.0
    %1317 = vmatprep.subr.mxu0 0.0
    %1318 = vmatpush2.msra.mxu0 0.0
    %1319 = vmatprep.subr.mxu0 0.0
    %1320 = vmatpush2.msra.mxu0 0.0
    %1321 = vmatprep.subr.mxu0 0.0
    %1322 = vmatpush2.msra.mxu0 0.0
    %1323 = vmatprep.subr.mxu0 0.0
    %1324 = vmatpush2.msra.mxu0 0.0
    %1325 = vmatprep.subr.mxu0 0.0
    %1326 = vmatpush2.msra.mxu0 0.0
    %1327 = vmatprep.subr.mxu0 0.0
    %1328 = vmatpush2.msra.mxu0 0.0
    %1329 = vmatprep.subr.mxu0 0.0
    %1330 = vmatpush2.msra.mxu0 0.0
    %1331 = vmatprep.subr.mxu0 0.0
    %1332 = vmatpush2.msra.mxu0 0.0
    %1333 = vmatprep.subr.mxu0 0.0
    %1334 = vmatpush2.msra.mxu0 0.0
    %1335 = vmatprep.subr.mxu0 0.0
    %1336 = vmatpush2.msra.mxu0 0.0
    %1337 = vmatprep.subr.mxu0 0.0
    %1338 = vmatpush2.msra.mxu0 0.0
    %1339 = vmatprep.mubr.f32.mxu0 0.0
    %1340 = vmatmul.mubr.f32.gmra.mxu0 %v1196
    %v1341 = vpop.f32.mrf.mxu0
    %v1342 = vadd.f32 0.0, %v1341
    %v1343 = vpop.f32.mrf.mxu0
    %1344 = vdwg.mxu0
    %v1345 = vadd.f32 %v1176, %v1271
    %v1346 = vadd.f32 %v1177, %v1273
    %v1347 = vadd.f32 %v1178, %v1342
    %v1348 = vld [vmem:[%s0] sm:$0xff]
    %v1349 = vld [vmem:[%s0 + $0x8] sm:$0xf]
    %s1350 = scalar_lea.vmem %s1, 64
    %v1351 = vld [vmem:[%s1350] sm:$0xff]
    %v1354 = vcombine.high %v1348, %v1348
    %1355 = vrot.lane.b32.xlu0 %v1348, 90
    %v1356 = vpop.permute.xlu0 %1355
    %1357 = vrot.lane.b32.xlu0 %v1354, 90
    %v1358 = vpop.permute.xlu0 %1357
    %1359 = vrot.lane.b32.xlu0 %v1349, 90
    %v1360 = vpop.permute.xlu0 %1359
    %vm1361 = vcmask 736256
    %v1362 = vsel %vm1361, %v1356, %v1358
    %v1363 = vsel %vm1361, %v1358, %v1360
    %v1365 = vsel %vm32, %v1351, 0
    %v1367 = vsel %vm36, %v1362, 0
    %v1369 = vsel %vm36, %v1363, 0
    %v1371 = vsel %vm36, %v1360, 0
    %1373 = vmatprep.subr.mxu0 0.0
    %1374 = vmatpush1.msra.mxu0 0.0
    %1375 = vmatprep.subr.mxu0 0.0
    %1376 = vmatpush1.msra.mxu0 0.0
    %1377 = vmatprep.subr.mxu0 0.0
    %1378 = vmatpush1.msra.mxu0 0.0
    %1379 = vmatprep.subr.mxu0 0.0
    %1380 = vmatpush1.msra.mxu0 0.0
    %1381 = vmatprep.subr.mxu0 0.0
    %1382 = vmatpush1.msra.mxu0 0.0
    %1383 = vmatprep.subr.mxu0 0.0
    %1384 = vmatpush1.msra.mxu0 0.0
    %1385 = vmatprep.subr.mxu0 0.0
    %1386 = vmatpush1.msra.mxu0 0.0
    %1387 = vmatprep.subr.mxu0 0.0
    %1388 = vmatpush1.msra.mxu0 0.0
    %1389 = vmatprep.subr.mxu0 0.0
    %1390 = vmatpush1.msra.mxu0 0.0
    %1391 = vmatprep.subr.mxu0 0.0
    %1392 = vmatpush1.msra.mxu0 0.0
    %1393 = vmatprep.subr.mxu0 0.0
    %1394 = vmatpush1.msra.mxu0 0.0
    %1395 = vmatprep.subr.mxu0 0.0
    %1396 = vmatpush1.msra.mxu0 0.0
    %1397 = vmatprep.subr.mxu0 0.0
    %1398 = vmatpush1.msra.mxu0 0.0
    %1399 = vmatprep.subr.mxu0 0.0
    %1400 = vmatpush1.msra.mxu0 0.0
    %1401 = vmatprep.subr.mxu0 0.0
    %1402 = vmatpush1.msra.mxu0 0.0
    %1403 = vmatprep.subr.mxu0 %v1369
    %1404 = vmatpush1.msra.mxu0 %v1367
    %1405 = vmatprep.subr.mxu0 0.0
    %1406 = vmatpush2.msra.mxu0 0.0
    %1407 = vmatprep.subr.mxu0 0.0
    %1408 = vmatpush2.msra.mxu0 0.0
    %1409 = vmatprep.subr.mxu0 0.0
    %1410 = vmatpush2.msra.mxu0 0.0
    %1411 = vmatprep.subr.mxu0 0.0
    %1412 = vmatpush2.msra.mxu0 0.0
    %1413 = vmatprep.subr.mxu0 0.0
    %1414 = vmatpush2.msra.mxu0 0.0
    %1415 = vmatprep.subr.mxu0 0.0
    %1416 = vmatpush2.msra.mxu0 0.0
    %1417 = vmatprep.subr.mxu0 0.0
    %1418 = vmatpush2.msra.mxu0 0.0
    %1419 = vmatprep.subr.mxu0 0.0
    %1420 = vmatpush2.msra.mxu0 0.0
    %1421 = vmatprep.subr.mxu0 0.0
    %1422 = vmatpush2.msra.mxu0 0.0
    %1423 = vmatprep.subr.mxu0 0.0
    %1424 = vmatpush2.msra.mxu0 0.0
    %1425 = vmatprep.subr.mxu0 0.0
    %1426 = vmatpush2.msra.mxu0 0.0
    %1427 = vmatprep.subr.mxu0 0.0
    %1428 = vmatpush2.msra.mxu0 0.0
    %1429 = vmatprep.subr.mxu0 0.0
    %1430 = vmatpush2.msra.mxu0 0.0
    %1431 = vmatprep.subr.mxu0 0.0
    %1432 = vmatpush2.msra.mxu0 0.0
    %1433 = vmatprep.subr.mxu0 0.0
    %1434 = vmatpush2.msra.mxu0 0.0
    %1435 = vmatprep.subr.mxu0 0.0
    %1436 = vmatpush2.msra.mxu0 0.0
    %1437 = vmatprep.mubr.f32.mxu0 0.0
    %1438 = vmatmul.mubr.f32.gmra.mxu0 %v1365
    %v1439 = vpop.f32.mrf.mxu0
    %v1440 = vadd.f32 0.0, %v1439
    %v1441 = vpop.f32.mrf.mxu0
    %v1442 = vadd.f32 0.0, %v1441
    %1443 = vdwg.mxu0
    %1444 = vmatprep.subr.mxu0 0.0
    %1445 = vmatpush1.msra.mxu0 0.0
    %1446 = vmatprep.subr.mxu0 0.0
    %1447 = vmatpush1.msra.mxu0 0.0
    %1448 = vmatprep.subr.mxu0 0.0
    %1449 = vmatpush1.msra.mxu0 0.0
    %1450 = vmatprep.subr.mxu0 0.0
    %1451 = vmatpush1.msra.mxu0 0.0
    %1452 = vmatprep.subr.mxu0 0.0
    %1453 = vmatpush1.msra.mxu0 0.0
    %1454 = vmatprep.subr.mxu0 0.0
    %1455 = vmatpush1.msra.mxu0 0.0
    %1456 = vmatprep.subr.mxu0 0.0
    %1457 = vmatpush1.msra.mxu0 0.0
    %1458 = vmatprep.subr.mxu0 0.0
    %1459 = vmatpush1.msra.mxu0 0.0
    %1460 = vmatprep.subr.mxu0 0.0
    %1461 = vmatpush1.msra.mxu0 0.0
    %1462 = vmatprep.subr.mxu0 0.0
    %1463 = vmatpush1.msra.mxu0 0.0
    %1464 = vmatprep.subr.mxu0 0.0
    %1465 = vmatpush1.msra.mxu0 0.0
    %1466 = vmatprep.subr.mxu0 0.0
    %1467 = vmatpush1.msra.mxu0 0.0
    %1468 = vmatprep.subr.mxu0 0.0
    %1469 = vmatpush1.msra.mxu0 0.0
    %1470 = vmatprep.subr.mxu0 0.0
    %1471 = vmatpush1.msra.mxu0 0.0
    %1472 = vmatprep.subr.mxu0 0.0
    %1473 = vmatpush1.msra.mxu0 0.0
    %1474 = vmatprep.subr.mxu0 0.0
    %1475 = vmatpush1.msra.mxu0 %v1371
    %1476 = vmatprep.subr.mxu0 0.0
    %1477 = vmatpush2.msra.mxu0 0.0
    %1478 = vmatprep.subr.mxu0 0.0
    %1479 = vmatpush2.msra.mxu0 0.0
    %1480 = vmatprep.subr.mxu0 0.0
    %1481 = vmatpush2.msra.mxu0 0.0
    %1482 = vmatprep.subr.mxu0 0.0
    %1483 = vmatpush2.msra.mxu0 0.0
    %1484 = vmatprep.subr.mxu0 0.0
    %1485 = vmatpush2.msra.mxu0 0.0
    %1486 = vmatprep.subr.mxu0 0.0
    %1487 = vmatpush2.msra.mxu0 0.0
    %1488 = vmatprep.subr.mxu0 0.0
    %1489 = vmatpush2.msra.mxu0 0.0
    %1490 = vmatprep.subr.mxu0 0.0
    %1491 = vmatpush2.msra.mxu0 0.0
    %1492 = vmatprep.subr.mxu0 0.0
    %1493 = vmatpush2.msra.mxu0 0.0
    %1494 = vmatprep.subr.mxu0 0.0
    %1495 = vmatpush2.msra.mxu0 0.0
    %1496 = vmatprep.subr.mxu0 0.0
    %1497 = vmatpush2.msra.mxu0 0.0
    %1498 = vmatprep.subr.mxu0 0.0
    %1499 = vmatpush2.msra.mxu0 0.0
    %1500 = vmatprep.subr.mxu0 0.0
    %1501 = vmatpush2.msra.mxu0 0.0
    %1502 = vmatprep.subr.mxu0 0.0
    %1503 = vmatpush2.msra.mxu0 0.0
    %1504 = vmatprep.subr.mxu0 0.0
    %1505 = vmatpush2.msra.mxu0 0.0
    %1506 = vmatprep.subr.mxu0 0.0
    %1507 = vmatpush2.msra.mxu0 0.0
    %1508 = vmatprep.mubr.f32.mxu0 0.0
    %1509 = vmatmul.mubr.f32.gmra.mxu0 %v1365
    %v1510 = vpop.f32.mrf.mxu0
    %v1511 = vadd.f32 0.0, %v1510
    %v1512 = vpop.f32.mrf.mxu0
    %1513 = vdwg.mxu0
    %v1514 = vadd.f32 %v1345, %v1440
    %v1515 = vadd.f32 %v1346, %v1442
    %v1516 = vadd.f32 %v1347, %v1511
    %v1517 = vld [vmem:[%s2] sm:$0x7]
    %v1519 = vlaneseq
    %v1520 = vshrl.u32 %v1519, 7
    %v1521 = vsub.s32 0, %v1520
    %v1522 = vrot.slane %v1517, %v1521
    %v1523 = vlaneseq
    %v1524 = vshrl.u32 %v1523, 7
    %v1525 = vsub.s32 1, %v1524
    %v1526 = vrot.slane %v1517, %v1525
    %v1527 = vlaneseq
    %v1528 = vshrl.u32 %v1527, 7
    %v1529 = vsub.s32 2, %v1528
    %v1530 = vrot.slane %v1517, %v1529
    %v1534 = vmul.f32 %v1514, %v1522
    %v1535 = vmul.f32 %v1515, %v1526
    %v1536 = vmul.f32 %v1516, %v1530
    %v1537 = vadd.f32 %v1534, %v1535
    %vm1538 = vcmask 261120
    %v1539 = vsel %vm1538, %v1536, 0.0
    %v1540 = vadd.f32 %v1537, %v1539
    %1541 = vadd.xlane.f32.xlu0 %v1540
    %v1542 = vpop.xlane.xlu0 %1541
    %v1543 = vmul.f32 %v1514, %v1514
    %v1544 = vmul.f32 %v1515, %v1515
    %v1545 = vmul.f32 %v1516, %v1516
    %v1546 = vmul.f32 %v1543, %v1522
    %v1547 = vmul.f32 %v1544, %v1526
    %v1548 = vmul.f32 %v1545, %v1530
    %v1549 = vadd.f32 %v1546, %v1547
    %v1550 = vsel %vm1538, %v1548, 0.0
    %v1551 = vadd.f32 %v1549, %v1550
    %1552 = vadd.xlane.f32.xlu0 %v1551
    %v1553 = vpop.xlane.xlu0 %1552
    %v1554 = vmul.f32 %v1542, 0.00390625
    %v1555 = vmul.f32 %v1553, 0.00390625
    %v1556 = vmul.f32 %v1554, %v1554
    %v1557 = vsub.f32 %v1555, %v1556
    %v1558 = vsub.f32 %v1514, %v1554
    %v1559 = vsub.f32 %v1515, %v1554
    %v1560 = vsub.f32 %v1516, %v1554
    %v1561 = vadd.f32 %v1557, 1e-05
    %v1562 = vrsqrt.pop %v1561
    %v1563 = vmul.f32 %v1558, %v1562
    %v1564 = vmul.f32 %v1559, %v1562
    %v1565 = vmul.f32 %v1560, %v1562
    %vm1566 = vcmp.ge.f32.partialorder %v1563, 0.0
    %vm1567 = vcmp.ge.f32.partialorder %v1564, 0.0
    %vm1568 = vcmp.ge.f32.partialorder %v1565, 0.0
    %v1569 = vmul.f32 %v1563, 0.2
    %v1570 = vmul.f32 %v1564, 0.2
    %v1571 = vmul.f32 %v1565, 0.2
    %v1572 = vsel %vm1566, %v1563, %v1569
    %v1573 = vsel %vm1567, %v1564, %v1570
    %v1574 = vsel %vm1568, %v1565, %v1571
    %1575 = vst [vmem:[#allocation2] sm:$0xff] %v1572
    %1576 = vst [vmem:[#allocation2 + $0x8] sm:$0xff] %v1573
    %1577 = vst.msk [vmem:[#allocation2 + $0x10] sm:$0xff] %vm1538, %v1574
    %s1578 = scalar_lea.vmem %s0, 12
    %v1579 = vld [vmem:[%s1578] sm:$0xff]
    %v1580 = vld [vmem:[%s1578 + $0x8] sm:$0xf]
    %v1581 = vld [vmem:[%s1] sm:$0xff]
    %v1582 = vld [vmem:[%s18] sm:$0xff]
    %v1585 = vcombine.high %v1579, %v1579
    %1586 = vrot.lane.b32.xlu0 %v1579, 127
    %v1587 = vpop.permute.xlu0 %1586
    %1588 = vrot.lane.b32.xlu0 %v1585, 127
    %v1589 = vpop.permute.xlu0 %1588
    %1590 = vrot.lane.b32.xlu0 %v1580, 127
    %v1591 = vpop.permute.xlu0 %1590
    %v1592 = vsel %vm29, %v1587, %v1589
    %v1593 = vsel %vm29, %v1589, %v1591
    %v1595 = vsel %vm32, %v1582, 0
    %v1597 = vsel %vm36, %v1592, 0
    %v1599 = vsel %vm36, %v1593, 0
    %v1601 = vsel %vm36, %v1591, 0
    %1603 = vmatprep.subr.mxu0 0.0
    %1604 = vmatpush1.msra.mxu0 0.0
    %1605 = vmatprep.subr.mxu0 0.0
    %1606 = vmatpush1.msra.mxu0 0.0
    %1607 = vmatprep.subr.mxu0 0.0
    %1608 = vmatpush1.msra.mxu0 0.0
    %1609 = vmatprep.subr.mxu0 0.0
    %1610 = vmatpush1.msra.mxu0 0.0
    %1611 = vmatprep.subr.mxu0 0.0
    %1612 = vmatpush1.msra.mxu0 0.0
    %1613 = vmatprep.subr.mxu0 0.0
    %1614 = vmatpush1.msra.mxu0 0.0
    %1615 = vmatprep.subr.mxu0 0.0
    %1616 = vmatpush1.msra.mxu0 0.0
    %1617 = vmatprep.subr.mxu0 0.0
    %1618 = vmatpush1.msra.mxu0 0.0
    %1619 = vmatprep.subr.mxu0 0.0
    %1620 = vmatpush1.msra.mxu0 0.0
    %1621 = vmatprep.subr.mxu0 0.0
    %1622 = vmatpush1.msra.mxu0 0.0
    %1623 = vmatprep.subr.mxu0 0.0
    %1624 = vmatpush1.msra.mxu0 0.0
    %1625 = vmatprep.subr.mxu0 0.0
    %1626 = vmatpush1.msra.mxu0 0.0
    %1627 = vmatprep.subr.mxu0 0.0
    %1628 = vmatpush1.msra.mxu0 0.0
    %1629 = vmatprep.subr.mxu0 0.0
    %1630 = vmatpush1.msra.mxu0 0.0
    %1631 = vmatprep.subr.mxu0 0.0
    %1632 = vmatpush1.msra.mxu0 0.0
    %1633 = vmatprep.subr.mxu0 %v1599
    %1634 = vmatpush1.msra.mxu0 %v1597
    %1635 = vmatprep.subr.mxu0 0.0
    %1636 = vmatpush2.msra.mxu0 0.0
    %1637 = vmatprep.subr.mxu0 0.0
    %1638 = vmatpush2.msra.mxu0 0.0
    %1639 = vmatprep.subr.mxu0 0.0
    %1640 = vmatpush2.msra.mxu0 0.0
    %1641 = vmatprep.subr.mxu0 0.0
    %1642 = vmatpush2.msra.mxu0 0.0
    %1643 = vmatprep.subr.mxu0 0.0
    %1644 = vmatpush2.msra.mxu0 0.0
    %1645 = vmatprep.subr.mxu0 0.0
    %1646 = vmatpush2.msra.mxu0 0.0
    %1647 = vmatprep.subr.mxu0 0.0
    %1648 = vmatpush2.msra.mxu0 0.0
    %1649 = vmatprep.subr.mxu0 0.0
    %1650 = vmatpush2.msra.mxu0 0.0
    %1651 = vmatprep.subr.mxu0 0.0
    %1652 = vmatpush2.msra.mxu0 0.0
    %1653 = vmatprep.subr.mxu0 0.0
    %1654 = vmatpush2.msra.mxu0 0.0
    %1655 = vmatprep.subr.mxu0 0.0
    %1656 = vmatpush2.msra.mxu0 0.0
    %1657 = vmatprep.subr.mxu0 0.0
    %1658 = vmatpush2.msra.mxu0 0.0
    %1659 = vmatprep.subr.mxu0 0.0
    %1660 = vmatpush2.msra.mxu0 0.0
    %1661 = vmatprep.subr.mxu0 0.0
    %1662 = vmatpush2.msra.mxu0 0.0
    %1663 = vmatprep.subr.mxu0 0.0
    %1664 = vmatpush2.msra.mxu0 0.0
    %1665 = vmatprep.subr.mxu0 0.0
    %1666 = vmatpush2.msra.mxu0 0.0
    %1667 = vmatprep.mubr.f32.mxu0 0.0
    %1668 = vmatmul.mubr.f32.gmra.mxu0 %v1595
    %v1669 = vpop.f32.mrf.mxu0
    %v1670 = vadd.f32 0.0, %v1669
    %v1671 = vpop.f32.mrf.mxu0
    %v1672 = vadd.f32 0.0, %v1671
    %1673 = vdwg.mxu0
    %1674 = vmatprep.subr.mxu0 0.0
    %1675 = vmatpush1.msra.mxu0 0.0
    %1676 = vmatprep.subr.mxu0 0.0
    %1677 = vmatpush1.msra.mxu0 0.0
    %1678 = vmatprep.subr.mxu0 0.0
    %1679 = vmatpush1.msra.mxu0 0.0
    %1680 = vmatprep.subr.mxu0 0.0
    %1681 = vmatpush1.msra.mxu0 0.0
    %1682 = vmatprep.subr.mxu0 0.0
    %1683 = vmatpush1.msra.mxu0 0.0
    %1684 = vmatprep.subr.mxu0 0.0
    %1685 = vmatpush1.msra.mxu0 0.0
    %1686 = vmatprep.subr.mxu0 0.0
    %1687 = vmatpush1.msra.mxu0 0.0
    %1688 = vmatprep.subr.mxu0 0.0
    %1689 = vmatpush1.msra.mxu0 0.0
    %1690 = vmatprep.subr.mxu0 0.0
    %1691 = vmatpush1.msra.mxu0 0.0
    %1692 = vmatprep.subr.mxu0 0.0
    %1693 = vmatpush1.msra.mxu0 0.0
    %1694 = vmatprep.subr.mxu0 0.0
    %1695 = vmatpush1.msra.mxu0 0.0
    %1696 = vmatprep.subr.mxu0 0.0
    %1697 = vmatpush1.msra.mxu0 0.0
    %1698 = vmatprep.subr.mxu0 0.0
    %1699 = vmatpush1.msra.mxu0 0.0
    %1700 = vmatprep.subr.mxu0 0.0
    %1701 = vmatpush1.msra.mxu0 0.0
    %1702 = vmatprep.subr.mxu0 0.0
    %1703 = vmatpush1.msra.mxu0 0.0
    %1704 = vmatprep.subr.mxu0 0.0
    %1705 = vmatpush1.msra.mxu0 %v1601
    %1706 = vmatprep.subr.mxu0 0.0
    %1707 = vmatpush2.msra.mxu0 0.0
    %1708 = vmatprep.subr.mxu0 0.0
    %1709 = vmatpush2.msra.mxu0 0.0
    %1710 = vmatprep.subr.mxu0 0.0
    %1711 = vmatpush2.msra.mxu0 0.0
    %1712 = vmatprep.subr.mxu0 0.0
    %1713 = vmatpush2.msra.mxu0 0.0
    %1714 = vmatprep.subr.mxu0 0.0
    %1715 = vmatpush2.msra.mxu0 0.0
    %1716 = vmatprep.subr.mxu0 0.0
    %1717 = vmatpush2.msra.mxu0 0.0
    %1718 = vmatprep.subr.mxu0 0.0
    %1719 = vmatpush2.msra.mxu0 0.0
    %1720 = vmatprep.subr.mxu0 0.0
    %1721 = vmatpush2.msra.mxu0 0.0
    %1722 = vmatprep.subr.mxu0 0.0
    %1723 = vmatpush2.msra.mxu0 0.0
    %1724 = vmatprep.subr.mxu0 0.0
    %1725 = vmatpush2.msra.mxu0 0.0
    %1726 = vmatprep.subr.mxu0 0.0
    %1727 = vmatpush2.msra.mxu0 0.0
    %1728 = vmatprep.subr.mxu0 0.0
    %1729 = vmatpush2.msra.mxu0 0.0
    %1730 = vmatprep.subr.mxu0 0.0
    %1731 = vmatpush2.msra.mxu0 0.0
    %1732 = vmatprep.subr.mxu0 0.0
    %1733 = vmatpush2.msra.mxu0 0.0
    %1734 = vmatprep.subr.mxu0 0.0
    %1735 = vmatpush2.msra.mxu0 0.0
    %1736 = vmatprep.subr.mxu0 0.0
    %1737 = vmatpush2.msra.mxu0 0.0
    %1738 = vmatprep.mubr.f32.mxu0 0.0
    %1739 = vmatmul.mubr.f32.gmra.mxu0 %v1595
    %v1740 = vpop.f32.mrf.mxu0
    %v1741 = vadd.f32 0.0, %v1740
    %v1742 = vpop.f32.mrf.mxu0
    %1743 = vdwg.mxu0
    %v1745 = vsel %vm32, %v1581, 0
    %v1747 = vsel %vm36, %v1579, 0
    %v1749 = vsel %vm36, %v1585, 0
    %v1751 = vsel %vm36, %v1580, 0
    %1753 = vmatprep.subr.mxu0 0.0
    %1754 = vmatpush1.msra.mxu0 0.0
    %1755 = vmatprep.subr.mxu0 0.0
    %1756 = vmatpush1.msra.mxu0 0.0
    %1757 = vmatprep.subr.mxu0 0.0
    %1758 = vmatpush1.msra.mxu0 0.0
    %1759 = vmatprep.subr.mxu0 0.0
    %1760 = vmatpush1.msra.mxu0 0.0
    %1761 = vmatprep.subr.mxu0 0.0
    %1762 = vmatpush1.msra.mxu0 0.0
    %1763 = vmatprep.subr.mxu0 0.0
    %1764 = vmatpush1.msra.mxu0 0.0
    %1765 = vmatprep.subr.mxu0 0.0
    %1766 = vmatpush1.msra.mxu0 0.0
    %1767 = vmatprep.subr.mxu0 0.0
    %1768 = vmatpush1.msra.mxu0 0.0
    %1769 = vmatprep.subr.mxu0 0.0
    %1770 = vmatpush1.msra.mxu0 0.0
    %1771 = vmatprep.subr.mxu0 0.0
    %1772 = vmatpush1.msra.mxu0 0.0
    %1773 = vmatprep.subr.mxu0 0.0
    %1774 = vmatpush1.msra.mxu0 0.0
    %1775 = vmatprep.subr.mxu0 0.0
    %1776 = vmatpush1.msra.mxu0 0.0
    %1777 = vmatprep.subr.mxu0 0.0
    %1778 = vmatpush1.msra.mxu0 0.0
    %1779 = vmatprep.subr.mxu0 0.0
    %1780 = vmatpush1.msra.mxu0 0.0
    %1781 = vmatprep.subr.mxu0 0.0
    %1782 = vmatpush1.msra.mxu0 0.0
    %1783 = vmatprep.subr.mxu0 %v1749
    %1784 = vmatpush1.msra.mxu0 %v1747
    %1785 = vmatprep.subr.mxu0 0.0
    %1786 = vmatpush2.msra.mxu0 0.0
    %1787 = vmatprep.subr.mxu0 0.0
    %1788 = vmatpush2.msra.mxu0 0.0
    %1789 = vmatprep.subr.mxu0 0.0
    %1790 = vmatpush2.msra.mxu0 0.0
    %1791 = vmatprep.subr.mxu0 0.0
    %1792 = vmatpush2.msra.mxu0 0.0
    %1793 = vmatprep.subr.mxu0 0.0
    %1794 = vmatpush2.msra.mxu0 0.0
    %1795 = vmatprep.subr.mxu0 0.0
    %1796 = vmatpush2.msra.mxu0 0.0
    %1797 = vmatprep.subr.mxu0 0.0
    %1798 = vmatpush2.msra.mxu0 0.0
    %1799 = vmatprep.subr.mxu0 0.0
    %1800 = vmatpush2.msra.mxu0 0.0
    %1801 = vmatprep.subr.mxu0 0.0
    %1802 = vmatpush2.msra.mxu0 0.0
    %1803 = vmatprep.subr.mxu0 0.0
    %1804 = vmatpush2.msra.mxu0 0.0
    %1805 = vmatprep.subr.mxu0 0.0
    %1806 = vmatpush2.msra.mxu0 0.0
    %1807 = vmatprep.subr.mxu0 0.0
    %1808 = vmatpush2.msra.mxu0 0.0
    %1809 = vmatprep.subr.mxu0 0.0
    %1810 = vmatpush2.msra.mxu0 0.0
    %1811 = vmatprep.subr.mxu0 0.0
    %1812 = vmatpush2.msra.mxu0 0.0
    %1813 = vmatprep.subr.mxu0 0.0
    %1814 = vmatpush2.msra.mxu0 0.0
    %1815 = vmatprep.subr.mxu0 0.0
    %1816 = vmatpush2.msra.mxu0 0.0
    %1817 = vmatprep.mubr.f32.mxu0 0.0
    %1818 = vmatmul.mubr.f32.gmra.mxu0 %v1745
    %v1819 = vpop.f32.mrf.mxu0
    %v1820 = vadd.f32 %v1670, %v1819
    %v1821 = vpop.f32.mrf.mxu0
    %v1822 = vadd.f32 %v1672, %v1821
    %1823 = vdwg.mxu0
    %1824 = vmatprep.subr.mxu0 0.0
    %1825 = vmatpush1.msra.mxu0 0.0
    %1826 = vmatprep.subr.mxu0 0.0
    %1827 = vmatpush1.msra.mxu0 0.0
    %1828 = vmatprep.subr.mxu0 0.0
    %1829 = vmatpush1.msra.mxu0 0.0
    %1830 = vmatprep.subr.mxu0 0.0
    %1831 = vmatpush1.msra.mxu0 0.0
    %1832 = vmatprep.subr.mxu0 0.0
    %1833 = vmatpush1.msra.mxu0 0.0
    %1834 = vmatprep.subr.mxu0 0.0
    %1835 = vmatpush1.msra.mxu0 0.0
    %1836 = vmatprep.subr.mxu0 0.0
    %1837 = vmatpush1.msra.mxu0 0.0
    %1838 = vmatprep.subr.mxu0 0.0
    %1839 = vmatpush1.msra.mxu0 0.0
    %1840 = vmatprep.subr.mxu0 0.0
    %1841 = vmatpush1.msra.mxu0 0.0
    %1842 = vmatprep.subr.mxu0 0.0
    %1843 = vmatpush1.msra.mxu0 0.0
    %1844 = vmatprep.subr.mxu0 0.0
    %1845 = vmatpush1.msra.mxu0 0.0
    %1846 = vmatprep.subr.mxu0 0.0
    %1847 = vmatpush1.msra.mxu0 0.0
    %1848 = vmatprep.subr.mxu0 0.0
    %1849 = vmatpush1.msra.mxu0 0.0
    %1850 = vmatprep.subr.mxu0 0.0
    %1851 = vmatpush1.msra.mxu0 0.0
    %1852 = vmatprep.subr.mxu0 0.0
    %1853 = vmatpush1.msra.mxu0 0.0
    %1854 = vmatprep.subr.mxu0 0.0
    %1855 = vmatpush1.msra.mxu0 %v1751
    %1856 = vmatprep.subr.mxu0 0.0
    %1857 = vmatpush2.msra.mxu0 0.0
    %1858 = vmatprep.subr.mxu0 0.0
    %1859 = vmatpush2.msra.mxu0 0.0
    %1860 = vmatprep.subr.mxu0 0.0
    %1861 = vmatpush2.msra.mxu0 0.0
    %1862 = vmatprep.subr.mxu0 0.0
    %1863 = vmatpush2.msra.mxu0 0.0
    %1864 = vmatprep.subr.mxu0 0.0
    %1865 = vmatpush2.msra.mxu0 0.0
    %1866 = vmatprep.subr.mxu0 0.0
    %1867 = vmatpush2.msra.mxu0 0.0
    %1868 = vmatprep.subr.mxu0 0.0
    %1869 = vmatpush2.msra.mxu0 0.0
    %1870 = vmatprep.subr.mxu0 0.0
    %1871 = vmatpush2.msra.mxu0 0.0
    %1872 = vmatprep.subr.mxu0 0.0
    %1873 = vmatpush2.msra.mxu0 0.0
    %1874 = vmatprep.subr.mxu0 0.0
    %1875 = vmatpush2.msra.mxu0 0.0
    %1876 = vmatprep.subr.mxu0 0.0
    %1877 = vmatpush2.msra.mxu0 0.0
    %1878 = vmatprep.subr.mxu0 0.0
    %1879 = vmatpush2.msra.mxu0 0.0
    %1880 = vmatprep.subr.mxu0 0.0
    %1881 = vmatpush2.msra.mxu0 0.0
    %1882 = vmatprep.subr.mxu0 0.0
    %1883 = vmatpush2.msra.mxu0 0.0
    %1884 = vmatprep.subr.mxu0 0.0
    %1885 = vmatpush2.msra.mxu0 0.0
    %1886 = vmatprep.subr.mxu0 0.0
    %1887 = vmatpush2.msra.mxu0 0.0
    %1888 = vmatprep.mubr.f32.mxu0 0.0
    %1889 = vmatmul.mubr.f32.gmra.mxu0 %v1745
    %v1890 = vpop.f32.mrf.mxu0
    %v1891 = vadd.f32 %v1741, %v1890
    %v1892 = vpop.f32.mrf.mxu0
    %1893 = vdwg.mxu0
    %v1894 = vld [vmem:[%s1578] sm:$0xff]
    %v1895 = vld [vmem:[%s1578 + $0x8] sm:$0xf]
    %v1896 = vld [vmem:[%s336] sm:$0xff]
    %v1899 = vcombine.high %v1894, %v1894
    %1900 = vrot.lane.b32.xlu0 %v1894, 126
    %v1901 = vpop.permute.xlu0 %1900
    %1902 = vrot.lane.b32.xlu0 %v1899, 126
    %v1903 = vpop.permute.xlu0 %1902
    %1904 = vrot.lane.b32.xlu0 %v1895, 126
    %v1905 = vpop.permute.xlu0 %1904
    %v1906 = vsel %vm347, %v1901, %v1903
    %v1907 = vsel %vm347, %v1903, %v1905
    %v1909 = vsel %vm32, %v1896, 0
    %v1911 = vsel %vm36, %v1906, 0
    %v1913 = vsel %vm36, %v1907, 0
    %v1915 = vsel %vm36, %v1905, 0
    %1917 = vmatprep.subr.mxu0 0.0
    %1918 = vmatpush1.msra.mxu0 0.0
    %1919 = vmatprep.subr.mxu0 0.0
    %1920 = vmatpush1.msra.mxu0 0.0
    %1921 = vmatprep.subr.mxu0 0.0
    %1922 = vmatpush1.msra.mxu0 0.0
    %1923 = vmatprep.subr.mxu0 0.0
    %1924 = vmatpush1.msra.mxu0 0.0
    %1925 = vmatprep.subr.mxu0 0.0
    %1926 = vmatpush1.msra.mxu0 0.0
    %1927 = vmatprep.subr.mxu0 0.0
    %1928 = vmatpush1.msra.mxu0 0.0
    %1929 = vmatprep.subr.mxu0 0.0
    %1930 = vmatpush1.msra.mxu0 0.0
    %1931 = vmatprep.subr.mxu0 0.0
    %1932 = vmatpush1.msra.mxu0 0.0
    %1933 = vmatprep.subr.mxu0 0.0
    %1934 = vmatpush1.msra.mxu0 0.0
    %1935 = vmatprep.subr.mxu0 0.0
    %1936 = vmatpush1.msra.mxu0 0.0
    %1937 = vmatprep.subr.mxu0 0.0
    %1938 = vmatpush1.msra.mxu0 0.0
    %1939 = vmatprep.subr.mxu0 0.0
    %1940 = vmatpush1.msra.mxu0 0.0
    %1941 = vmatprep.subr.mxu0 0.0
    %1942 = vmatpush1.msra.mxu0 0.0
    %1943 = vmatprep.subr.mxu0 0.0
    %1944 = vmatpush1.msra.mxu0 0.0
    %1945 = vmatprep.subr.mxu0 0.0
    %1946 = vmatpush1.msra.mxu0 0.0
    %1947 = vmatprep.subr.mxu0 %v1913
    %1948 = vmatpush1.msra.mxu0 %v1911
    %1949 = vmatprep.subr.mxu0 0.0
    %1950 = vmatpush2.msra.mxu0 0.0
    %1951 = vmatprep.subr.mxu0 0.0
    %1952 = vmatpush2.msra.mxu0 0.0
    %1953 = vmatprep.subr.mxu0 0.0
    %1954 = vmatpush2.msra.mxu0 0.0
    %1955 = vmatprep.subr.mxu0 0.0
    %1956 = vmatpush2.msra.mxu0 0.0
    %1957 = vmatprep.subr.mxu0 0.0
    %1958 = vmatpush2.msra.mxu0 0.0
    %1959 = vmatprep.subr.mxu0 0.0
    %1960 = vmatpush2.msra.mxu0 0.0
    %1961 = vmatprep.subr.mxu0 0.0
    %1962 = vmatpush2.msra.mxu0 0.0
    %1963 = vmatprep.subr.mxu0 0.0
    %1964 = vmatpush2.msra.mxu0 0.0
    %1965 = vmatprep.subr.mxu0 0.0
    %1966 = vmatpush2.msra.mxu0 0.0
    %1967 = vmatprep.subr.mxu0 0.0
    %1968 = vmatpush2.msra.mxu0 0.0
    %1969 = vmatprep.subr.mxu0 0.0
    %1970 = vmatpush2.msra.mxu0 0.0
    %1971 = vmatprep.subr.mxu0 0.0
    %1972 = vmatpush2.msra.mxu0 0.0
    %1973 = vmatprep.subr.mxu0 0.0
    %1974 = vmatpush2.msra.mxu0 0.0
    %1975 = vmatprep.subr.mxu0 0.0
    %1976 = vmatpush2.msra.mxu0 0.0
    %1977 = vmatprep.subr.mxu0 0.0
    %1978 = vmatpush2.msra.mxu0 0.0
    %1979 = vmatprep.subr.mxu0 0.0
    %1980 = vmatpush2.msra.mxu0 0.0
    %1981 = vmatprep.mubr.f32.mxu0 0.0
    %1982 = vmatmul.mubr.f32.gmra.mxu0 %v1909
    %v1983 = vpop.f32.mrf.mxu0
    %v1984 = vadd.f32 0.0, %v1983
    %v1985 = vpop.f32.mrf.mxu0
    %v1986 = vadd.f32 0.0, %v1985
    %1987 = vdwg.mxu0
    %1988 = vmatprep.subr.mxu0 0.0
    %1989 = vmatpush1.msra.mxu0 0.0
    %1990 = vmatprep.subr.mxu0 0.0
    %1991 = vmatpush1.msra.mxu0 0.0
    %1992 = vmatprep.subr.mxu0 0.0
    %1993 = vmatpush1.msra.mxu0 0.0
    %1994 = vmatprep.subr.mxu0 0.0
    %1995 = vmatpush1.msra.mxu0 0.0
    %1996 = vmatprep.subr.mxu0 0.0
    %1997 = vmatpush1.msra.mxu0 0.0
    %1998 = vmatprep.subr.mxu0 0.0
    %1999 = vmatpush1.msra.mxu0 0.0
    %2000 = vmatprep.subr.mxu0 0.0
    %2001 = vmatpush1.msra.mxu0 0.0
    %2002 = vmatprep.subr.mxu0 0.0
    %2003 = vmatpush1.msra.mxu0 0.0
    %2004 = vmatprep.subr.mxu0 0.0
    %2005 = vmatpush1.msra.mxu0 0.0
    %2006 = vmatprep.subr.mxu0 0.0
    %2007 = vmatpush1.msra.mxu0 0.0
    %2008 = vmatprep.subr.mxu0 0.0
    %2009 = vmatpush1.msra.mxu0 0.0
    %2010 = vmatprep.subr.mxu0 0.0
    %2011 = vmatpush1.msra.mxu0 0.0
    %2012 = vmatprep.subr.mxu0 0.0
    %2013 = vmatpush1.msra.mxu0 0.0
    %2014 = vmatprep.subr.mxu0 0.0
    %2015 = vmatpush1.msra.mxu0 0.0
    %2016 = vmatprep.subr.mxu0 0.0
    %2017 = vmatpush1.msra.mxu0 0.0
    %2018 = vmatprep.subr.mxu0 0.0
    %2019 = vmatpush1.msra.mxu0 %v1915
    %2020 = vmatprep.subr.mxu0 0.0
    %2021 = vmatpush2.msra.mxu0 0.0
    %2022 = vmatprep.subr.mxu0 0.0
    %2023 = vmatpush2.msra.mxu0 0.0
    %2024 = vmatprep.subr.mxu0 0.0
    %2025 = vmatpush2.msra.mxu0 0.0
    %2026 = vmatprep.subr.mxu0 0.0
    %2027 = vmatpush2.msra.mxu0 0.0
    %2028 = vmatprep.subr.mxu0 0.0
    %2029 = vmatpush2.msra.mxu0 0.0
    %2030 = vmatprep.subr.mxu0 0.0
    %2031 = vmatpush2.msra.mxu0 0.0
    %2032 = vmatprep.subr.mxu0 0.0
    %2033 = vmatpush2.msra.mxu0 0.0
    %2034 = vmatprep.subr.mxu0 0.0
    %2035 = vmatpush2.msra.mxu0 0.0
    %2036 = vmatprep.subr.mxu0 0.0
    %2037 = vmatpush2.msra.mxu0 0.0
    %2038 = vmatprep.subr.mxu0 0.0
    %2039 = vmatpush2.msra.mxu0 0.0
    %2040 = vmatprep.subr.mxu0 0.0
    %2041 = vmatpush2.msra.mxu0 0.0
    %2042 = vmatprep.subr.mxu0 0.0
    %2043 = vmatpush2.msra.mxu0 0.0
    %2044 = vmatprep.subr.mxu0 0.0
    %2045 = vmatpush2.msra.mxu0 0.0
    %2046 = vmatprep.subr.mxu0 0.0
    %2047 = vmatpush2.msra.mxu0 0.0
    %2048 = vmatprep.subr.mxu0 0.0
    %2049 = vmatpush2.msra.mxu0 0.0
    %2050 = vmatprep.subr.mxu0 0.0
    %2051 = vmatpush2.msra.mxu0 0.0
    %2052 = vmatprep.mubr.f32.mxu0 0.0
    %2053 = vmatmul.mubr.f32.gmra.mxu0 %v1909
    %v2054 = vpop.f32.mrf.mxu0
    %v2055 = vadd.f32 0.0, %v2054
    %v2056 = vpop.f32.mrf.mxu0
    %2057 = vdwg.mxu0
    %v2058 = vadd.f32 %v1820, %v1984
    %v2059 = vadd.f32 %v1822, %v1986
    %v2060 = vadd.f32 %v1891, %v2055
    %v2061 = vld [vmem:[%s1578] sm:$0xff]
    %v2062 = vld [vmem:[%s1578 + $0x8] sm:$0xf]
    %v2063 = vld [vmem:[%s505] sm:$0xff]
    %v2066 = vcombine.high %v2061, %v2061
    %2067 = vrot.lane.b32.xlu0 %v2061, 110
    %v2068 = vpop.permute.xlu0 %2067
    %2069 = vrot.lane.b32.xlu0 %v2066, 110
    %v2070 = vpop.permute.xlu0 %2069
    %2071 = vrot.lane.b32.xlu0 %v2062, 110
    %v2072 = vpop.permute.xlu0 %2071
    %v2073 = vsel %vm516, %v2068, %v2070
    %v2074 = vsel %vm516, %v2070, %v2072
    %v2076 = vsel %vm32, %v2063, 0
    %v2078 = vsel %vm36, %v2073, 0
    %v2080 = vsel %vm36, %v2074, 0
    %v2082 = vsel %vm36, %v2072, 0
    %2084 = vmatprep.subr.mxu0 0.0
    %2085 = vmatpush1.msra.mxu0 0.0
    %2086 = vmatprep.subr.mxu0 0.0
    %2087 = vmatpush1.msra.mxu0 0.0
    %2088 = vmatprep.subr.mxu0 0.0
    %2089 = vmatpush1.msra.mxu0 0.0
    %2090 = vmatprep.subr.mxu0 0.0
    %2091 = vmatpush1.msra.mxu0 0.0
    %2092 = vmatprep.subr.mxu0 0.0
    %2093 = vmatpush1.msra.mxu0 0.0
    %2094 = vmatprep.subr.mxu0 0.0
    %2095 = vmatpush1.msra.mxu0 0.0
    %2096 = vmatprep.subr.mxu0 0.0
    %2097 = vmatpush1.msra.mxu0 0.0
    %2098 = vmatprep.subr.mxu0 0.0
    %2099 = vmatpush1.msra.mxu0 0.0
    %2100 = vmatprep.subr.mxu0 0.0
    %2101 = vmatpush1.msra.mxu0 0.0
    %2102 = vmatprep.subr.mxu0 0.0
    %2103 = vmatpush1.msra.mxu0 0.0
    %2104 = vmatprep.subr.mxu0 0.0
    %2105 = vmatpush1.msra.mxu0 0.0
    %2106 = vmatprep.subr.mxu0 0.0
    %2107 = vmatpush1.msra.mxu0 0.0
    %2108 = vmatprep.subr.mxu0 0.0
    %2109 = vmatpush1.msra.mxu0 0.0
    %2110 = vmatprep.subr.mxu0 0.0
    %2111 = vmatpush1.msra.mxu0 0.0
    %2112 = vmatprep.subr.mxu0 0.0
    %2113 = vmatpush1.msra.mxu0 0.0
    %2114 = vmatprep.subr.mxu0 %v2080
    %2115 = vmatpush1.msra.mxu0 %v2078
    %2116 = vmatprep.subr.mxu0 0.0
    %2117 = vmatpush2.msra.mxu0 0.0
    %2118 = vmatprep.subr.mxu0 0.0
    %2119 = vmatpush2.msra.mxu0 0.0
    %2120 = vmatprep.subr.mxu0 0.0
    %2121 = vmatpush2.msra.mxu0 0.0
    %2122 = vmatprep.subr.mxu0 0.0
    %2123 = vmatpush2.msra.mxu0 0.0
    %2124 = vmatprep.subr.mxu0 0.0
    %2125 = vmatpush2.msra.mxu0 0.0
    %2126 = vmatprep.subr.mxu0 0.0
    %2127 = vmatpush2.msra.mxu0 0.0
    %2128 = vmatprep.subr.mxu0 0.0
    %2129 = vmatpush2.msra.mxu0 0.0
    %2130 = vmatprep.subr.mxu0 0.0
    %2131 = vmatpush2.msra.mxu0 0.0
    %2132 = vmatprep.subr.mxu0 0.0
    %2133 = vmatpush2.msra.mxu0 0.0
    %2134 = vmatprep.subr.mxu0 0.0
    %2135 = vmatpush2.msra.mxu0 0.0
    %2136 = vmatprep.subr.mxu0 0.0
    %2137 = vmatpush2.msra.mxu0 0.0
    %2138 = vmatprep.subr.mxu0 0.0
    %2139 = vmatpush2.msra.mxu0 0.0
    %2140 = vmatprep.subr.mxu0 0.0
    %2141 = vmatpush2.msra.mxu0 0.0
    %2142 = vmatprep.subr.mxu0 0.0
    %2143 = vmatpush2.msra.mxu0 0.0
    %2144 = vmatprep.subr.mxu0 0.0
    %2145 = vmatpush2.msra.mxu0 0.0
    %2146 = vmatprep.subr.mxu0 0.0
    %2147 = vmatpush2.msra.mxu0 0.0
    %2148 = vmatprep.mubr.f32.mxu0 0.0
    %2149 = vmatmul.mubr.f32.gmra.mxu0 %v2076
    %v2150 = vpop.f32.mrf.mxu0
    %v2151 = vadd.f32 0.0, %v2150
    %v2152 = vpop.f32.mrf.mxu0
    %v2153 = vadd.f32 0.0, %v2152
    %2154 = vdwg.mxu0
    %2155 = vmatprep.subr.mxu0 0.0
    %2156 = vmatpush1.msra.mxu0 0.0
    %2157 = vmatprep.subr.mxu0 0.0
    %2158 = vmatpush1.msra.mxu0 0.0
    %2159 = vmatprep.subr.mxu0 0.0
    %2160 = vmatpush1.msra.mxu0 0.0
    %2161 = vmatprep.subr.mxu0 0.0
    %2162 = vmatpush1.msra.mxu0 0.0
    %2163 = vmatprep.subr.mxu0 0.0
    %2164 = vmatpush1.msra.mxu0 0.0
    %2165 = vmatprep.subr.mxu0 0.0
    %2166 = vmatpush1.msra.mxu0 0.0
    %2167 = vmatprep.subr.mxu0 0.0
    %2168 = vmatpush1.msra.mxu0 0.0
    %2169 = vmatprep.subr.mxu0 0.0
    %2170 = vmatpush1.msra.mxu0 0.0
    %2171 = vmatprep.subr.mxu0 0.0
    %2172 = vmatpush1.msra.mxu0 0.0
    %2173 = vmatprep.subr.mxu0 0.0
    %2174 = vmatpush1.msra.mxu0 0.0
    %2175 = vmatprep.subr.mxu0 0.0
    %2176 = vmatpush1.msra.mxu0 0.0
    %2177 = vmatprep.subr.mxu0 0.0
    %2178 = vmatpush1.msra.mxu0 0.0
    %2179 = vmatprep.subr.mxu0 0.0
    %2180 = vmatpush1.msra.mxu0 0.0
    %2181 = vmatprep.subr.mxu0 0.0
    %2182 = vmatpush1.msra.mxu0 0.0
    %2183 = vmatprep.subr.mxu0 0.0
    %2184 = vmatpush1.msra.mxu0 0.0
    %2185 = vmatprep.subr.mxu0 0.0
    %2186 = vmatpush1.msra.mxu0 %v2082
    %2187 = vmatprep.subr.mxu0 0.0
    %2188 = vmatpush2.msra.mxu0 0.0
    %2189 = vmatprep.subr.mxu0 0.0
    %2190 = vmatpush2.msra.mxu0 0.0
    %2191 = vmatprep.subr.mxu0 0.0
    %2192 = vmatpush2.msra.mxu0 0.0
    %2193 = vmatprep.subr.mxu0 0.0
    %2194 = vmatpush2.msra.mxu0 0.0
    %2195 = vmatprep.subr.mxu0 0.0
    %2196 = vmatpush2.msra.mxu0 0.0
    %2197 = vmatprep.subr.mxu0 0.0
    %2198 = vmatpush2.msra.mxu0 0.0
    %2199 = vmatprep.subr.mxu0 0.0
    %2200 = vmatpush2.msra.mxu0 0.0
    %2201 = vmatprep.subr.mxu0 0.0
    %2202 = vmatpush2.msra.mxu0 0.0
    %2203 = vmatprep.subr.mxu0 0.0
    %2204 = vmatpush2.msra.mxu0 0.0
    %2205 = vmatprep.subr.mxu0 0.0
    %2206 = vmatpush2.msra.mxu0 0.0
    %2207 = vmatprep.subr.mxu0 0.0
    %2208 = vmatpush2.msra.mxu0 0.0
    %2209 = vmatprep.subr.mxu0 0.0
    %2210 = vmatpush2.msra.mxu0 0.0
    %2211 = vmatprep.subr.mxu0 0.0
    %2212 = vmatpush2.msra.mxu0 0.0
    %2213 = vmatprep.subr.mxu0 0.0
    %2214 = vmatpush2.msra.mxu0 0.0
    %2215 = vmatprep.subr.mxu0 0.0
    %2216 = vmatpush2.msra.mxu0 0.0
    %2217 = vmatprep.subr.mxu0 0.0
    %2218 = vmatpush2.msra.mxu0 0.0
    %2219 = vmatprep.mubr.f32.mxu0 0.0
    %2220 = vmatmul.mubr.f32.gmra.mxu0 %v2076
    %v2221 = vpop.f32.mrf.mxu0
    %v2222 = vadd.f32 0.0, %v2221
    %v2223 = vpop.f32.mrf.mxu0
    %2224 = vdwg.mxu0
    %v2225 = vadd.f32 %v2058, %v2151
    %v2226 = vadd.f32 %v2059, %v2153
    %v2227 = vadd.f32 %v2060, %v2222
    %v2228 = vld [vmem:[%s1578] sm:$0xff]
    %v2229 = vld [vmem:[%s1578 + $0x8] sm:$0xf]
    %v2230 = vld [vmem:[%s674] sm:$0xff]
    %v2233 = vcombine.high %v2228, %v2228
    %2234 = vrot.lane.b32.xlu0 %v2228, 109
    %v2235 = vpop.permute.xlu0 %2234
    %2236 = vrot.lane.b32.xlu0 %v2233, 109
    %v2237 = vpop.permute.xlu0 %2236
    %2238 = vrot.lane.b32.xlu0 %v2229, 109
    %v2239 = vpop.permute.xlu0 %2238
    %v2240 = vsel %vm685, %v2235, %v2237
    %v2241 = vsel %vm685, %v2237, %v2239
    %v2243 = vsel %vm32, %v2230, 0
    %v2245 = vsel %vm36, %v2240, 0
    %v2247 = vsel %vm36, %v2241, 0
    %v2249 = vsel %vm36, %v2239, 0
    %2251 = vmatprep.subr.mxu0 0.0
    %2252 = vmatpush1.msra.mxu0 0.0
    %2253 = vmatprep.subr.mxu0 0.0
    %2254 = vmatpush1.msra.mxu0 0.0
    %2255 = vmatprep.subr.mxu0 0.0
    %2256 = vmatpush1.msra.mxu0 0.0
    %2257 = vmatprep.subr.mxu0 0.0
    %2258 = vmatpush1.msra.mxu0 0.0
    %2259 = vmatprep.subr.mxu0 0.0
    %2260 = vmatpush1.msra.mxu0 0.0
    %2261 = vmatprep.subr.mxu0 0.0
    %2262 = vmatpush1.msra.mxu0 0.0
    %2263 = vmatprep.subr.mxu0 0.0
    %2264 = vmatpush1.msra.mxu0 0.0
    %2265 = vmatprep.subr.mxu0 0.0
    %2266 = vmatpush1.msra.mxu0 0.0
    %2267 = vmatprep.subr.mxu0 0.0
    %2268 = vmatpush1.msra.mxu0 0.0
    %2269 = vmatprep.subr.mxu0 0.0
    %2270 = vmatpush1.msra.mxu0 0.0
    %2271 = vmatprep.subr.mxu0 0.0
    %2272 = vmatpush1.msra.mxu0 0.0
    %2273 = vmatprep.subr.mxu0 0.0
    %2274 = vmatpush1.msra.mxu0 0.0
    %2275 = vmatprep.subr.mxu0 0.0
    %2276 = vmatpush1.msra.mxu0 0.0
    %2277 = vmatprep.subr.mxu0 0.0
    %2278 = vmatpush1.msra.mxu0 0.0
    %2279 = vmatprep.subr.mxu0 0.0
    %2280 = vmatpush1.msra.mxu0 0.0
    %2281 = vmatprep.subr.mxu0 %v2247
    %2282 = vmatpush1.msra.mxu0 %v2245
    %2283 = vmatprep.subr.mxu0 0.0
    %2284 = vmatpush2.msra.mxu0 0.0
    %2285 = vmatprep.subr.mxu0 0.0
    %2286 = vmatpush2.msra.mxu0 0.0
    %2287 = vmatprep.subr.mxu0 0.0
    %2288 = vmatpush2.msra.mxu0 0.0
    %2289 = vmatprep.subr.mxu0 0.0
    %2290 = vmatpush2.msra.mxu0 0.0
    %2291 = vmatprep.subr.mxu0 0.0
    %2292 = vmatpush2.msra.mxu0 0.0
    %2293 = vmatprep.subr.mxu0 0.0
    %2294 = vmatpush2.msra.mxu0 0.0
    %2295 = vmatprep.subr.mxu0 0.0
    %2296 = vmatpush2.msra.mxu0 0.0
    %2297 = vmatprep.subr.mxu0 0.0
    %2298 = vmatpush2.msra.mxu0 0.0
    %2299 = vmatprep.subr.mxu0 0.0
    %2300 = vmatpush2.msra.mxu0 0.0
    %2301 = vmatprep.subr.mxu0 0.0
    %2302 = vmatpush2.msra.mxu0 0.0
    %2303 = vmatprep.subr.mxu0 0.0
    %2304 = vmatpush2.msra.mxu0 0.0
    %2305 = vmatprep.subr.mxu0 0.0
    %2306 = vmatpush2.msra.mxu0 0.0
    %2307 = vmatprep.subr.mxu0 0.0
    %2308 = vmatpush2.msra.mxu0 0.0
    %2309 = vmatprep.subr.mxu0 0.0
    %2310 = vmatpush2.msra.mxu0 0.0
    %2311 = vmatprep.subr.mxu0 0.0
    %2312 = vmatpush2.msra.mxu0 0.0
    %2313 = vmatprep.subr.mxu0 0.0
    %2314 = vmatpush2.msra.mxu0 0.0
    %2315 = vmatprep.mubr.f32.mxu0 0.0
    %2316 = vmatmul.mubr.f32.gmra.mxu0 %v2243
    %v2317 = vpop.f32.mrf.mxu0
    %v2318 = vadd.f32 0.0, %v2317
    %v2319 = vpop.f32.mrf.mxu0
    %v2320 = vadd.f32 0.0, %v2319
    %2321 = vdwg.mxu0
    %2322 = vmatprep.subr.mxu0 0.0
    %2323 = vmatpush1.msra.mxu0 0.0
    %2324 = vmatprep.subr.mxu0 0.0
    %2325 = vmatpush1.msra.mxu0 0.0
    %2326 = vmatprep.subr.mxu0 0.0
    %2327 = vmatpush1.msra.mxu0 0.0
    %2328 = vmatprep.subr.mxu0 0.0
    %2329 = vmatpush1.msra.mxu0 0.0
    %2330 = vmatprep.subr.mxu0 0.0
    %2331 = vmatpush1.msra.mxu0 0.0
    %2332 = vmatprep.subr.mxu0 0.0
    %2333 = vmatpush1.msra.mxu0 0.0
    %2334 = vmatprep.subr.mxu0 0.0
    %2335 = vmatpush1.msra.mxu0 0.0
    %2336 = vmatprep.subr.mxu0 0.0
    %2337 = vmatpush1.msra.mxu0 0.0
    %2338 = vmatprep.subr.mxu0 0.0
    %2339 = vmatpush1.msra.mxu0 0.0
    %2340 = vmatprep.subr.mxu0 0.0
    %2341 = vmatpush1.msra.mxu0 0.0
    %2342 = vmatprep.subr.mxu0 0.0
    %2343 = vmatpush1.msra.mxu0 0.0
    %2344 = vmatprep.subr.mxu0 0.0
    %2345 = vmatpush1.msra.mxu0 0.0
    %2346 = vmatprep.subr.mxu0 0.0
    %2347 = vmatpush1.msra.mxu0 0.0
    %2348 = vmatprep.subr.mxu0 0.0
    %2349 = vmatpush1.msra.mxu0 0.0
    %2350 = vmatprep.subr.mxu0 0.0
    %2351 = vmatpush1.msra.mxu0 0.0
    %2352 = vmatprep.subr.mxu0 0.0
    %2353 = vmatpush1.msra.mxu0 %v2249
    %2354 = vmatprep.subr.mxu0 0.0
    %2355 = vmatpush2.msra.mxu0 0.0
    %2356 = vmatprep.subr.mxu0 0.0
    %2357 = vmatpush2.msra.mxu0 0.0
    %2358 = vmatprep.subr.mxu0 0.0
    %2359 = vmatpush2.msra.mxu0 0.0
    %2360 = vmatprep.subr.mxu0 0.0
    %2361 = vmatpush2.msra.mxu0 0.0
    %2362 = vmatprep.subr.mxu0 0.0
    %2363 = vmatpush2.msra.mxu0 0.0
    %2364 = vmatprep.subr.mxu0 0.0
    %2365 = vmatpush2.msra.mxu0 0.0
    %2366 = vmatprep.subr.mxu0 0.0
    %2367 = vmatpush2.msra.mxu0 0.0
    %2368 = vmatprep.subr.mxu0 0.0
    %2369 = vmatpush2.msra.mxu0 0.0
    %2370 = vmatprep.subr.mxu0 0.0
    %2371 = vmatpush2.msra.mxu0 0.0
    %2372 = vmatprep.subr.mxu0 0.0
    %2373 = vmatpush2.msra.mxu0 0.0
    %2374 = vmatprep.subr.mxu0 0.0
    %2375 = vmatpush2.msra.mxu0 0.0
    %2376 = vmatprep.subr.mxu0 0.0
    %2377 = vmatpush2.msra.mxu0 0.0
    %2378 = vmatprep.subr.mxu0 0.0
    %2379 = vmatpush2.msra.mxu0 0.0
    %2380 = vmatprep.subr.mxu0 0.0
    %2381 = vmatpush2.msra.mxu0 0.0
    %2382 = vmatprep.subr.mxu0 0.0
    %2383 = vmatpush2.msra.mxu0 0.0
    %2384 = vmatprep.subr.mxu0 0.0
    %2385 = vmatpush2.msra.mxu0 0.0
    %2386 = vmatprep.mubr.f32.mxu0 0.0
    %2387 = vmatmul.mubr.f32.gmra.mxu0 %v2243
    %v2388 = vpop.f32.mrf.mxu0
    %v2389 = vadd.f32 0.0, %v2388
    %v2390 = vpop.f32.mrf.mxu0
    %2391 = vdwg.mxu0
    %v2392 = vadd.f32 %v2225, %v2318
    %v2393 = vadd.f32 %v2226, %v2320
    %v2394 = vadd.f32 %v2227, %v2389
    %v2395 = vld [vmem:[%s1578] sm:$0xff]
    %v2396 = vld [vmem:[%s1578 + $0x8] sm:$0xf]
    %v2397 = vld [vmem:[%s843] sm:$0xff]
    %v2400 = vcombine.high %v2395, %v2395
    %2401 = vrot.lane.b32.xlu0 %v2395, 108
    %v2402 = vpop.permute.xlu0 %2401
    %2403 = vrot.lane.b32.xlu0 %v2400, 108
    %v2404 = vpop.permute.xlu0 %2403
    %2405 = vrot.lane.b32.xlu0 %v2396, 108
    %v2406 = vpop.permute.xlu0 %2405
    %v2407 = vsel %vm854, %v2402, %v2404
    %v2408 = vsel %vm854, %v2404, %v2406
    %v2410 = vsel %vm32, %v2397, 0
    %v2412 = vsel %vm36, %v2407, 0
    %v2414 = vsel %vm36, %v2408, 0
    %v2416 = vsel %vm36, %v2406, 0
    %2418 = vmatprep.subr.mxu0 0.0
    %2419 = vmatpush1.msra.mxu0 0.0
    %2420 = vmatprep.subr.mxu0 0.0
    %2421 = vmatpush1.msra.mxu0 0.0
    %2422 = vmatprep.subr.mxu0 0.0
    %2423 = vmatpush1.msra.mxu0 0.0
    %2424 = vmatprep.subr.mxu0 0.0
    %2425 = vmatpush1.msra.mxu0 0.0
    %2426 = vmatprep.subr.mxu0 0.0
    %2427 = vmatpush1.msra.mxu0 0.0
    %2428 = vmatprep.subr.mxu0 0.0
    %2429 = vmatpush1.msra.mxu0 0.0
    %2430 = vmatprep.subr.mxu0 0.0
    %2431 = vmatpush1.msra.mxu0 0.0
    %2432 = vmatprep.subr.mxu0 0.0
    %2433 = vmatpush1.msra.mxu0 0.0
    %2434 = vmatprep.subr.mxu0 0.0
    %2435 = vmatpush1.msra.mxu0 0.0
    %2436 = vmatprep.subr.mxu0 0.0
    %2437 = vmatpush1.msra.mxu0 0.0
    %2438 = vmatprep.subr.mxu0 0.0
    %2439 = vmatpush1.msra.mxu0 0.0
    %2440 = vmatprep.subr.mxu0 0.0
    %2441 = vmatpush1.msra.mxu0 0.0
    %2442 = vmatprep.subr.mxu0 0.0
    %2443 = vmatpush1.msra.mxu0 0.0
    %2444 = vmatprep.subr.mxu0 0.0
    %2445 = vmatpush1.msra.mxu0 0.0
    %2446 = vmatprep.subr.mxu0 0.0
    %2447 = vmatpush1.msra.mxu0 0.0
    %2448 = vmatprep.subr.mxu0 %v2414
    %2449 = vmatpush1.msra.mxu0 %v2412
    %2450 = vmatprep.subr.mxu0 0.0
    %2451 = vmatpush2.msra.mxu0 0.0
    %2452 = vmatprep.subr.mxu0 0.0
    %2453 = vmatpush2.msra.mxu0 0.0
    %2454 = vmatprep.subr.mxu0 0.0
    %2455 = vmatpush2.msra.mxu0 0.0
    %2456 = vmatprep.subr.mxu0 0.0
    %2457 = vmatpush2.msra.mxu0 0.0
    %2458 = vmatprep.subr.mxu0 0.0
    %2459 = vmatpush2.msra.mxu0 0.0
    %2460 = vmatprep.subr.mxu0 0.0
    %2461 = vmatpush2.msra.mxu0 0.0
    %2462 = vmatprep.subr.mxu0 0.0
    %2463 = vmatpush2.msra.mxu0 0.0
    %2464 = vmatprep.subr.mxu0 0.0
    %2465 = vmatpush2.msra.mxu0 0.0
    %2466 = vmatprep.subr.mxu0 0.0
    %2467 = vmatpush2.msra.mxu0 0.0
    %2468 = vmatprep.subr.mxu0 0.0
    %2469 = vmatpush2.msra.mxu0 0.0
    %2470 = vmatprep.subr.mxu0 0.0
    %2471 = vmatpush2.msra.mxu0 0.0
    %2472 = vmatprep.subr.mxu0 0.0
    %2473 = vmatpush2.msra.mxu0 0.0
    %2474 = vmatprep.subr.mxu0 0.0
    %2475 = vmatpush2.msra.mxu0 0.0
    %2476 = vmatprep.subr.mxu0 0.0
    %2477 = vmatpush2.msra.mxu0 0.0
    %2478 = vmatprep.subr.mxu0 0.0
    %2479 = vmatpush2.msra.mxu0 0.0
    %2480 = vmatprep.subr.mxu0 0.0
    %2481 = vmatpush2.msra.mxu0 0.0
    %2482 = vmatprep.mubr.f32.mxu0 0.0
    %2483 = vmatmul.mubr.f32.gmra.mxu0 %v2410
    %v2484 = vpop.f32.mrf.mxu0
    %v2485 = vadd.f32 0.0, %v2484
    %v2486 = vpop.f32.mrf.mxu0
    %v2487 = vadd.f32 0.0, %v2486
    %2488 = vdwg.mxu0
    %2489 = vmatprep.subr.mxu0 0.0
    %2490 = vmatpush1.msra.mxu0 0.0
    %2491 = vmatprep.subr.mxu0 0.0
    %2492 = vmatpush1.msra.mxu0 0.0
    %2493 = vmatprep.subr.mxu0 0.0
    %2494 = vmatpush1.msra.mxu0 0.0
    %2495 = vmatprep.subr.mxu0 0.0
    %2496 = vmatpush1.msra.mxu0 0.0
    %2497 = vmatprep.subr.mxu0 0.0
    %2498 = vmatpush1.msra.mxu0 0.0
    %2499 = vmatprep.subr.mxu0 0.0
    %2500 = vmatpush1.msra.mxu0 0.0
    %2501 = vmatprep.subr.mxu0 0.0
    %2502 = vmatpush1.msra.mxu0 0.0
    %2503 = vmatprep.subr.mxu0 0.0
    %2504 = vmatpush1.msra.mxu0 0.0
    %2505 = vmatprep.subr.mxu0 0.0
    %2506 = vmatpush1.msra.mxu0 0.0
    %2507 = vmatprep.subr.mxu0 0.0
    %2508 = vmatpush1.msra.mxu0 0.0
    %2509 = vmatprep.subr.mxu0 0.0
    %2510 = vmatpush1.msra.mxu0 0.0
    %2511 = vmatprep.subr.mxu0 0.0
    %2512 = vmatpush1.msra.mxu0 0.0
    %2513 = vmatprep.subr.mxu0 0.0
    %2514 = vmatpush1.msra.mxu0 0.0
    %2515 = vmatprep.subr.mxu0 0.0
    %2516 = vmatpush1.msra.mxu0 0.0
    %2517 = vmatprep.subr.mxu0 0.0
    %2518 = vmatpush1.msra.mxu0 0.0
    %2519 = vmatprep.subr.mxu0 0.0
    %2520 = vmatpush1.msra.mxu0 %v2416
    %2521 = vmatprep.subr.mxu0 0.0
    %2522 = vmatpush2.msra.mxu0 0.0
    %2523 = vmatprep.subr.mxu0 0.0
    %2524 = vmatpush2.msra.mxu0 0.0
    %2525 = vmatprep.subr.mxu0 0.0
    %2526 = vmatpush2.msra.mxu0 0.0
    %2527 = vmatprep.subr.mxu0 0.0
    %2528 = vmatpush2.msra.mxu0 0.0
    %2529 = vmatprep.subr.mxu0 0.0
    %2530 = vmatpush2.msra.mxu0 0.0
    %2531 = vmatprep.subr.mxu0 0.0
    %2532 = vmatpush2.msra.mxu0 0.0
    %2533 = vmatprep.subr.mxu0 0.0
    %2534 = vmatpush2.msra.mxu0 0.0
    %2535 = vmatprep.subr.mxu0 0.0
    %2536 = vmatpush2.msra.mxu0 0.0
    %2537 = vmatprep.subr.mxu0 0.0
    %2538 = vmatpush2.msra.mxu0 0.0
    %2539 = vmatprep.subr.mxu0 0.0
    %2540 = vmatpush2.msra.mxu0 0.0
    %2541 = vmatprep.subr.mxu0 0.0
    %2542 = vmatpush2.msra.mxu0 0.0
    %2543 = vmatprep.subr.mxu0 0.0
    %2544 = vmatpush2.msra.mxu0 0.0
    %2545 = vmatprep.subr.mxu0 0.0
    %2546 = vmatpush2.msra.mxu0 0.0
    %2547 = vmatprep.subr.mxu0 0.0
    %2548 = vmatpush2.msra.mxu0 0.0
    %2549 = vmatprep.subr.mxu0 0.0
    %2550 = vmatpush2.msra.mxu0 0.0
    %2551 = vmatprep.subr.mxu0 0.0
    %2552 = vmatpush2.msra.mxu0 0.0
    %2553 = vmatprep.mubr.f32.mxu0 0.0
    %2554 = vmatmul.mubr.f32.gmra.mxu0 %v2410
    %v2555 = vpop.f32.mrf.mxu0
    %v2556 = vadd.f32 0.0, %v2555
    %v2557 = vpop.f32.mrf.mxu0
    %2558 = vdwg.mxu0
    %v2559 = vadd.f32 %v2392, %v2485
    %v2560 = vadd.f32 %v2393, %v2487
    %v2561 = vadd.f32 %v2394, %v2556
    %v2562 = vld [vmem:[%s1578] sm:$0xff]
    %v2563 = vld [vmem:[%s1578 + $0x8] sm:$0xf]
    %v2564 = vld [vmem:[%s1012] sm:$0xff]
    %v2567 = vcombine.high %v2562, %v2562
    %2568 = vrot.lane.b32.xlu0 %v2562, 92
    %v2569 = vpop.permute.xlu0 %2568
    %2570 = vrot.lane.b32.xlu0 %v2567, 92
    %v2571 = vpop.permute.xlu0 %2570
    %2572 = vrot.lane.b32.xlu0 %v2563, 92
    %v2573 = vpop.permute.xlu0 %2572
    %v2574 = vsel %vm1023, %v2569, %v2571
    %v2575 = vsel %vm1023, %v2571, %v2573
    %v2577 = vsel %vm32, %v2564, 0
    %v2579 = vsel %vm36, %v2574, 0
    %v2581 = vsel %vm36, %v2575, 0
    %v2583 = vsel %vm36, %v2573, 0
    %2585 = vmatprep.subr.mxu0 0.0
    %2586 = vmatpush1.msra.mxu0 0.0
    %2587 = vmatprep.subr.mxu0 0.0
    %2588 = vmatpush1.msra.mxu0 0.0
    %2589 = vmatprep.subr.mxu0 0.0
    %2590 = vmatpush1.msra.mxu0 0.0
    %2591 = vmatprep.subr.mxu0 0.0
    %2592 = vmatpush1.msra.mxu0 0.0
    %2593 = vmatprep.subr.mxu0 0.0
    %2594 = vmatpush1.msra.mxu0 0.0
    %2595 = vmatprep.subr.mxu0 0.0
    %2596 = vmatpush1.msra.mxu0 0.0
    %2597 = vmatprep.subr.mxu0 0.0
    %2598 = vmatpush1.msra.mxu0 0.0
    %2599 = vmatprep.subr.mxu0 0.0
    %2600 = vmatpush1.msra.mxu0 0.0
    %2601 = vmatprep.subr.mxu0 0.0
    %2602 = vmatpush1.msra.mxu0 0.0
    %2603 = vmatprep.subr.mxu0 0.0
    %2604 = vmatpush1.msra.mxu0 0.0
    %2605 = vmatprep.subr.mxu0 0.0
    %2606 = vmatpush1.msra.mxu0 0.0
    %2607 = vmatprep.subr.mxu0 0.0
    %2608 = vmatpush1.msra.mxu0 0.0
    %2609 = vmatprep.subr.mxu0 0.0
    %2610 = vmatpush1.msra.mxu0 0.0
    %2611 = vmatprep.subr.mxu0 0.0
    %2612 = vmatpush1.msra.mxu0 0.0
    %2613 = vmatprep.subr.mxu0 0.0
    %2614 = vmatpush1.msra.mxu0 0.0
    %2615 = vmatprep.subr.mxu0 %v2581
    %2616 = vmatpush1.msra.mxu0 %v2579
    %2617 = vmatprep.subr.mxu0 0.0
    %2618 = vmatpush2.msra.mxu0 0.0
    %2619 = vmatprep.subr.mxu0 0.0
    %2620 = vmatpush2.msra.mxu0 0.0
    %2621 = vmatprep.subr.mxu0 0.0
    %2622 = vmatpush2.msra.mxu0 0.0
    %2623 = vmatprep.subr.mxu0 0.0
    %2624 = vmatpush2.msra.mxu0 0.0
    %2625 = vmatprep.subr.mxu0 0.0
    %2626 = vmatpush2.msra.mxu0 0.0
    %2627 = vmatprep.subr.mxu0 0.0
    %2628 = vmatpush2.msra.mxu0 0.0
    %2629 = vmatprep.subr.mxu0 0.0
    %2630 = vmatpush2.msra.mxu0 0.0
    %2631 = vmatprep.subr.mxu0 0.0
    %2632 = vmatpush2.msra.mxu0 0.0
    %2633 = vmatprep.subr.mxu0 0.0
    %2634 = vmatpush2.msra.mxu0 0.0
    %2635 = vmatprep.subr.mxu0 0.0
    %2636 = vmatpush2.msra.mxu0 0.0
    %2637 = vmatprep.subr.mxu0 0.0
    %2638 = vmatpush2.msra.mxu0 0.0
    %2639 = vmatprep.subr.mxu0 0.0
    %2640 = vmatpush2.msra.mxu0 0.0
    %2641 = vmatprep.subr.mxu0 0.0
    %2642 = vmatpush2.msra.mxu0 0.0
    %2643 = vmatprep.subr.mxu0 0.0
    %2644 = vmatpush2.msra.mxu0 0.0
    %2645 = vmatprep.subr.mxu0 0.0
    %2646 = vmatpush2.msra.mxu0 0.0
    %2647 = vmatprep.subr.mxu0 0.0
    %2648 = vmatpush2.msra.mxu0 0.0
    %2649 = vmatprep.mubr.f32.mxu0 0.0
    %2650 = vmatmul.mubr.f32.gmra.mxu0 %v2577
    %v2651 = vpop.f32.mrf.mxu0
    %v2652 = vadd.f32 0.0, %v2651
    %v2653 = vpop.f32.mrf.mxu0
    %v2654 = vadd.f32 0.0, %v2653
    %2655 = vdwg.mxu0
    %2656 = vmatprep.subr.mxu0 0.0
    %2657 = vmatpush1.msra.mxu0 0.0
    %2658 = vmatprep.subr.mxu0 0.0
    %2659 = vmatpush1.msra.mxu0 0.0
    %2660 = vmatprep.subr.mxu0 0.0
    %2661 = vmatpush1.msra.mxu0 0.0
    %2662 = vmatprep.subr.mxu0 0.0
    %2663 = vmatpush1.msra.mxu0 0.0
    %2664 = vmatprep.subr.mxu0 0.0
    %2665 = vmatpush1.msra.mxu0 0.0
    %2666 = vmatprep.subr.mxu0 0.0
    %2667 = vmatpush1.msra.mxu0 0.0
    %2668 = vmatprep.subr.mxu0 0.0
    %2669 = vmatpush1.msra.mxu0 0.0
    %2670 = vmatprep.subr.mxu0 0.0
    %2671 = vmatpush1.msra.mxu0 0.0
    %2672 = vmatprep.subr.mxu0 0.0
    %2673 = vmatpush1.msra.mxu0 0.0
    %2674 = vmatprep.subr.mxu0 0.0
    %2675 = vmatpush1.msra.mxu0 0.0
    %2676 = vmatprep.subr.mxu0 0.0
    %2677 = vmatpush1.msra.mxu0 0.0
    %2678 = vmatprep.subr.mxu0 0.0
    %2679 = vmatpush1.msra.mxu0 0.0
    %2680 = vmatprep.subr.mxu0 0.0
    %2681 = vmatpush1.msra.mxu0 0.0
    %2682 = vmatprep.subr.mxu0 0.0
    %2683 = vmatpush1.msra.mxu0 0.0
    %2684 = vmatprep.subr.mxu0 0.0
    %2685 = vmatpush1.msra.mxu0 0.0
    %2686 = vmatprep.subr.mxu0 0.0
    %2687 = vmatpush1.msra.mxu0 %v2583
    %2688 = vmatprep.subr.mxu0 0.0
    %2689 = vmatpush2.msra.mxu0 0.0
    %2690 = vmatprep.subr.mxu0 0.0
    %2691 = vmatpush2.msra.mxu0 0.0
    %2692 = vmatprep.subr.mxu0 0.0
    %2693 = vmatpush2.msra.mxu0 0.0
    %2694 = vmatprep.subr.mxu0 0.0
    %2695 = vmatpush2.msra.mxu0 0.0
    %2696 = vmatprep.subr.mxu0 0.0
    %2697 = vmatpush2.msra.mxu0 0.0
    %2698 = vmatprep.subr.mxu0 0.0
    %2699 = vmatpush2.msra.mxu0 0.0
    %2700 = vmatprep.subr.mxu0 0.0
    %2701 = vmatpush2.msra.mxu0 0.0
    %2702 = vmatprep.subr.mxu0 0.0
    %2703 = vmatpush2.msra.mxu0 0.0
    %2704 = vmatprep.subr.mxu0 0.0
    %2705 = vmatpush2.msra.mxu0 0.0
    %2706 = vmatprep.subr.mxu0 0.0
    %2707 = vmatpush2.msra.mxu0 0.0
    %2708 = vmatprep.subr.mxu0 0.0
    %2709 = vmatpush2.msra.mxu0 0.0
    %2710 = vmatprep.subr.mxu0 0.0
    %2711 = vmatpush2.msra.mxu0 0.0
    %2712 = vmatprep.subr.mxu0 0.0
    %2713 = vmatpush2.msra.mxu0 0.0
    %2714 = vmatprep.subr.mxu0 0.0
    %2715 = vmatpush2.msra.mxu0 0.0
    %2716 = vmatprep.subr.mxu0 0.0
    %2717 = vmatpush2.msra.mxu0 0.0
    %2718 = vmatprep.subr.mxu0 0.0
    %2719 = vmatpush2.msra.mxu0 0.0
    %2720 = vmatprep.mubr.f32.mxu0 0.0
    %2721 = vmatmul.mubr.f32.gmra.mxu0 %v2577
    %v2722 = vpop.f32.mrf.mxu0
    %v2723 = vadd.f32 0.0, %v2722
    %v2724 = vpop.f32.mrf.mxu0
    %2725 = vdwg.mxu0
    %v2726 = vadd.f32 %v2559, %v2652
    %v2727 = vadd.f32 %v2560, %v2654
    %v2728 = vadd.f32 %v2561, %v2723
    %v2729 = vld [vmem:[%s1578] sm:$0xff]
    %v2730 = vld [vmem:[%s1578 + $0x8] sm:$0xf]
    %v2731 = vld [vmem:[%s1181] sm:$0xff]
    %v2734 = vcombine.high %v2729, %v2729
    %2735 = vrot.lane.b32.xlu0 %v2729, 91
    %v2736 = vpop.permute.xlu0 %2735
    %2737 = vrot.lane.b32.xlu0 %v2734, 91
    %v2738 = vpop.permute.xlu0 %2737
    %2739 = vrot.lane.b32.xlu0 %v2730, 91
    %v2740 = vpop.permute.xlu0 %2739
    %v2741 = vsel %vm1192, %v2736, %v2738
    %v2742 = vsel %vm1192, %v2738, %v2740
    %v2744 = vsel %vm32, %v2731, 0
    %v2746 = vsel %vm36, %v2741, 0
    %v2748 = vsel %vm36, %v2742, 0
    %v2750 = vsel %vm36, %v2740, 0
    %2752 = vmatprep.subr.mxu0 0.0
    %2753 = vmatpush1.msra.mxu0 0.0
    %2754 = vmatprep.subr.mxu0 0.0
    %2755 = vmatpush1.msra.mxu0 0.0
    %2756 = vmatprep.subr.mxu0 0.0
    %2757 = vmatpush1.msra.mxu0 0.0
    %2758 = vmatprep.subr.mxu0 0.0
    %2759 = vmatpush1.msra.mxu0 0.0
    %2760 = vmatprep.subr.mxu0 0.0
    %2761 = vmatpush1.msra.mxu0 0.0
    %2762 = vmatprep.subr.mxu0 0.0
    %2763 = vmatpush1.msra.mxu0 0.0
    %2764 = vmatprep.subr.mxu0 0.0
    %2765 = vmatpush1.msra.mxu0 0.0
    %2766 = vmatprep.subr.mxu0 0.0
    %2767 = vmatpush1.msra.mxu0 0.0
    %2768 = vmatprep.subr.mxu0 0.0
    %2769 = vmatpush1.msra.mxu0 0.0
    %2770 = vmatprep.subr.mxu0 0.0
    %2771 = vmatpush1.msra.mxu0 0.0
    %2772 = vmatprep.subr.mxu0 0.0
    %2773 = vmatpush1.msra.mxu0 0.0
    %2774 = vmatprep.subr.mxu0 0.0
    %2775 = vmatpush1.msra.mxu0 0.0
    %2776 = vmatprep.subr.mxu0 0.0
    %2777 = vmatpush1.msra.mxu0 0.0
    %2778 = vmatprep.subr.mxu0 0.0
    %2779 = vmatpush1.msra.mxu0 0.0
    %2780 = vmatprep.subr.mxu0 0.0
    %2781 = vmatpush1.msra.mxu0 0.0
    %2782 = vmatprep.subr.mxu0 %v2748
    %2783 = vmatpush1.msra.mxu0 %v2746
    %2784 = vmatprep.subr.mxu0 0.0
    %2785 = vmatpush2.msra.mxu0 0.0
    %2786 = vmatprep.subr.mxu0 0.0
    %2787 = vmatpush2.msra.mxu0 0.0
    %2788 = vmatprep.subr.mxu0 0.0
    %2789 = vmatpush2.msra.mxu0 0.0
    %2790 = vmatprep.subr.mxu0 0.0
    %2791 = vmatpush2.msra.mxu0 0.0
    %2792 = vmatprep.subr.mxu0 0.0
    %2793 = vmatpush2.msra.mxu0 0.0
    %2794 = vmatprep.subr.mxu0 0.0
    %2795 = vmatpush2.msra.mxu0 0.0
    %2796 = vmatprep.subr.mxu0 0.0
    %2797 = vmatpush2.msra.mxu0 0.0
    %2798 = vmatprep.subr.mxu0 0.0
    %2799 = vmatpush2.msra.mxu0 0.0
    %2800 = vmatprep.subr.mxu0 0.0
    %2801 = vmatpush2.msra.mxu0 0.0
    %2802 = vmatprep.subr.mxu0 0.0
    %2803 = vmatpush2.msra.mxu0 0.0
    %2804 = vmatprep.subr.mxu0 0.0
    %2805 = vmatpush2.msra.mxu0 0.0
    %2806 = vmatprep.subr.mxu0 0.0
    %2807 = vmatpush2.msra.mxu0 0.0
    %2808 = vmatprep.subr.mxu0 0.0
    %2809 = vmatpush2.msra.mxu0 0.0
    %2810 = vmatprep.subr.mxu0 0.0
    %2811 = vmatpush2.msra.mxu0 0.0
    %2812 = vmatprep.subr.mxu0 0.0
    %2813 = vmatpush2.msra.mxu0 0.0
    %2814 = vmatprep.subr.mxu0 0.0
    %2815 = vmatpush2.msra.mxu0 0.0
    %2816 = vmatprep.mubr.f32.mxu0 0.0
    %2817 = vmatmul.mubr.f32.gmra.mxu0 %v2744
    %v2818 = vpop.f32.mrf.mxu0
    %v2819 = vadd.f32 0.0, %v2818
    %v2820 = vpop.f32.mrf.mxu0
    %v2821 = vadd.f32 0.0, %v2820
    %2822 = vdwg.mxu0
    %2823 = vmatprep.subr.mxu0 0.0
    %2824 = vmatpush1.msra.mxu0 0.0
    %2825 = vmatprep.subr.mxu0 0.0
    %2826 = vmatpush1.msra.mxu0 0.0
    %2827 = vmatprep.subr.mxu0 0.0
    %2828 = vmatpush1.msra.mxu0 0.0
    %2829 = vmatprep.subr.mxu0 0.0
    %2830 = vmatpush1.msra.mxu0 0.0
    %2831 = vmatprep.subr.mxu0 0.0
    %2832 = vmatpush1.msra.mxu0 0.0
    %2833 = vmatprep.subr.mxu0 0.0
    %2834 = vmatpush1.msra.mxu0 0.0
    %2835 = vmatprep.subr.mxu0 0.0
    %2836 = vmatpush1.msra.mxu0 0.0
    %2837 = vmatprep.subr.mxu0 0.0
    %2838 = vmatpush1.msra.mxu0 0.0
    %2839 = vmatprep.subr.mxu0 0.0
    %2840 = vmatpush1.msra.mxu0 0.0
    %2841 = vmatprep.subr.mxu0 0.0
    %2842 = vmatpush1.msra.mxu0 0.0
    %2843 = vmatprep.subr.mxu0 0.0
    %2844 = vmatpush1.msra.mxu0 0.0
    %2845 = vmatprep.subr.mxu0 0.0
    %2846 = vmatpush1.msra.mxu0 0.0
    %2847 = vmatprep.subr.mxu0 0.0
    %2848 = vmatpush1.msra.mxu0 0.0
    %2849 = vmatprep.subr.mxu0 0.0
    %2850 = vmatpush1.msra.mxu0 0.0
    %2851 = vmatprep.subr.mxu0 0.0
    %2852 = vmatpush1.msra.mxu0 0.0
    %2853 = vmatprep.subr.mxu0 0.0
    %2854 = vmatpush1.msra.mxu0 %v2750
    %2855 = vmatprep.subr.mxu0 0.0
    %2856 = vmatpush2.msra.mxu0 0.0
    %2857 = vmatprep.subr.mxu0 0.0
    %2858 = vmatpush2.msra.mxu0 0.0
    %2859 = vmatprep.subr.mxu0 0.0
    %2860 = vmatpush2.msra.mxu0 0.0
    %2861 = vmatprep.subr.mxu0 0.0
    %2862 = vmatpush2.msra.mxu0 0.0
    %2863 = vmatprep.subr.mxu0 0.0
    %2864 = vmatpush2.msra.mxu0 0.0
    %2865 = vmatprep.subr.mxu0 0.0
    %2866 = vmatpush2.msra.mxu0 0.0
    %2867 = vmatprep.subr.mxu0 0.0
    %2868 = vmatpush2.msra.mxu0 0.0
    %2869 = vmatprep.subr.mxu0 0.0
    %2870 = vmatpush2.msra.mxu0 0.0
    %2871 = vmatprep.subr.mxu0 0.0
    %2872 = vmatpush2.msra.mxu0 0.0
    %2873 = vmatprep.subr.mxu0 0.0
    %2874 = vmatpush2.msra.mxu0 0.0
    %2875 = vmatprep.subr.mxu0 0.0
    %2876 = vmatpush2.msra.mxu0 0.0
    %2877 = vmatprep.subr.mxu0 0.0
    %2878 = vmatpush2.msra.mxu0 0.0
    %2879 = vmatprep.subr.mxu0 0.0
    %2880 = vmatpush2.msra.mxu0 0.0
    %2881 = vmatprep.subr.mxu0 0.0
    %2882 = vmatpush2.msra.mxu0 0.0
    %2883 = vmatprep.subr.mxu0 0.0
    %2884 = vmatpush2.msra.mxu0 0.0
    %2885 = vmatprep.subr.mxu0 0.0
    %2886 = vmatpush2.msra.mxu0 0.0
    %2887 = vmatprep.mubr.f32.mxu0 0.0
    %2888 = vmatmul.mubr.f32.gmra.mxu0 %v2744
    %v2889 = vpop.f32.mrf.mxu0
    %v2890 = vadd.f32 0.0, %v2889
    %v2891 = vpop.f32.mrf.mxu0
    %2892 = vdwg.mxu0
    %v2893 = vadd.f32 %v2726, %v2819
    %v2894 = vadd.f32 %v2727, %v2821
    %v2895 = vadd.f32 %v2728, %v2890
    %v2896 = vld [vmem:[%s1578] sm:$0xff]
    %v2897 = vld [vmem:[%s1578 + $0x8] sm:$0xf]
    %v2898 = vld [vmem:[%s1350] sm:$0xff]
    %v2901 = vcombine.high %v2896, %v2896
    %2902 = vrot.lane.b32.xlu0 %v2896, 90
    %v2903 = vpop.permute.xlu0 %2902
    %2904 = vrot.lane.b32.xlu0 %v2901, 90
    %v2905 = vpop.permute.xlu0 %2904
    %2906 = vrot.lane.b32.xlu0 %v2897, 90
    %v2907 = vpop.permute.xlu0 %2906
    %v2908 = vsel %vm1361, %v2903, %v2905
    %v2909 = vsel %vm1361, %v2905, %v2907
    %v2911 = vsel %vm32, %v2898, 0
    %v2913 = vsel %vm36, %v2908, 0
    %v2915 = vsel %vm36, %v2909, 0
    %v2917 = vsel %vm36, %v2907, 0
    %2919 = vmatprep.subr.mxu0 0.0
    %2920 = vmatpush1.msra.mxu0 0.0
    %2921 = vmatprep.subr.mxu0 0.0
    %2922 = vmatpush1.msra.mxu0 0.0
    %2923 = vmatprep.subr.mxu0 0.0
    %2924 = vmatpush1.msra.mxu0 0.0
    %2925 = vmatprep.subr.mxu0 0.0
    %2926 = vmatpush1.msra.mxu0 0.0
    %2927 = vmatprep.subr.mxu0 0.0
    %2928 = vmatpush1.msra.mxu0 0.0
    %2929 = vmatprep.subr.mxu0 0.0
    %2930 = vmatpush1.msra.mxu0 0.0
    %2931 = vmatprep.subr.mxu0 0.0
    %2932 = vmatpush1.msra.mxu0 0.0
    %2933 = vmatprep.subr.mxu0 0.0
    %2934 = vmatpush1.msra.mxu0 0.0
    %2935 = vmatprep.subr.mxu0 0.0
    %2936 = vmatpush1.msra.mxu0 0.0
    %2937 = vmatprep.subr.mxu0 0.0
    %2938 = vmatpush1.msra.mxu0 0.0
    %2939 = vmatprep.subr.mxu0 0.0
    %2940 = vmatpush1.msra.mxu0 0.0
    %2941 = vmatprep.subr.mxu0 0.0
    %2942 = vmatpush1.msra.mxu0 0.0
    %2943 = vmatprep.subr.mxu0 0.0
    %2944 = vmatpush1.msra.mxu0 0.0
    %2945 = vmatprep.subr.mxu0 0.0
    %2946 = vmatpush1.msra.mxu0 0.0
    %2947 = vmatprep.subr.mxu0 0.0
    %2948 = vmatpush1.msra.mxu0 0.0
    %2949 = vmatprep.subr.mxu0 %v2915
    %2950 = vmatpush1.msra.mxu0 %v2913
    %2951 = vmatprep.subr.mxu0 0.0
    %2952 = vmatpush2.msra.mxu0 0.0
    %2953 = vmatprep.subr.mxu0 0.0
    %2954 = vmatpush2.msra.mxu0 0.0
    %2955 = vmatprep.subr.mxu0 0.0
    %2956 = vmatpush2.msra.mxu0 0.0
    %2957 = vmatprep.subr.mxu0 0.0
    %2958 = vmatpush2.msra.mxu0 0.0
    %2959 = vmatprep.subr.mxu0 0.0
    %2960 = vmatpush2.msra.mxu0 0.0
    %2961 = vmatprep.subr.mxu0 0.0
    %2962 = vmatpush2.msra.mxu0 0.0
    %2963 = vmatprep.subr.mxu0 0.0
    %2964 = vmatpush2.msra.mxu0 0.0
    %2965 = vmatprep.subr.mxu0 0.0
    %2966 = vmatpush2.msra.mxu0 0.0
    %2967 = vmatprep.subr.mxu0 0.0
    %2968 = vmatpush2.msra.mxu0 0.0
    %2969 = vmatprep.subr.mxu0 0.0
    %2970 = vmatpush2.msra.mxu0 0.0
    %2971 = vmatprep.subr.mxu0 0.0
    %2972 = vmatpush2.msra.mxu0 0.0
    %2973 = vmatprep.subr.mxu0 0.0
    %2974 = vmatpush2.msra.mxu0 0.0
    %2975 = vmatprep.subr.mxu0 0.0
    %2976 = vmatpush2.msra.mxu0 0.0
    %2977 = vmatprep.subr.mxu0 0.0
    %2978 = vmatpush2.msra.mxu0 0.0
    %2979 = vmatprep.subr.mxu0 0.0
    %2980 = vmatpush2.msra.mxu0 0.0
    %2981 = vmatprep.subr.mxu0 0.0
    %2982 = vmatpush2.msra.mxu0 0.0
    %2983 = vmatprep.mubr.f32.mxu0 0.0
    %2984 = vmatmul.mubr.f32.gmra.mxu0 %v2911
    %v2985 = vpop.f32.mrf.mxu0
    %v2986 = vadd.f32 0.0, %v2985
    %v2987 = vpop.f32.mrf.mxu0
    %v2988 = vadd.f32 0.0, %v2987
    %2989 = vdwg.mxu0
    %2990 = vmatprep.subr.mxu0 0.0
    %2991 = vmatpush1.msra.mxu0 0.0
    %2992 = vmatprep.subr.mxu0 0.0
    %2993 = vmatpush1.msra.mxu0 0.0
    %2994 = vmatprep.subr.mxu0 0.0
    %2995 = vmatpush1.msra.mxu0 0.0
    %2996 = vmatprep.subr.mxu0 0.0
    %2997 = vmatpush1.msra.mxu0 0.0
    %2998 = vmatprep.subr.mxu0 0.0
    %2999 = vmatpush1.msra.mxu0 0.0
    %3000 = vmatprep.subr.mxu0 0.0
    %3001 = vmatpush1.msra.mxu0 0.0
    %3002 = vmatprep.subr.mxu0 0.0
    %3003 = vmatpush1.msra.mxu0 0.0
    %3004 = vmatprep.subr.mxu0 0.0
    %3005 = vmatpush1.msra.mxu0 0.0
    %3006 = vmatprep.subr.mxu0 0.0
    %3007 = vmatpush1.msra.mxu0 0.0
    %3008 = vmatprep.subr.mxu0 0.0
    %3009 = vmatpush1.msra.mxu0 0.0
    %3010 = vmatprep.subr.mxu0 0.0
    %3011 = vmatpush1.msra.mxu0 0.0
    %3012 = vmatprep.subr.mxu0 0.0
    %3013 = vmatpush1.msra.mxu0 0.0
    %3014 = vmatprep.subr.mxu0 0.0
    %3015 = vmatpush1.msra.mxu0 0.0
    %3016 = vmatprep.subr.mxu0 0.0
    %3017 = vmatpush1.msra.mxu0 0.0
    %3018 = vmatprep.subr.mxu0 0.0
    %3019 = vmatpush1.msra.mxu0 0.0
    %3020 = vmatprep.subr.mxu0 0.0
    %3021 = vmatpush1.msra.mxu0 %v2917
    %3022 = vmatprep.subr.mxu0 0.0
    %3023 = vmatpush2.msra.mxu0 0.0
    %3024 = vmatprep.subr.mxu0 0.0
    %3025 = vmatpush2.msra.mxu0 0.0
    %3026 = vmatprep.subr.mxu0 0.0
    %3027 = vmatpush2.msra.mxu0 0.0
    %3028 = vmatprep.subr.mxu0 0.0
    %3029 = vmatpush2.msra.mxu0 0.0
    %3030 = vmatprep.subr.mxu0 0.0
    %3031 = vmatpush2.msra.mxu0 0.0
    %3032 = vmatprep.subr.mxu0 0.0
    %3033 = vmatpush2.msra.mxu0 0.0
    %3034 = vmatprep.subr.mxu0 0.0
    %3035 = vmatpush2.msra.mxu0 0.0
    %3036 = vmatprep.subr.mxu0 0.0
    %3037 = vmatpush2.msra.mxu0 0.0
    %3038 = vmatprep.subr.mxu0 0.0
    %3039 = vmatpush2.msra.mxu0 0.0
    %3040 = vmatprep.subr.mxu0 0.0
    %3041 = vmatpush2.msra.mxu0 0.0
    %3042 = vmatprep.subr.mxu0 0.0
    %3043 = vmatpush2.msra.mxu0 0.0
    %3044 = vmatprep.subr.mxu0 0.0
    %3045 = vmatpush2.msra.mxu0 0.0
    %3046 = vmatprep.subr.mxu0 0.0
    %3047 = vmatpush2.msra.mxu0 0.0
    %3048 = vmatprep.subr.mxu0 0.0
    %3049 = vmatpush2.msra.mxu0 0.0
    %3050 = vmatprep.subr.mxu0 0.0
    %3051 = vmatpush2.msra.mxu0 0.0
    %3052 = vmatprep.subr.mxu0 0.0
    %3053 = vmatpush2.msra.mxu0 0.0
    %3054 = vmatprep.mubr.f32.mxu0 0.0
    %3055 = vmatmul.mubr.f32.gmra.mxu0 %v2911
    %v3056 = vpop.f32.mrf.mxu0
    %v3057 = vadd.f32 0.0, %v3056
    %v3058 = vpop.f32.mrf.mxu0
    %3059 = vdwg.mxu0
    %v3060 = vadd.f32 %v2893, %v2986
    %v3061 = vadd.f32 %v2894, %v2988
    %v3062 = vadd.f32 %v2895, %v3057
    %v3063 = vld [vmem:[%s2] sm:$0x7]
    %v3065 = vlaneseq
    %v3066 = vshrl.u32 %v3065, 7
    %v3067 = vsub.s32 0, %v3066
    %v3068 = vrot.slane %v3063, %v3067
    %v3069 = vlaneseq
    %v3070 = vshrl.u32 %v3069, 7
    %v3071 = vsub.s32 1, %v3070
    %v3072 = vrot.slane %v3063, %v3071
    %v3073 = vlaneseq
    %v3074 = vshrl.u32 %v3073, 7
    %v3075 = vsub.s32 2, %v3074
    %v3076 = vrot.slane %v3063, %v3075
    %v3080 = vmul.f32 %v3060, %v3068
    %v3081 = vmul.f32 %v3061, %v3072
    %v3082 = vmul.f32 %v3062, %v3076
    %v3083 = vadd.f32 %v3080, %v3081
    %v3084 = vsel %vm1538, %v3082, 0.0
    %v3085 = vadd.f32 %v3083, %v3084
    %3086 = vadd.xlane.f32.xlu0 %v3085
    %v3087 = vpop.xlane.xlu0 %3086
    %v3088 = vmul.f32 %v3060, %v3060
    %v3089 = vmul.f32 %v3061, %v3061
    %v3090 = vmul.f32 %v3062, %v3062
    %v3091 = vmul.f32 %v3088, %v3068
    %v3092 = vmul.f32 %v3089, %v3072
    %v3093 = vmul.f32 %v3090, %v3076
    %v3094 = vadd.f32 %v3091, %v3092
    %v3095 = vsel %vm1538, %v3093, 0.0
    %v3096 = vadd.f32 %v3094, %v3095
    %3097 = vadd.xlane.f32.xlu0 %v3096
    %v3098 = vpop.xlane.xlu0 %3097
    %v3099 = vmul.f32 %v3087, 0.00390625
    %v3100 = vmul.f32 %v3098, 0.00390625
    %v3101 = vmul.f32 %v3099, %v3099
    %v3102 = vsub.f32 %v3100, %v3101
    %v3103 = vsub.f32 %v3060, %v3099
    %v3104 = vsub.f32 %v3061, %v3099
    %v3105 = vsub.f32 %v3062, %v3099
    %v3106 = vadd.f32 %v3102, 1e-05
    %v3107 = vrsqrt.pop %v3106
    %v3108 = vmul.f32 %v3103, %v3107
    %v3109 = vmul.f32 %v3104, %v3107
    %v3110 = vmul.f32 %v3105, %v3107
    %vm3111 = vcmp.ge.f32.partialorder %v3108, 0.0
    %vm3112 = vcmp.ge.f32.partialorder %v3109, 0.0
    %vm3113 = vcmp.ge.f32.partialorder %v3110, 0.0
    %v3114 = vmul.f32 %v3108, 0.2
    %v3115 = vmul.f32 %v3109, 0.2
    %v3116 = vmul.f32 %v3110, 0.2
    %v3117 = vsel %vm3111, %v3108, %v3114
    %v3118 = vsel %vm3112, %v3109, %v3115
    %v3119 = vsel %vm3113, %v3110, %v3116
    %s3120 = scalar_lea.vmem [#allocation2], 24
    %3121 = vst [vmem:[%s3120] sm:$0xff] %v3117
    %3122 = vst [vmem:[%s3120 + $0x8] sm:$0xff] %v3118
    %3123 = vst.msk [vmem:[%s3120 + $0x10] sm:$0xff] %vm1538, %v3119
    // Predicated region
    $region14: #{tpu_custom_call.1} parent=1 // pred_check
      _
    $region15: #{tpu_custom_call.1} parent=1 // pred_check_branch
      %3125 = sbr.rel (0) target = $region17
    $region16: #{tpu_custom_call.1} parent=1 // pred_region
      %s3127 = ssub.s32 768, 768
      %3128 = vsyncadd [#allocation3], %s3127
      %s3129 = sshll.u32 [#allocation2], 4
      %s3130 = int_to_ptr.vmem [resolvable:$true] %s3129
      %3135 = dma.vmem_to_hbm [thread:$0]  %s3130, 768, %s3, [#allocation3], 384, 384, 24
    $region17: #{tpu_custom_call.1} parent=1 // pred_fallthru
      _
    // Predicated region
    $region18: #{tpu_custom_call.1} parent=1 // pred_check
      _
    $region19: #{tpu_custom_call.1} parent=1 // pred_check_branch
      %3137 = sbr.rel (0) target = $region21
    $region20: #{tpu_custom_call.1} parent=1 // pred_region
      %3138 = dma.done [#allocation3], 768
    $region21: #{tpu_custom_call.1} parent=1 // pred_fallthru
      _
    %3139 = vsyncpa [#allocation3], 1

</llo_original>
